<compile_context>
chip_gen: v7x
topology: tpu7x:2x2x1
jax: 0.10.0
libtpu: 0.0.40
codegen_flags: <defaults>
</compile_context>

<pallas_src>
import functools

import numpy as np
import jax
import jax.numpy as jnp
from jax.experimental import pallas as pl
from jax.experimental.pallas import tpu as pltpu


# ---------------------------------------------------------------------------
# helpers
# ---------------------------------------------------------------------------

K1Y, K1YP = 400, 512      # y-branch fc1 input features (valid, padded)
K1Z, K1ZP = 192, 256      # z-branch w_fc1 input features (valid, padded)


def _round_up(x, m):
    return (x + m - 1) // m * m


def _whole_spec(shape):
    nd = len(shape)
    return pl.BlockSpec(shape, lambda i, _nd=nd: (0,) * _nd)


def _nbytes(a):
    return int(np.prod(a.shape)) * np.dtype(a.dtype).itemsize


# ---------------------------------------------------------------------------
# Pallas kernels
# ---------------------------------------------------------------------------

def _conv_stage_kernel(ycols_ref, zcols_ref, wy_ref, by_ref, wz_ref, bz_ref,
                       oy_ref, oz_ref, *, kpy, kpz):
    """conv (im2col matmul) + 2x2 max-pool + bias + ReLU for BOTH branches.

    *cols refs hold the patch vectors of the 4 pool offsets packed along the
    128-aligned K axis; the kernel takes the max of the 4 partial matmuls
    before bias + ReLU (valid since bias is per-channel and ReLU is monotone).
    Dots run bf16 on the MXU with f32 accumulation; elementwise math is f32.
    """
    wy = wy_ref[...]
    acc = jnp.dot(ycols_ref[:, :kpy], wy, preferred_element_type=jnp.float32)
    for t in range(1, 4):
        acc = jnp.maximum(acc, jnp.dot(ycols_ref[:, t * kpy:(t + 1) * kpy], wy,
                                       preferred_element_type=jnp.float32))
    oy_ref[...] = jnp.maximum(acc + by_ref[...], 0.0)

    wz = wz_ref[...]
    acc = jnp.dot(zcols_ref[:, :kpz], wz, preferred_element_type=jnp.float32)
    for t in range(1, 4):
        acc = jnp.maximum(acc, jnp.dot(zcols_ref[:, t * kpz:(t + 1) * kpz], wz,
                                       preferred_element_type=jnp.float32))
    oz_ref[...] = jnp.maximum(acc + bz_ref[...], 0.0)


def _fc_kernel(a_ref, w1_ref, b1y_ref, b1z_ref, w2_ref, b2_ref, w3_ref, b3_ref,
               o_ref, *, half):
    """Folded FC head of both branches + (y + z) / 2 epilogue.

    a_ref rows [0:half] are y-branch features (cols [0:K1YP]), rows [half:]
    are z-branch features (cols [K1YP:]); w1 is the block-K stacked fc1/w_fc1
    weight, so one dot serves both branches. fc2/fc3 run once on the stacked
    activations. bf16 MXU inputs, f32 accumulation / elementwise.
    """
    h = jnp.dot(a_ref[...], w1_ref[...], preferred_element_type=jnp.float32)
    rows = jax.lax.broadcasted_iota(jnp.int32, h.shape, 0)
    b1 = jnp.where(rows < half,
                   jnp.broadcast_to(b1y_ref[...], h.shape),
                   jnp.broadcast_to(b1z_ref[...], h.shape))
    h = jnp.maximum(h + b1, 0.0)
    h = jnp.maximum(jnp.dot(h.astype(jnp.bfloat16), w2_ref[...],
                            preferred_element_type=jnp.float32) + b2_ref[...], 0.0)
    h = jnp.dot(h.astype(jnp.bfloat16), w3_ref[...],
                preferred_element_type=jnp.float32) + b3_ref[...]
    o_ref[...] = (h[:half, :] + h[half:, :]) * 0.5


# ---------------------------------------------------------------------------
# Pallas wrappers
# ---------------------------------------------------------------------------

def conv_stage(ycols, zcols, wy, by, wz, bz, kpy, kpz):
    My, Mz = ycols.shape[0], zcols.shape[0]
    flops = 2 * 4 * 128 * (My * kpy + Mz * kpz)
    bytes_acc = sum(_nbytes(a) for a in (ycols, zcols, wy, by, wz, bz)) \
        + (My + Mz) * 128 * 4
    return pl.pallas_call(
        functools.partial(_conv_stage_kernel, kpy=kpy, kpz=kpz),
        out_shape=(jax.ShapeDtypeStruct((My, 128), jnp.float32),
                   jax.ShapeDtypeStruct((Mz, 128), jnp.float32)),
        grid=(1,),
        in_specs=[_whole_spec(a.shape) for a in (ycols, zcols, wy, by, wz, bz)],
        out_specs=(_whole_spec((My, 128)), _whole_spec((Mz, 128))),
        compiler_params=pltpu.CompilerParams(
            dimension_semantics=("arbitrary",)),
        cost_estimate=pl.CostEstimate(flops=int(flops), transcendentals=0,
                                      bytes_accessed=int(bytes_acc)),
    )(ycols, zcols, wy, by, wz, bz)


def fc_stack(y_feat, z_feat, kp):
    """Both branches' FC stacks, fused, ending in (y + z) / 2."""
    B = y_feat.shape[0]
    Bp = _round_up(B, 8)
    KT = K1YP + K1ZP
    ay = jnp.pad(y_feat, ((0, Bp - B), (0, KT - K1Y)))
    az = jnp.pad(z_feat, ((0, Bp - B), (K1YP, K1ZP - K1Z)))
    a = jnp.concatenate([ay, az], axis=0).astype(jnp.bfloat16)   # (2*Bp, KT)

    args = (a, kp["w1"], kp["b1y"], kp["b1z"], kp["w2"], kp["b2"],
            kp["w3"], kp["b3"])
    flops = 2 * (2 * Bp) * 128 * (KT + 128 + 128)
    bytes_acc = sum(_nbytes(t) for t in args) + Bp * 128 * 4
    out = pl.pallas_call(
        functools.partial(_fc_kernel, half=Bp),
        out_shape=jax.ShapeDtypeStruct((Bp, 128), jnp.float32),
        grid=(1,),
        in_specs=[_whole_spec(t.shape) for t in args],
        out_specs=_whole_spec((Bp, 128)),
        compiler_params=pltpu.CompilerParams(
            dimension_semantics=("arbitrary",)),
        cost_estimate=pl.CostEstimate(flops=int(flops), transcendentals=0,
                                      bytes_accessed=int(bytes_acc)),
    )(*args)
    return out[:B, :10]


# ---------------------------------------------------------------------------
# XLA glue: pooled-position im2col (runs under the same jit).
# TODO(synk): the im2col gather has no clean in-kernel Pallas equivalent at
# these lane-narrow NHWC layouts (it would need sublane gathers), so patch
# extraction stays as XLA glue; only the pooled conv positions are built and
# the 4 pool offsets are packed along the 128-aligned K axis.
# ---------------------------------------------------------------------------

def _pool_patches(x_nhwc, kh, kw, kpad):
    N, H, W, C = x_nhwc.shape
    OH, OW = H - kh + 1, W - kw + 1
    PH, PW = OH // 2, OW // 2
    K = C * kh * kw
    pats = jnp.stack(
        [x_nhwc[:, i:i + OH, j:j + OW, :] for i in range(kh) for j in range(kw)],
        axis=-1)                                   # (N, OH, OW, C, kh*kw)
    pats = pats.reshape(N, OH, OW, K)              # K ordered (c, dh, dw)
    pats = pats[:, :2 * PH, :2 * PW, :]
    pats = pats.reshape(N, PH, 2, PW, 2, K).transpose(0, 1, 3, 2, 4, 5)
    M = N * PH * PW
    Mp = _round_up(M, 16)
    pats = pats.reshape(M, 4, K)
    pats = jnp.pad(pats, ((0, Mp - M), (0, 0), (0, kpad - K)))
    return pats.reshape(Mp, 4 * kpad).astype(jnp.bfloat16), M, PH, PW


# ---------------------------------------------------------------------------
# Scattering2D(J=1, shape=(32, 32), L=8) via factored DFT matmuls (no FFT).
# TODO(synk): the Morlet filter bank approximates kymatio's Scattering2D
# construction (no direct kymatio port); structure (|x*psi| -> low-pass -> ds)
# matches the reference.
# ---------------------------------------------------------------------------

def _gabor_2d(M, N, sigma, theta, xi, slant):
    yy, xx = np.mgrid[0:M, 0:N].astype(np.float64)
    xx = xx - N // 2
    yy = yy - M // 2
    ct, st = np.cos(theta), np.sin(theta)
    xr = ct * xx + st * yy
    yr = -st * xx + ct * yy
    env = np.exp(-(xr ** 2 + (slant * yr) ** 2) / (2.0 * sigma ** 2))
    gab = env * np.exp(1j * xi * xr)
    norm = 1.0 / (2.0 * np.pi * sigma ** 2 / slant)
    return gab * norm, env * norm


def build_scattering_constants(M=32, N=32, J=1, L=8):
    psi = []
    for ell in range(L):
        theta = np.pi * ell / L
        gab, env = _gabor_2d(M, N, sigma=0.8, theta=theta,
                             xi=3.0 * np.pi / 4.0, slant=4.0 / L)
        Kc = gab.sum() / env.sum()
        psi.append(np.fft.fft2(np.fft.ifftshift(gab - Kc * env)))
    psi = np.stack(psi)                                        # (L, M, N)

    sigma_phi = 0.8 * (2.0 ** J)
    yy, xx = np.mgrid[0:M, 0:N].astype(np.float64)
    xx = xx - N // 2
    yy = yy - M // 2
    g = np.exp(-(xx ** 2 + yy ** 2) / (2.0 * sigma_phi ** 2))
    g = g / g.sum()
    phi = np.real(np.fft.fft2(np.fft.ifftshift(g)))

    k = np.arange(M)
    ang = 2.0 * np.pi * np.outer(k, k) / M
    sub = 2 ** J
    consts = {
        "Fr": np.cos(ang), "Fi": -np.sin(ang),                 # forward DFT
        "Gr": np.cos(ang) / M, "Gi": np.sin(ang) / M,          # inverse DFT
        "Gr2": (np.cos(ang) / M)[::sub],                       # subsampled iDFT
        "Gi2": (np.sin(ang) / M)[::sub],
        "psi_r": np.real(psi), "psi_i": np.imag(psi),
        "phi": phi,
    }
    return {name: jnp.asarray(v, jnp.float32) for name, v in consts.items()}


def _cplx_dft2(Mr, Mi, xr, xi):
    """Y = M @ X @ M^T on the trailing two axes, M = Mr + i*Mi complex,
    X = xr + i*xi (xi may be None). Returns (Yr, Yi)."""
    if xi is None:
        tr = jnp.einsum("km,...mn->...kn", Mr, xr)
        ti = jnp.einsum("km,...mn->...kn", Mi, xr)
    else:
        tr = (jnp.einsum("km,...mn->...kn", Mr, xr)
              - jnp.einsum("km,...mn->...kn", Mi, xi))
        ti = (jnp.einsum("km,...mn->...kn", Mi, xr)
              + jnp.einsum("km,...mn->...kn", Mr, xi))
    yr = (jnp.einsum("...kn,ln->...kl", tr, Mr)
          - jnp.einsum("...kn,ln->...kl", ti, Mi))
    yi = (jnp.einsum("...kn,ln->...kl", ti, Mr)
          + jnp.einsum("...kn,ln->...kl", tr, Mi))
    return yr, yi


def scattering2d_dft(x, sc):
    """x: (B, C, 32, 32) -> (B, C, 1 + L, 16, 16)."""
    phi = sc["phi"]
    xr, xi = _cplx_dft2(sc["Fr"], sc["Fi"], x, None)                 # fft2(x)
    s0, _ = _cplx_dft2(sc["Gr2"], sc["Gi2"], xr * phi, xi * phi)     # phi + ds
    zr = xr[:, :, None] * sc["psi_r"] - xi[:, :, None] * sc["psi_i"]
    zi = xr[:, :, None] * sc["psi_i"] + xi[:, :, None] * sc["psi_r"]
    ur, ui = _cplx_dft2(sc["Gr"], sc["Gi"], zr, zi)                  # ifft2
    u1 = jnp.sqrt(ur * ur + ui * ui)                                 # modulus
    vr, vi = _cplx_dft2(sc["Fr"], sc["Fi"], u1, None)                # fft2
    s1, _ = _cplx_dft2(sc["Gr2"], sc["Gi2"], vr * phi, vi * phi)     # phi + ds
    return jnp.concatenate([s0[:, :, None], s1], axis=2)


# ---------------------------------------------------------------------------
# Parameters (deterministic PyTorch-style uniform init) + one-time layout prep
# ---------------------------------------------------------------------------

def _init_layer(key, w_shape, fan_in):
    kw, kb = jax.random.split(key)
    bound = 1.0 / np.sqrt(fan_in)
    w = jax.random.uniform(kw, w_shape, jnp.float32, -bound, bound)
    b = jax.random.uniform(kb, (w_shape[0],), jnp.float32, -bound, bound)
    return w, b


def init_params(key):
    ks = jax.random.split(key, 8)
    return {
        "w_conv1": _init_layer(ks[0], (6, 9, 3, 3), 9 * 3 * 3),
        "w_conv2": _init_layer(ks[1], (16, 6, 3, 3), 6 * 3 * 3),
        "w_fc1": _init_layer(ks[2], (120, 12 * 16), 12 * 16),
        "conv1": _init_layer(ks[3], (6, 3, 5, 5), 3 * 5 * 5),
        "conv2": _init_layer(ks[4], (16, 6, 5, 5), 6 * 5 * 5),
        "fc1": _init_layer(ks[5], (120, 16 * 5 * 5), 16 * 5 * 5),
        "fc2": _init_layer(ks[6], (84, 120), 120),
        "fc3": _init_layer(ks[7], (10, 84), 84),
    }


def prepare_kernel_params(p):
    """One-time layout prep: transpose, pad to lane-dense (K%128==0, N=128),
    cast MXU inputs to bf16 (biases stay f32), permute fc1 / w_fc1 rows to the
    NHWC flatten order, and pack them into one block-K first-layer weight."""
    kp = {}

    def conv_wb(name, w, b, kpad):
        K = int(np.prod(w.shape[1:]))
        wf = w.reshape(w.shape[0], -1).T                       # (K, Cout)
        kp[name + "_w"] = jnp.pad(
            wf, ((0, kpad - K), (0, 128 - w.shape[0]))).astype(jnp.bfloat16)
        kp[name + "_b"] = jnp.pad(
            b.reshape(1, -1), ((0, 0), (0, 128 - b.shape[0]))).astype(jnp.float32)

    conv_wb("c1y", *p["conv1"], 128)
    conv_wb("c1z", *p["w_conv1"], 128)
    conv_wb("c2y", *p["conv2"], 256)
    conv_wb("c2z", *p["w_conv2"], 128)

    # folded first FC layer: y rows use fc1, z rows use w_fc1 (block-K).
    fc1_w, fc1_b = p["fc1"]        # (120, 400), input index = c*25 + h*5 + w
    wfc1_w, wfc1_b = p["w_fc1"]    # (120, 192), input index = g*64 + c*4 + h*2 + w
    hh, ww, cc = np.meshgrid(np.arange(5), np.arange(5), np.arange(16),
                             indexing="ij")
    src_y = (cc * 25 + hh * 5 + ww).reshape(-1)               # -> (h, w, c) order
    gg, hh, ww, cc = np.meshgrid(np.arange(3), np.arange(2), np.arange(2),
                                 np.arange(16), indexing="ij")
    src_z = (gg * 64 + cc * 4 + hh * 2 + ww).reshape(-1)      # -> (g, h, w, c)

    w1 = jnp.zeros((K1YP + K1ZP, 128), jnp.float32)
    w1 = w1.at[:K1Y, :120].set(fc1_w.T[src_y, :])
    w1 = w1.at[K1YP:K1YP + K1Z, :120].set(wfc1_w.T[src_z, :])
    kp["w1"] = w1.astype(jnp.bfloat16)
    kp["b1y"] = jnp.pad(fc1_b.reshape(1, -1), ((0, 0), (0, 8))).astype(jnp.float32)
    kp["b1z"] = jnp.pad(wfc1_b.reshape(1, -1), ((0, 0), (0, 8))).astype(jnp.float32)

    fc2_w, fc2_b = p["fc2"]
    fc3_w, fc3_b = p["fc3"]
    kp["w2"] = jnp.pad(fc2_w.T, ((0, 8), (0, 44))).astype(jnp.bfloat16)
    kp["b2"] = jnp.pad(fc2_b.reshape(1, -1), ((0, 0), (0, 44))).astype(jnp.float32)
    kp["w3"] = jnp.pad(fc3_w.T, ((0, 44), (0, 118))).astype(jnp.bfloat16)
    kp["b3"] = jnp.pad(fc3_b.reshape(1, -1), ((0, 0), (0, 118))).astype(jnp.float32)
    return kp


# ---------------------------------------------------------------------------
# Full forward pass (mirrors Net.forward)
# ---------------------------------------------------------------------------

def net_forward(x, kp, sc):
    B = x.shape[0]

    # ---- scattering front end (DFT matmuls; modulus fuses in XLA) ----
    Sx = scattering2d_dft(x, sc)                              # (B, 3, 9, 16, 16)
    s_nhwc = Sx.reshape(B * 3, 9, 16, 16).transpose(0, 2, 3, 1)
    x_nhwc = x.transpose(0, 2, 3, 1)

    # ---- conv stage 1: conv1 (y) + w_conv1 (z) in ONE kernel ----
    ycols, My1, PHy1, PWy1 = _pool_patches(x_nhwc, 5, 5, 128)
    zcols, Mz1, PHz1, PWz1 = _pool_patches(s_nhwc, 3, 3, 128)
    y1, z1 = conv_stage(ycols, zcols, kp["c1y_w"], kp["c1y_b"],
                        kp["c1z_w"], kp["c1z_b"], 128, 128)
    y1 = y1[:My1, :6].reshape(B, PHy1, PWy1, 6)               # (B, 14, 14, 6)
    z1 = z1[:Mz1, :6].reshape(B * 3, PHz1, PWz1, 6)           # (B*3, 7, 7, 6)

    # ---- conv stage 2: conv2 (y) + w_conv2 (z) in ONE kernel ----
    ycols, My2, PHy2, PWy2 = _pool_patches(y1, 5, 5, 256)
    zcols, Mz2, PHz2, PWz2 = _pool_patches(z1, 3, 3, 128)
    y2, z2 = conv_stage(ycols, zcols, kp["c2y_w"], kp["c2y_b"],
                        kp["c2z_w"], kp["c2z_b"], 256, 128)

    # natural NHWC flattens (fc1 / w_fc1 rows were permuted at init to match;
    # no NHWC->NCHW transpose needed here).
    y_feat = y2[:My2, :16].reshape(B, PHy2 * PWy2 * 16)       # (B, 400)
    z_feat = z2[:Mz2, :16].reshape(B, 3 * PHz2 * PWz2 * 16)   # (B, 192)

    # ---- folded FC head of both branches + (y + z) / 2 ----
    return fc_stack(y_feat, z_feat, kp)


# ---------------------------------------------------------------------------

if __name__ == "__main__":
    key = jax.random.PRNGKey(0)
    k_x, k_p = jax.random.split(key)

    B = 2
    x = jax.random.normal(k_x, (B, 3, 32, 32), dtype=jnp.float32)

    params = init_params(k_p)
    kparams = prepare_kernel_params(params)
    sc_consts = build_scattering_constants(32, 32, J=1, L=8)

    fwd = jax.jit(net_forward)
    out = jax.block_until_ready(fwd(x, kparams, sc_consts))

    assert out.shape == (B, 10), out.shape
    assert bool(jnp.all(jnp.isfinite(out)))
    print("KERNEL_OK")
</pallas_src>

<mosaic_0001>
module attributes {stable_mosaic.version = 11 : i64} {
  func.func @_conv_stage_kernel(%arg0: i32, %arg1: memref<400x512xbf16, #tpu.memory_space<vmem>>, %arg2: memref<304x512xbf16, #tpu.memory_space<vmem>>, %arg3: memref<128x128xbf16, #tpu.memory_space<vmem>>, %arg4: memref<1x128xf32, #tpu.memory_space<vmem>>, %arg5: memref<128x128xbf16, #tpu.memory_space<vmem>>, %arg6: memref<1x128xf32, #tpu.memory_space<vmem>>, %arg7: memref<400x128xf32, #tpu.memory_space<vmem>>, %arg8: memref<304x128xf32, #tpu.memory_space<vmem>>) attributes {dimension_semantics = [#tpu.dimension_semantics<arbitrary>], iteration_bounds = array<i64: 1>, scalar_prefetch = 0 : i64, scratch_operands = 0 : i64, tpu.core_type = #tpu.core_type<tc>, window_params = [{pipeline_mode = #tpu.pipeline_mode<synchronous>, transform_indices = @transform_0, window_bounds = array<i64: 400, 512>}, {pipeline_mode = #tpu.pipeline_mode<synchronous>, transform_indices = @transform_1, window_bounds = array<i64: 304, 512>}, {pipeline_mode = #tpu.pipeline_mode<synchronous>, transform_indices = @transform_2, window_bounds = array<i64: 128, 128>}, {pipeline_mode = #tpu.pipeline_mode<synchronous>, transform_indices = @transform_3, window_bounds = array<i64: 1, 128>}, {pipeline_mode = #tpu.pipeline_mode<synchronous>, transform_indices = @transform_4, window_bounds = array<i64: 128, 128>}, {pipeline_mode = #tpu.pipeline_mode<synchronous>, transform_indices = @transform_5, window_bounds = array<i64: 1, 128>}, {pipeline_mode = #tpu.pipeline_mode<synchronous>, transform_indices = @transform_6, window_bounds = array<i64: 400, 128>}, {pipeline_mode = #tpu.pipeline_mode<synchronous>, transform_indices = @transform_7, window_bounds = array<i64: 304, 128>}]} {
    %c0 = arith.constant 0 : index
    %c0_0 = arith.constant 0 : index
    %0 = vector.load %arg3[%c0, %c0_0] : memref<128x128xbf16, #tpu.memory_space<vmem>>, vector<128x128xbf16>
    %c0_1 = arith.constant 0 : index
    %c0_2 = arith.constant 0 : index
    %1 = vector.load %arg1[%c0_1, %c0_2] : memref<400x512xbf16, #tpu.memory_space<vmem>>, vector<400x128xbf16>
    %cst = arith.constant dense<0.000000e+00> : vector<400x128xf32>
    %2 = tpu.matmul %1, %0, %cst {dimension_numbers = #tpu.dot_dimension_numbers<[1], [0], [0], [1], [0, 0, 1, 1], [], []>} : vector<400x128xbf16>, vector<128x128xbf16>, vector<400x128xf32> -> vector<400x128xf32>
    %c0_3 = arith.constant 0 : index
    %c128 = arith.constant 128 : index
    %3 = vector.load %arg1[%c0_3, %c128] : memref<400x512xbf16, #tpu.memory_space<vmem>>, vector<400x128xbf16>
    %cst_4 = arith.constant dense<0.000000e+00> : vector<400x128xf32>
    %4 = tpu.matmul %3, %0, %cst_4 {dimension_numbers = #tpu.dot_dimension_numbers<[1], [0], [0], [1], [0, 0, 1, 1], [], []>} : vector<400x128xbf16>, vector<128x128xbf16>, vector<400x128xf32> -> vector<400x128xf32>
    %5 = arith.maximumf %2, %4 : vector<400x128xf32>
    %c0_5 = arith.constant 0 : index
    %c256 = arith.constant 256 : index
    %6 = vector.load %arg1[%c0_5, %c256] : memref<400x512xbf16, #tpu.memory_space<vmem>>, vector<400x128xbf16>
    %cst_6 = arith.constant dense<0.000000e+00> : vector<400x128xf32>
    %7 = tpu.matmul %6, %0, %cst_6 {dimension_numbers = #tpu.dot_dimension_numbers<[1], [0], [0], [1], [0, 0, 1, 1], [], []>} : vector<400x128xbf16>, vector<128x128xbf16>, vector<400x128xf32> -> vector<400x128xf32>
    %8 = arith.maximumf %5, %7 : vector<400x128xf32>
    %c0_7 = arith.constant 0 : index
    %c384 = arith.constant 384 : index
    %9 = vector.load %arg1[%c0_7, %c384] : memref<400x512xbf16, #tpu.memory_space<vmem>>, vector<400x128xbf16>
    %cst_8 = arith.constant dense<0.000000e+00> : vector<400x128xf32>
    %10 = tpu.matmul %9, %0, %cst_8 {dimension_numbers = #tpu.dot_dimension_numbers<[1], [0], [0], [1], [0, 0, 1, 1], [], []>} : vector<400x128xbf16>, vector<128x128xbf16>, vector<400x128xf32> -> vector<400x128xf32>
    %11 = arith.maximumf %8, %10 : vector<400x128xf32>
    %c0_9 = arith.constant 0 : index
    %c0_10 = arith.constant 0 : index
    %12 = vector.load %arg4[%c0_9, %c0_10] : memref<1x128xf32, #tpu.memory_space<vmem>>, vector<1x128xf32>
    %13 = vector.broadcast %12 : vector<1x128xf32> to vector<400x128xf32>
    %14 = arith.addf %11, %13 : vector<400x128xf32>
    %cst_11 = arith.constant 0.000000e+00 : f32
    %15 = vector.broadcast %cst_11 : f32 to vector<400x128xf32>
    %16 = arith.maximumf %14, %15 : vector<400x128xf32>
    %c0_12 = arith.constant 0 : index
    %c0_13 = arith.constant 0 : index
    %17 = vector.load %arg7[%c0_12, %c0_13] : memref<400x128xf32, #tpu.memory_space<vmem>>, vector<400x128xf32>
    tpu.vector_store %arg7[%c0_12, %c0_13], %16 {strides = array<i32>} : memref<400x128xf32, #tpu.memory_space<vmem>>, vector<400x128xf32>,
    %c0_14 = arith.constant 0 : index
    %c0_15 = arith.constant 0 : index
    %18 = vector.load %arg5[%c0_14, %c0_15] : memref<128x128xbf16, #tpu.memory_space<vmem>>, vector<128x128xbf16>
    %c0_16 = arith.constant 0 : index
    %c0_17 = arith.constant 0 : index
    %19 = vector.load %arg2[%c0_16, %c0_17] : memref<304x512xbf16, #tpu.memory_space<vmem>>, vector<304x128xbf16>
    %cst_18 = arith.constant dense<0.000000e+00> : vector<304x128xf32>
    %20 = tpu.matmul %19, %18, %cst_18 {dimension_numbers = #tpu.dot_dimension_numbers<[1], [0], [0], [1], [0, 0, 1, 1], [], []>} : vector<304x128xbf16>, vector<128x128xbf16>, vector<304x128xf32> -> vector<304x128xf32>
    %c0_19 = arith.constant 0 : index
    %c128_20 = arith.constant 128 : index
    %21 = vector.load %arg2[%c0_19, %c128_20] : memref<304x512xbf16, #tpu.memory_space<vmem>>, vector<304x128xbf16>
    %cst_21 = arith.constant dense<0.000000e+00> : vector<304x128xf32>
    %22 = tpu.matmul %21, %18, %cst_21 {dimension_numbers = #tpu.dot_dimension_numbers<[1], [0], [0], [1], [0, 0, 1, 1], [], []>} : vector<304x128xbf16>, vector<128x128xbf16>, vector<304x128xf32> -> vector<304x128xf32>
    %23 = arith.maximumf %20, %22 : vector<304x128xf32>
    %c0_22 = arith.constant 0 : index
    %c256_23 = arith.constant 256 : index
    %24 = vector.load %arg2[%c0_22, %c256_23] : memref<304x512xbf16, #tpu.memory_space<vmem>>, vector<304x128xbf16>
    %cst_24 = arith.constant dense<0.000000e+00> : vector<304x128xf32>
    %25 = tpu.matmul %24, %18, %cst_24 {dimension_numbers = #tpu.dot_dimension_numbers<[1], [0], [0], [1], [0, 0, 1, 1], [], []>} : vector<304x128xbf16>, vector<128x128xbf16>, vector<304x128xf32> -> vector<304x128xf32>
    %26 = arith.maximumf %23, %25 : vector<304x128xf32>
    %c0_25 = arith.constant 0 : index
    %c384_26 = arith.constant 384 : index
    %27 = vector.load %arg2[%c0_25, %c384_26] : memref<304x512xbf16, #tpu.memory_space<vmem>>, vector<304x128xbf16>
    %cst_27 = arith.constant dense<0.000000e+00> : vector<304x128xf32>
    %28 = tpu.matmul %27, %18, %cst_27 {dimension_numbers = #tpu.dot_dimension_numbers<[1], [0], [0], [1], [0, 0, 1, 1], [], []>} : vector<304x128xbf16>, vector<128x128xbf16>, vector<304x128xf32> -> vector<304x128xf32>
    %29 = arith.maximumf %26, %28 : vector<304x128xf32>
    %c0_28 = arith.constant 0 : index
    %c0_29 = arith.constant 0 : index
    %30 = vector.load %arg6[%c0_28, %c0_29] : memref<1x128xf32, #tpu.memory_space<vmem>>, vector<1x128xf32>
    %31 = vector.broadcast %30 : vector<1x128xf32> to vector<304x128xf32>
    %32 = arith.addf %29, %31 : vector<304x128xf32>
    %cst_30 = arith.constant 0.000000e+00 : f32
    %33 = vector.broadcast %cst_30 : f32 to vector<304x128xf32>
    %34 = arith.maximumf %32, %33 : vector<304x128xf32>
    %c0_31 = arith.constant 0 : index
    %c0_32 = arith.constant 0 : index
    %35 = vector.load %arg8[%c0_31, %c0_32] : memref<304x128xf32, #tpu.memory_space<vmem>>, vector<304x128xf32>
    tpu.vector_store %arg8[%c0_31, %c0_32], %34 {strides = array<i32>} : memref<304x128xf32, #tpu.memory_space<vmem>>, vector<304x128xf32>,
    return
  }
  func.func @transform_0(%arg0: i32) -> (i32, i32) {
    %c0_i32 = arith.constant 0 : i32
    %c0_i32_0 = arith.constant 0 : i32
    %c0_i32_1 = arith.constant 0 : i32
    return %c0_i32, %c0_i32_0 : i32, i32
  }
  func.func @transform_1(%arg0: i32) -> (i32, i32) {
    %c0_i32 = arith.constant 0 : i32
    %c0_i32_0 = arith.constant 0 : i32
    %c0_i32_1 = arith.constant 0 : i32
    return %c0_i32, %c0_i32_0 : i32, i32
  }
  func.func @transform_2(%arg0: i32) -> (i32, i32) {
    %c0_i32 = arith.constant 0 : i32
    %c0_i32_0 = arith.constant 0 : i32
    %c0_i32_1 = arith.constant 0 : i32
    return %c0_i32, %c0_i32_0 : i32, i32
  }
  func.func @transform_3(%arg0: i32) -> (i32, i32) {
    %c0_i32 = arith.constant 0 : i32
    %c0_i32_0 = arith.constant 0 : i32
    %c0_i32_1 = arith.constant 0 : i32
    return %c0_i32, %c0_i32_0 : i32, i32
  }
  func.func @transform_4(%arg0: i32) -> (i32, i32) {
    %c0_i32 = arith.constant 0 : i32
    %c0_i32_0 = arith.constant 0 : i32
    %c0_i32_1 = arith.constant 0 : i32
    return %c0_i32, %c0_i32_0 : i32, i32
  }
  func.func @transform_5(%arg0: i32) -> (i32, i32) {
    %c0_i32 = arith.constant 0 : i32
    %c0_i32_0 = arith.constant 0 : i32
    %c0_i32_1 = arith.constant 0 : i32
    return %c0_i32, %c0_i32_0 : i32, i32
  }
  func.func @transform_6(%arg0: i32) -> (i32, i32) {
    %c0_i32 = arith.constant 0 : i32
    %c0_i32_0 = arith.constant 0 : i32
    %c0_i32_1 = arith.constant 0 : i32
    return %c0_i32, %c0_i32_0 : i32, i32
  }
  func.func @transform_7(%arg0: i32) -> (i32, i32) {
    %c0_i32 = arith.constant 0 : i32
    %c0_i32_0 = arith.constant 0 : i32
    %c0_i32_1 = arith.constant 0 : i32
    return %c0_i32, %c0_i32_0 : i32, i32
  }
}

module attributes {stable_mosaic.version = 11 : i64} {
  func.func @_conv_stage_kernel(%arg0: i32, %arg1: memref<64x1024xbf16, #tpu.memory_space<vmem>>, %arg2: memref<32x512xbf16, #tpu.memory_space<vmem>>, %arg3: memref<256x128xbf16, #tpu.memory_space<vmem>>, %arg4: memref<1x128xf32, #tpu.memory_space<vmem>>, %arg5: memref<128x128xbf16, #tpu.memory_space<vmem>>, %arg6: memref<1x128xf32, #tpu.memory_space<vmem>>, %arg7: memref<64x128xf32, #tpu.memory_space<vmem>>, %arg8: memref<32x128xf32, #tpu.memory_space<vmem>>) attributes {dimension_semantics = [#tpu.dimension_semantics<arbitrary>], iteration_bounds = array<i64: 1>, scalar_prefetch = 0 : i64, scratch_operands = 0 : i64, tpu.core_type = #tpu.core_type<tc>, window_params = [{pipeline_mode = #tpu.pipeline_mode<synchronous>, transform_indices = @transform_0, window_bounds = array<i64: 64, 1024>}, {pipeline_mode = #tpu.pipeline_mode<synchronous>, transform_indices = @transform_1, window_bounds = array<i64: 32, 512>}, {pipeline_mode = #tpu.pipeline_mode<synchronous>, transform_indices = @transform_2, window_bounds = array<i64: 256, 128>}, {pipeline_mode = #tpu.pipeline_mode<synchronous>, transform_indices = @transform_3, window_bounds = array<i64: 1, 128>}, {pipeline_mode = #tpu.pipeline_mode<synchronous>, transform_indices = @transform_4, window_bounds = array<i64: 128, 128>}, {pipeline_mode = #tpu.pipeline_mode<synchronous>, transform_indices = @transform_5, window_bounds = array<i64: 1, 128>}, {pipeline_mode = #tpu.pipeline_mode<synchronous>, transform_indices = @transform_6, window_bounds = array<i64: 64, 128>}, {pipeline_mode = #tpu.pipeline_mode<synchronous>, transform_indices = @transform_7, window_bounds = array<i64: 32, 128>}]} {
    %c0 = arith.constant 0 : index
    %c0_0 = arith.constant 0 : index
    %0 = vector.load %arg3[%c0, %c0_0] : memref<256x128xbf16, #tpu.memory_space<vmem>>, vector<256x128xbf16>
    %c0_1 = arith.constant 0 : index
    %c0_2 = arith.constant 0 : index
    %1 = vector.load %arg1[%c0_1, %c0_2] : memref<64x1024xbf16, #tpu.memory_space<vmem>>, vector<64x256xbf16>
    %cst = arith.constant dense<0.000000e+00> : vector<64x128xf32>
    %2 = tpu.matmul %1, %0, %cst {dimension_numbers = #tpu.dot_dimension_numbers<[1], [0], [0], [1], [0, 0, 1, 1], [], []>} : vector<64x256xbf16>, vector<256x128xbf16>, vector<64x128xf32> -> vector<64x128xf32>
    %c0_3 = arith.constant 0 : index
    %c256 = arith.constant 256 : index
    %3 = vector.load %arg1[%c0_3, %c256] : memref<64x1024xbf16, #tpu.memory_space<vmem>>, vector<64x256xbf16>
    %cst_4 = arith.constant dense<0.000000e+00> : vector<64x128xf32>
    %4 = tpu.matmul %3, %0, %cst_4 {dimension_numbers = #tpu.dot_dimension_numbers<[1], [0], [0], [1], [0, 0, 1, 1], [], []>} : vector<64x256xbf16>, vector<256x128xbf16>, vector<64x128xf32> -> vector<64x128xf32>
    %5 = arith.maximumf %2, %4 : vector<64x128xf32>
    %c0_5 = arith.constant 0 : index
    %c512 = arith.constant 512 : index
    %6 = vector.load %arg1[%c0_5, %c512] : memref<64x1024xbf16, #tpu.memory_space<vmem>>, vector<64x256xbf16>
    %cst_6 = arith.constant dense<0.000000e+00> : vector<64x128xf32>
    %7 = tpu.matmul %6, %0, %cst_6 {dimension_numbers = #tpu.dot_dimension_numbers<[1], [0], [0], [1], [0, 0, 1, 1], [], []>} : vector<64x256xbf16>, vector<256x128xbf16>, vector<64x128xf32> -> vector<64x128xf32>
    %8 = arith.maximumf %5, %7 : vector<64x128xf32>
    %c0_7 = arith.constant 0 : index
    %c768 = arith.constant 768 : index
    %9 = vector.load %arg1[%c0_7, %c768] : memref<64x1024xbf16, #tpu.memory_space<vmem>>, vector<64x256xbf16>
    %cst_8 = arith.constant dense<0.000000e+00> : vector<64x128xf32>
    %10 = tpu.matmul %9, %0, %cst_8 {dimension_numbers = #tpu.dot_dimension_numbers<[1], [0], [0], [1], [0, 0, 1, 1], [], []>} : vector<64x256xbf16>, vector<256x128xbf16>, vector<64x128xf32> -> vector<64x128xf32>
    %11 = arith.maximumf %8, %10 : vector<64x128xf32>
    %c0_9 = arith.constant 0 : index
    %c0_10 = arith.constant 0 : index
    %12 = vector.load %arg4[%c0_9, %c0_10] : memref<1x128xf32, #tpu.memory_space<vmem>>, vector<1x128xf32>
    %13 = vector.broadcast %12 : vector<1x128xf32> to vector<64x128xf32>
    %14 = arith.addf %11, %13 : vector<64x128xf32>
    %cst_11 = arith.constant 0.000000e+00 : f32
    %15 = vector.broadcast %cst_11 : f32 to vector<64x128xf32>
    %16 = arith.maximumf %14, %15 : vector<64x128xf32>
    %c0_12 = arith.constant 0 : index
    %c0_13 = arith.constant 0 : index
    %17 = vector.load %arg7[%c0_12, %c0_13] : memref<64x128xf32, #tpu.memory_space<vmem>>, vector<64x128xf32>
    tpu.vector_store %arg7[%c0_12, %c0_13], %16 {strides = array<i32>} : memref<64x128xf32, #tpu.memory_space<vmem>>, vector<64x128xf32>,
    %c0_14 = arith.constant 0 : index
    %c0_15 = arith.constant 0 : index
    %18 = vector.load %arg5[%c0_14, %c0_15] : memref<128x128xbf16, #tpu.memory_space<vmem>>, vector<128x128xbf16>
    %c0_16 = arith.constant 0 : index
    %c0_17 = arith.constant 0 : index
    %19 = vector.load %arg2[%c0_16, %c0_17] : memref<32x512xbf16, #tpu.memory_space<vmem>>, vector<32x128xbf16>
    %cst_18 = arith.constant dense<0.000000e+00> : vector<32x128xf32>
    %20 = tpu.matmul %19, %18, %cst_18 {dimension_numbers = #tpu.dot_dimension_numbers<[1], [0], [0], [1], [0, 0, 1, 1], [], []>} : vector<32x128xbf16>, vector<128x128xbf16>, vector<32x128xf32> -> vector<32x128xf32>
    %c0_19 = arith.constant 0 : index
    %c128 = arith.constant 128 : index
    %21 = vector.load %arg2[%c0_19, %c128] : memref<32x512xbf16, #tpu.memory_space<vmem>>, vector<32x128xbf16>
    %cst_20 = arith.constant dense<0.000000e+00> : vector<32x128xf32>
    %22 = tpu.matmul %21, %18, %cst_20 {dimension_numbers = #tpu.dot_dimension_numbers<[1], [0], [0], [1], [0, 0, 1, 1], [], []>} : vector<32x128xbf16>, vector<128x128xbf16>, vector<32x128xf32> -> vector<32x128xf32>
    %23 = arith.maximumf %20, %22 : vector<32x128xf32>
    %c0_21 = arith.constant 0 : index
    %c256_22 = arith.constant 256 : index
    %24 = vector.load %arg2[%c0_21, %c256_22] : memref<32x512xbf16, #tpu.memory_space<vmem>>, vector<32x128xbf16>
    %cst_23 = arith.constant dense<0.000000e+00> : vector<32x128xf32>
    %25 = tpu.matmul %24, %18, %cst_23 {dimension_numbers = #tpu.dot_dimension_numbers<[1], [0], [0], [1], [0, 0, 1, 1], [], []>} : vector<32x128xbf16>, vector<128x128xbf16>, vector<32x128xf32> -> vector<32x128xf32>
    %26 = arith.maximumf %23, %25 : vector<32x128xf32>
    %c0_24 = arith.constant 0 : index
    %c384 = arith.constant 384 : index
    %27 = vector.load %arg2[%c0_24, %c384] : memref<32x512xbf16, #tpu.memory_space<vmem>>, vector<32x128xbf16>
    %cst_25 = arith.constant dense<0.000000e+00> : vector<32x128xf32>
    %28 = tpu.matmul %27, %18, %cst_25 {dimension_numbers = #tpu.dot_dimension_numbers<[1], [0], [0], [1], [0, 0, 1, 1], [], []>} : vector<32x128xbf16>, vector<128x128xbf16>, vector<32x128xf32> -> vector<32x128xf32>
    %29 = arith.maximumf %26, %28 : vector<32x128xf32>
    %c0_26 = arith.constant 0 : index
    %c0_27 = arith.constant 0 : index
    %30 = vector.load %arg6[%c0_26, %c0_27] : memref<1x128xf32, #tpu.memory_space<vmem>>, vector<1x128xf32>
    %31 = vector.broadcast %30 : vector<1x128xf32> to vector<32x128xf32>
    %32 = arith.addf %29, %31 : vector<32x128xf32>
    %cst_28 = arith.constant 0.000000e+00 : f32
    %33 = vector.broadcast %cst_28 : f32 to vector<32x128xf32>
    %34 = arith.maximumf %32, %33 : vector<32x128xf32>
    %c0_29 = arith.constant 0 : index
    %c0_30 = arith.constant 0 : index
    %35 = vector.load %arg8[%c0_29, %c0_30] : memref<32x128xf32, #tpu.memory_space<vmem>>, vector<32x128xf32>
    tpu.vector_store %arg8[%c0_29, %c0_30], %34 {strides = array<i32>} : memref<32x128xf32, #tpu.memory_space<vmem>>, vector<32x128xf32>,
    return
  }
  func.func @transform_0(%arg0: i32) -> (i32, i32) {
    %c0_i32 = arith.constant 0 : i32
    %c0_i32_0 = arith.constant 0 : i32
    %c0_i32_1 = arith.constant 0 : i32
    return %c0_i32, %c0_i32_0 : i32, i32
  }
  func.func @transform_1(%arg0: i32) -> (i32, i32) {
    %c0_i32 = arith.constant 0 : i32
    %c0_i32_0 = arith.constant 0 : i32
    %c0_i32_1 = arith.constant 0 : i32
    return %c0_i32, %c0_i32_0 : i32, i32
  }
  func.func @transform_2(%arg0: i32) -> (i32, i32) {
    %c0_i32 = arith.constant 0 : i32
    %c0_i32_0 = arith.constant 0 : i32
    %c0_i32_1 = arith.constant 0 : i32
    return %c0_i32, %c0_i32_0 : i32, i32
  }
  func.func @transform_3(%arg0: i32) -> (i32, i32) {
    %c0_i32 = arith.constant 0 : i32
    %c0_i32_0 = arith.constant 0 : i32
    %c0_i32_1 = arith.constant 0 : i32
    return %c0_i32, %c0_i32_0 : i32, i32
  }
  func.func @transform_4(%arg0: i32) -> (i32, i32) {
    %c0_i32 = arith.constant 0 : i32
    %c0_i32_0 = arith.constant 0 : i32
    %c0_i32_1 = arith.constant 0 : i32
    return %c0_i32, %c0_i32_0 : i32, i32
  }
  func.func @transform_5(%arg0: i32) -> (i32, i32) {
    %c0_i32 = arith.constant 0 : i32
    %c0_i32_0 = arith.constant 0 : i32
    %c0_i32_1 = arith.constant 0 : i32
    return %c0_i32, %c0_i32_0 : i32, i32
  }
  func.func @transform_6(%arg0: i32) -> (i32, i32) {
    %c0_i32 = arith.constant 0 : i32
    %c0_i32_0 = arith.constant 0 : i32
    %c0_i32_1 = arith.constant 0 : i32
    return %c0_i32, %c0_i32_0 : i32, i32
  }
  func.func @transform_7(%arg0: i32) -> (i32, i32) {
    %c0_i32 = arith.constant 0 : i32
    %c0_i32_0 = arith.constant 0 : i32
    %c0_i32_1 = arith.constant 0 : i32
    return %c0_i32, %c0_i32_0 : i32, i32
  }
}

module attributes {stable_mosaic.version = 11 : i64} {
  func.func @_fc_kernel(%arg0: i32, %arg1: memref<16x768xbf16, #tpu.memory_space<vmem>>, %arg2: memref<768x128xbf16, #tpu.memory_space<vmem>>, %arg3: memref<1x128xf32, #tpu.memory_space<vmem>>, %arg4: memref<1x128xf32, #tpu.memory_space<vmem>>, %arg5: memref<128x128xbf16, #tpu.memory_space<vmem>>, %arg6: memref<1x128xf32, #tpu.memory_space<vmem>>, %arg7: memref<128x128xbf16, #tpu.memory_space<vmem>>, %arg8: memref<1x128xf32, #tpu.memory_space<vmem>>, %arg9: memref<8x128xf32, #tpu.memory_space<vmem>>) attributes {dimension_semantics = [#tpu.dimension_semantics<arbitrary>], iteration_bounds = array<i64: 1>, scalar_prefetch = 0 : i64, scratch_operands = 0 : i64, tpu.core_type = #tpu.core_type<tc>, window_params = [{pipeline_mode = #tpu.pipeline_mode<synchronous>, transform_indices = @transform_0, window_bounds = array<i64: 16, 768>}, {pipeline_mode = #tpu.pipeline_mode<synchronous>, transform_indices = @transform_1, window_bounds = array<i64: 768, 128>}, {pipeline_mode = #tpu.pipeline_mode<synchronous>, transform_indices = @transform_2, window_bounds = array<i64: 1, 128>}, {pipeline_mode = #tpu.pipeline_mode<synchronous>, transform_indices = @transform_3, window_bounds = array<i64: 1, 128>}, {pipeline_mode = #tpu.pipeline_mode<synchronous>, transform_indices = @transform_4, window_bounds = array<i64: 128, 128>}, {pipeline_mode = #tpu.pipeline_mode<synchronous>, transform_indices = @transform_5, window_bounds = array<i64: 1, 128>}, {pipeline_mode = #tpu.pipeline_mode<synchronous>, transform_indices = @transform_6, window_bounds = array<i64: 128, 128>}, {pipeline_mode = #tpu.pipeline_mode<synchronous>, transform_indices = @transform_7, window_bounds = array<i64: 1, 128>}, {pipeline_mode = #tpu.pipeline_mode<synchronous>, transform_indices = @transform_8, window_bounds = array<i64: 8, 128>}]} {
    %c0 = arith.constant 0 : index
    %c0_0 = arith.constant 0 : index
    %0 = vector.load %arg1[%c0, %c0_0] : memref<16x768xbf16, #tpu.memory_space<vmem>>, vector<16x768xbf16>
    %c0_1 = arith.constant 0 : index
    %c0_2 = arith.constant 0 : index
    %1 = vector.load %arg2[%c0_1, %c0_2] : memref<768x128xbf16, #tpu.memory_space<vmem>>, vector<768x128xbf16>
    %cst = arith.constant dense<0.000000e+00> : vector<16x128xf32>
    %2 = tpu.matmul %0, %1, %cst {dimension_numbers = #tpu.dot_dimension_numbers<[1], [0], [0], [1], [0, 0, 1, 1], [], []>} : vector<16x768xbf16>, vector<768x128xbf16>, vector<16x128xf32> -> vector<16x128xf32>
    %3 = tpu.iota {dimensions = array<i32: 0>} : vector<16x128xi32>
    %c8_i32 = arith.constant 8 : i32
    %4 = vector.broadcast %c8_i32 : i32 to vector<16x128xi32>
    %5 = arith.cmpi slt, %3, %4 : vector<16x128xi32>
    %c0_3 = arith.constant 0 : index
    %c0_4 = arith.constant 0 : index
    %6 = vector.load %arg3[%c0_3, %c0_4] : memref<1x128xf32, #tpu.memory_space<vmem>>, vector<1x128xf32>
    %7 = vector.shape_cast %6 : vector<1x128xf32> to vector<1x128xf32>
    %8 = vector.broadcast %7 : vector<1x128xf32> to vector<16x128xf32>
    %c0_5 = arith.constant 0 : index
    %c0_6 = arith.constant 0 : index
    %9 = vector.load %arg4[%c0_5, %c0_6] : memref<1x128xf32, #tpu.memory_space<vmem>>, vector<1x128xf32>
    %10 = vector.shape_cast %9 : vector<1x128xf32> to vector<1x128xf32>
    %11 = vector.broadcast %10 : vector<1x128xf32> to vector<16x128xf32>
    %12 = arith.select %5, %8, %11 : vector<16x128xi1>, vector<16x128xf32>
    %13 = arith.addf %2, %12 : vector<16x128xf32>
    %cst_7 = arith.constant 0.000000e+00 : f32
    %14 = vector.broadcast %cst_7 : f32 to vector<16x128xf32>
    %15 = arith.maximumf %13, %14 : vector<16x128xf32>
    %16 = arith.truncf %15 : vector<16x128xf32> to vector<16x128xbf16>
    %c0_8 = arith.constant 0 : index
    %c0_9 = arith.constant 0 : index
    %17 = vector.load %arg5[%c0_8, %c0_9] : memref<128x128xbf16, #tpu.memory_space<vmem>>, vector<128x128xbf16>
    %cst_10 = arith.constant dense<0.000000e+00> : vector<16x128xf32>
    %18 = tpu.matmul %16, %17, %cst_10 {dimension_numbers = #tpu.dot_dimension_numbers<[1], [0], [0], [1], [0, 0, 1, 1], [], []>} : vector<16x128xbf16>, vector<128x128xbf16>, vector<16x128xf32> -> vector<16x128xf32>
    %c0_11 = arith.constant 0 : index
    %c0_12 = arith.constant 0 : index
    %19 = vector.load %arg6[%c0_11, %c0_12] : memref<1x128xf32, #tpu.memory_space<vmem>>, vector<1x128xf32>
    %20 = vector.broadcast %19 : vector<1x128xf32> to vector<16x128xf32>
    %21 = arith.addf %18, %20 : vector<16x128xf32>
    %cst_13 = arith.constant 0.000000e+00 : f32
    %22 = vector.broadcast %cst_13 : f32 to vector<16x128xf32>
    %23 = arith.maximumf %21, %22 : vector<16x128xf32>
    %24 = arith.truncf %23 : vector<16x128xf32> to vector<16x128xbf16>
    %c0_14 = arith.constant 0 : index
    %c0_15 = arith.constant 0 : index
    %25 = vector.load %arg7[%c0_14, %c0_15] : memref<128x128xbf16, #tpu.memory_space<vmem>>, vector<128x128xbf16>
    %cst_16 = arith.constant dense<0.000000e+00> : vector<16x128xf32>
    %26 = tpu.matmul %24, %25, %cst_16 {dimension_numbers = #tpu.dot_dimension_numbers<[1], [0], [0], [1], [0, 0, 1, 1], [], []>} : vector<16x128xbf16>, vector<128x128xbf16>, vector<16x128xf32> -> vector<16x128xf32>
    %c0_17 = arith.constant 0 : index
    %c0_18 = arith.constant 0 : index
    %27 = vector.load %arg8[%c0_17, %c0_18] : memref<1x128xf32, #tpu.memory_space<vmem>>, vector<1x128xf32>
    %28 = vector.broadcast %27 : vector<1x128xf32> to vector<16x128xf32>
    %29 = arith.addf %26, %28 : vector<16x128xf32>
    %30 = vector.extract_strided_slice %29 {offsets = [0, 0], sizes = [8, 128], strides = [1, 1]} : vector<16x128xf32> to vector<8x128xf32>
    %31 = vector.extract_strided_slice %29 {offsets = [8, 0], sizes = [8, 128], strides = [1, 1]} : vector<16x128xf32> to vector<8x128xf32>
    %32 = arith.addf %30, %31 : vector<8x128xf32>
    %cst_19 = arith.constant 5.000000e-01 : f32
    %33 = vector.broadcast %cst_19 : f32 to vector<8x128xf32>
    %34 = arith.mulf %32, %33 : vector<8x128xf32>
    %c0_20 = arith.constant 0 : index
    %c0_21 = arith.constant 0 : index
    %35 = vector.load %arg9[%c0_20, %c0_21] : memref<8x128xf32, #tpu.memory_space<vmem>>, vector<8x128xf32>
    tpu.vector_store %arg9[%c0_20, %c0_21], %34 {strides = array<i32>} : memref<8x128xf32, #tpu.memory_space<vmem>>, vector<8x128xf32>,
    return
  }
  func.func @transform_0(%arg0: i32) -> (i32, i32) {
    %c0_i32 = arith.constant 0 : i32
    %c0_i32_0 = arith.constant 0 : i32
    %c0_i32_1 = arith.constant 0 : i32
    return %c0_i32, %c0_i32_0 : i32, i32
  }
  func.func @transform_1(%arg0: i32) -> (i32, i32) {
    %c0_i32 = arith.constant 0 : i32
    %c0_i32_0 = arith.constant 0 : i32
    %c0_i32_1 = arith.constant 0 : i32
    return %c0_i32, %c0_i32_0 : i32, i32
  }
  func.func @transform_2(%arg0: i32) -> (i32, i32) {
    %c0_i32 = arith.constant 0 : i32
    %c0_i32_0 = arith.constant 0 : i32
    %c0_i32_1 = arith.constant 0 : i32
    return %c0_i32, %c0_i32_0 : i32, i32
  }
  func.func @transform_3(%arg0: i32) -> (i32, i32) {
    %c0_i32 = arith.constant 0 : i32
    %c0_i32_0 = arith.constant 0 : i32
    %c0_i32_1 = arith.constant 0 : i32
    return %c0_i32, %c0_i32_0 : i32, i32
  }
  func.func @transform_4(%arg0: i32) -> (i32, i32) {
    %c0_i32 = arith.constant 0 : i32
    %c0_i32_0 = arith.constant 0 : i32
    %c0_i32_1 = arith.constant 0 : i32
    return %c0_i32, %c0_i32_0 : i32, i32
  }
  func.func @transform_5(%arg0: i32) -> (i32, i32) {
    %c0_i32 = arith.constant 0 : i32
    %c0_i32_0 = arith.constant 0 : i32
    %c0_i32_1 = arith.constant 0 : i32
    return %c0_i32, %c0_i32_0 : i32, i32
  }
  func.func @transform_6(%arg0: i32) -> (i32, i32) {
    %c0_i32 = arith.constant 0 : i32
    %c0_i32_0 = arith.constant 0 : i32
    %c0_i32_1 = arith.constant 0 : i32
    return %c0_i32, %c0_i32_0 : i32, i32
  }
  func.func @transform_7(%arg0: i32) -> (i32, i32) {
    %c0_i32 = arith.constant 0 : i32
    %c0_i32_0 = arith.constant 0 : i32
    %c0_i32_1 = arith.constant 0 : i32
    return %c0_i32, %c0_i32_0 : i32, i32
  }
  func.func @transform_8(%arg0: i32) -> (i32, i32) {
    %c0_i32 = arith.constant 0 : i32
    %c0_i32_0 = arith.constant 0 : i32
    %c0_i32_1 = arith.constant 0 : i32
    return %c0_i32, %c0_i32_0 : i32, i32
  }
}

</mosaic_0001>

<llo_original>
// kernel: net_forward.3
$region0: #{net_forward.3}
  #allocation0 [shape = 'u32[]', space=smem, size = 0x4, offset = 0x4, fixed_abs, tag = 'smem constant byte address 0x4 - core index']
  #allocation1 [shape = 'u32[144,128]{1,0:T(1,128)}', space=vmem, size = 0x12000, scoped, tag = 'internal scratch']
  %s0 = inlined_call_operand.vmem [shape: bf16[400,512], index: 0, kind: input, shape index: {}]
  %s1 = inlined_call_operand.vmem [shape: bf16[304,512], index: 1, kind: input, shape index: {}]
  %s2 = inlined_call_operand.vmem [shape: bf16[128,128], index: 2, kind: input, shape index: {}]
  %s3 = inlined_call_operand.vmem [shape: f32[1,128], index: 3, kind: input, shape index: {}]
  %s4 = inlined_call_operand.vmem [shape: bf16[128,128], index: 4, kind: input, shape index: {}]
  %s5 = inlined_call_operand.vmem [shape: f32[1,128], index: 5, kind: input, shape index: {}]
  %s6 = inlined_call_operand.vmem [shape: f32[400,128], index: 6, kind: output, shape index: {0}]
  %s7 = inlined_call_operand.vmem [shape: f32[304,128], index: 7, kind: output, shape index: {1}]
  %8 = xla_tuple %s6, %s7
  %s9 = sld [smem:[#allocation0]]
  $region42: #{net_forward.3} parent=0
    _
  %s11 = ssub.s32 1, %s9
  %s12 = scalar_select 0, %s11, %s9
  // Predicated region
  $region2: #{net_forward.3} parent=0 // pred_check
    _
  $region3: #{net_forward.3} parent=0 // pred_check_branch
    %14 = sbr.rel (0) target = $region5
  $region4: #{net_forward.3} parent=0 // pred_region
    _
  $region5: #{net_forward.3} parent=0 // pred_fallthru
    _
  // Predicated region
  $region6: #{net_forward.3} parent=0 // pred_check
    _
  $region7: #{net_forward.3} parent=0 // pred_check_branch
    %16 = sbr.rel (0) target = $region9
  $region8: #{net_forward.3} parent=0 // pred_region
    _
  $region9: #{net_forward.3} parent=0 // pred_fallthru
    _
  // Predicated region
  $region10: #{net_forward.3} parent=0 // pred_check
    _
  $region11: #{net_forward.3} parent=0 // pred_check_branch
    %18 = sbr.rel (0) target = $region13
  $region12: #{net_forward.3} parent=0 // pred_region
    _
  $region13: #{net_forward.3} parent=0 // pred_fallthru
    _
  // Predicated region
  $region14: #{net_forward.3} parent=0 // pred_check
    _
  $region15: #{net_forward.3} parent=0 // pred_check_branch
    %20 = sbr.rel (0) target = $region17
  $region16: #{net_forward.3} parent=0 // pred_region
    _
  $region17: #{net_forward.3} parent=0 // pred_fallthru
    _
  // Predicated region
  $region18: #{net_forward.3} parent=0 // pred_check
    _
  $region19: #{net_forward.3} parent=0 // pred_check_branch
    %22 = sbr.rel (0) target = $region21
  $region20: #{net_forward.3} parent=0 // pred_region
    _
  $region21: #{net_forward.3} parent=0 // pred_fallthru
    _
  // Predicated region
  $region22: #{net_forward.3} parent=0 // pred_check
    _
  $region23: #{net_forward.3} parent=0 // pred_check_branch
    %24 = sbr.rel (0) target = $region25
  $region24: #{net_forward.3} parent=0 // pred_region
    _
  $region25: #{net_forward.3} parent=0 // pred_fallthru
    _
  %v26 = vld [vmem:[%s2] sm:$0xf]
  %v27 = vld [vmem:[%s2 + $0x4] sm:$0xf]
  %v28 = vld [vmem:[%s2 + $0x8] sm:$0xf]
  %v29 = vld [vmem:[%s2 + $0xc] sm:$0xf]
  %v30 = vld [vmem:[%s2 + $0x10] sm:$0xf]
  %v31 = vld [vmem:[%s2 + $0x14] sm:$0xf]
  %v32 = vld [vmem:[%s2 + $0x18] sm:$0xf]
  %v33 = vld [vmem:[%s2 + $0x1c] sm:$0xf]
  %v34 = vld [vmem:[%s2 + $0x20] sm:$0xf]
  %v35 = vld [vmem:[%s2 + $0x24] sm:$0xf]
  %v36 = vld [vmem:[%s2 + $0x28] sm:$0xf]
  %v37 = vld [vmem:[%s2 + $0x2c] sm:$0xf]
  %v38 = vld [vmem:[%s2 + $0x30] sm:$0xf]
  %v39 = vld [vmem:[%s2 + $0x34] sm:$0xf]
  %v40 = vld [vmem:[%s2 + $0x38] sm:$0xf]
  %v41 = vld [vmem:[%s2 + $0x3c] sm:$0xf]
  %v42 = vld [vmem:[%s0] sm:$0xf]
  %v43 = vld [vmem:[%s0 + $0x10] sm:$0xf]
  %v44 = vld [vmem:[%s0 + $0x20] sm:$0xf]
  %v45 = vld [vmem:[%s0 + $0x30] sm:$0xf]
  %v46 = vld [vmem:[%s0 + $0x40] sm:$0xf]
  %v47 = vld [vmem:[%s0 + $0x50] sm:$0xf]
  %v48 = vld [vmem:[%s0 + $0x60] sm:$0xf]
  %v49 = vld [vmem:[%s0 + $0x70] sm:$0xf]
  %v50 = vld [vmem:[%s0 + $0x80] sm:$0xf]
  %v51 = vld [vmem:[%s0 + $0x90] sm:$0xf]
  %v52 = vld [vmem:[%s0 + $0xa0] sm:$0xf]
  %v53 = vld [vmem:[%s0 + $0xb0] sm:$0xf]
  %v54 = vld [vmem:[%s0 + $0xc0] sm:$0xf]
  %v55 = vld [vmem:[%s0 + $0xd0] sm:$0xf]
  %v56 = vld [vmem:[%s0 + $0xe0] sm:$0xf]
  %v57 = vld [vmem:[%s0 + $0xf0] sm:$0xf]
  %v58 = vld [vmem:[%s0 + $0x100] sm:$0xf]
  %v59 = vld [vmem:[%s0 + $0x110] sm:$0xf]
  %v60 = vld [vmem:[%s0 + $0x120] sm:$0xf]
  %v61 = vld [vmem:[%s0 + $0x130] sm:$0xf]
  %v62 = vld [vmem:[%s0 + $0x140] sm:$0xf]
  %v63 = vld [vmem:[%s0 + $0x150] sm:$0xf]
  %v64 = vld [vmem:[%s0 + $0x160] sm:$0xf]
  %v65 = vld [vmem:[%s0 + $0x170] sm:$0xf]
  %v66 = vld [vmem:[%s0 + $0x180] sm:$0xf]
  %v67 = vld [vmem:[%s0 + $0x190] sm:$0xf]
  %v68 = vld [vmem:[%s0 + $0x1a0] sm:$0xf]
  %v69 = vld [vmem:[%s0 + $0x1b0] sm:$0xf]
  %v70 = vld [vmem:[%s0 + $0x1c0] sm:$0xf]
  %v71 = vld [vmem:[%s0 + $0x1d0] sm:$0xf]
  %v72 = vld [vmem:[%s0 + $0x1e0] sm:$0xf]
  %v73 = vld [vmem:[%s0 + $0x1f0] sm:$0xf]
  %v74 = vld [vmem:[%s0 + $0x200] sm:$0xf]
  %v75 = vld [vmem:[%s0 + $0x210] sm:$0xf]
  %v76 = vld [vmem:[%s0 + $0x220] sm:$0xf]
  %v77 = vld [vmem:[%s0 + $0x230] sm:$0xf]
  %v78 = vld [vmem:[%s0 + $0x240] sm:$0xf]
  %v79 = vld [vmem:[%s0 + $0x250] sm:$0xf]
  %v80 = vld [vmem:[%s0 + $0x260] sm:$0xf]
  %v81 = vld [vmem:[%s0 + $0x270] sm:$0xf]
  %v82 = vld [vmem:[%s0 + $0x280] sm:$0xf]
  %v83 = vld [vmem:[%s0 + $0x290] sm:$0xf]
  %v84 = vld [vmem:[%s0 + $0x2a0] sm:$0xf]
  %v85 = vld [vmem:[%s0 + $0x2b0] sm:$0xf]
  %v86 = vld [vmem:[%s0 + $0x2c0] sm:$0xf]
  %v87 = vld [vmem:[%s0 + $0x2d0] sm:$0xf]
  %v88 = vld [vmem:[%s0 + $0x2e0] sm:$0xf]
  %v89 = vld [vmem:[%s0 + $0x2f0] sm:$0xf]
  %v90 = vld [vmem:[%s0 + $0x300] sm:$0xf]
  %v91 = vld [vmem:[%s0 + $0x310] sm:$0xf]
  %v142 = vunpack.c.l.b16 %v42
  %v143 = vunpack.c.l.b16 %v43
  %v144 = vunpack.c.l.b16 %v44
  %v145 = vunpack.c.l.b16 %v45
  %v146 = vunpack.c.l.b16 %v46
  %v147 = vunpack.c.l.b16 %v47
  %v148 = vunpack.c.l.b16 %v48
  %v149 = vunpack.c.l.b16 %v49
  %v150 = vunpack.c.l.b16 %v50
  %v151 = vunpack.c.l.b16 %v51
  %v152 = vunpack.c.l.b16 %v52
  %v153 = vunpack.c.l.b16 %v53
  %v154 = vunpack.c.l.b16 %v54
  %v155 = vunpack.c.l.b16 %v55
  %v156 = vunpack.c.l.b16 %v56
  %v157 = vunpack.c.l.b16 %v57
  %v158 = vunpack.c.l.b16 %v58
  %v159 = vunpack.c.l.b16 %v59
  %v160 = vunpack.c.l.b16 %v60
  %v161 = vunpack.c.l.b16 %v61
  %v162 = vunpack.c.l.b16 %v62
  %v163 = vunpack.c.l.b16 %v63
  %v164 = vunpack.c.l.b16 %v64
  %v165 = vunpack.c.l.b16 %v65
  %v166 = vunpack.c.l.b16 %v66
  %v167 = vunpack.c.l.b16 %v67
  %v168 = vunpack.c.l.b16 %v68
  %v169 = vunpack.c.l.b16 %v69
  %v170 = vunpack.c.l.b16 %v70
  %v171 = vunpack.c.l.b16 %v71
  %v172 = vunpack.c.l.b16 %v72
  %v173 = vunpack.c.l.b16 %v73
  %v174 = vunpack.c.l.b16 %v74
  %v175 = vunpack.c.l.b16 %v75
  %v176 = vunpack.c.l.b16 %v76
  %v177 = vunpack.c.l.b16 %v77
  %v178 = vunpack.c.l.b16 %v78
  %v179 = vunpack.c.l.b16 %v79
  %v180 = vunpack.c.l.b16 %v80
  %v181 = vunpack.c.l.b16 %v81
  %v182 = vunpack.c.l.b16 %v82
  %v183 = vunpack.c.l.b16 %v83
  %v184 = vunpack.c.l.b16 %v84
  %v185 = vunpack.c.l.b16 %v85
  %v186 = vunpack.c.l.b16 %v86
  %v187 = vunpack.c.l.b16 %v87
  %v188 = vunpack.c.l.b16 %v88
  %v189 = vunpack.c.l.b16 %v89
  %v190 = vunpack.c.l.b16 %v90
  %v191 = vunpack.c.l.b16 %v91
  %v192 = vpack.c.b16 %v143, %v142
  %v193 = vpack.c.b16 %v145, %v144
  %v194 = vpack.c.b16 %v147, %v146
  %v195 = vpack.c.b16 %v149, %v148
  %v196 = vpack.c.b16 %v151, %v150
  %v197 = vpack.c.b16 %v153, %v152
  %v198 = vpack.c.b16 %v155, %v154
  %v199 = vpack.c.b16 %v157, %v156
  %v200 = vpack.c.b16 %v159, %v158
  %v201 = vpack.c.b16 %v161, %v160
  %v202 = vpack.c.b16 %v163, %v162
  %v203 = vpack.c.b16 %v165, %v164
  %v204 = vpack.c.b16 %v167, %v166
  %v205 = vpack.c.b16 %v169, %v168
  %v206 = vpack.c.b16 %v171, %v170
  %v207 = vpack.c.b16 %v173, %v172
  %v208 = vpack.c.b16 %v175, %v174
  %v209 = vpack.c.b16 %v177, %v176
  %v210 = vpack.c.b16 %v179, %v178
  %v211 = vpack.c.b16 %v181, %v180
  %v212 = vpack.c.b16 %v183, %v182
  %v213 = vpack.c.b16 %v185, %v184
  %v214 = vpack.c.b16 %v187, %v186
  %v215 = vpack.c.b16 %v189, %v188
  %v216 = vpack.c.b16 %v191, %v190
  %v258 = vunpack.c.l.b16 %v26
  %v259 = vunpack.c.l.b16 %v27
  %v260 = vunpack.c.l.b16 %v28
  %v261 = vunpack.c.l.b16 %v29
  %v262 = vunpack.c.l.b16 %v30
  %v263 = vunpack.c.l.b16 %v31
  %v264 = vunpack.c.l.b16 %v32
  %v265 = vunpack.c.l.b16 %v33
  %v266 = vunpack.c.l.b16 %v34
  %v267 = vunpack.c.l.b16 %v35
  %v268 = vunpack.c.l.b16 %v36
  %v269 = vunpack.c.l.b16 %v37
  %v270 = vunpack.c.l.b16 %v38
  %v271 = vunpack.c.l.b16 %v39
  %v272 = vunpack.c.l.b16 %v40
  %v273 = vunpack.c.l.b16 %v41
  %v274 = vpack.c.b16 %v259, %v258
  %v275 = vpack.c.b16 %v261, %v260
  %v276 = vpack.c.b16 %v263, %v262
  %v277 = vpack.c.b16 %v265, %v264
  %v278 = vpack.c.b16 %v267, %v266
  %v279 = vpack.c.b16 %v269, %v268
  %v280 = vpack.c.b16 %v271, %v270
  %v281 = vpack.c.b16 %v273, %v272
  %290 = vmatprep.subr.bf16.mxu0 0
  %291 = vmatpush1.bf16.msra.mxu0 %v274
  %292 = vmatprep.subr.bf16.mxu0 0
  %293 = vmatpush1.bf16.msra.mxu0 %v275
  %294 = vmatprep.subr.bf16.mxu0 0
  %295 = vmatpush1.bf16.msra.mxu0 %v276
  %296 = vmatprep.subr.bf16.mxu0 0
  %297 = vmatpush1.bf16.msra.mxu0 %v277
  %298 = vmatprep.subr.bf16.mxu0 0
  %299 = vmatpush1.bf16.msra.mxu0 %v278
  %300 = vmatprep.subr.bf16.mxu0 0
  %301 = vmatpush1.bf16.msra.mxu0 %v279
  %302 = vmatprep.subr.bf16.mxu0 0
  %303 = vmatpush1.bf16.msra.mxu0 %v280
  %304 = vmatprep.subr.bf16.mxu0 0
  %305 = vmatpush1.bf16.msra.mxu0 %v281
  %306 = vmatprep.subr.bf16.mxu0 0
  %307 = vmatpush1.bf16.msra.mxu0 0
  %308 = vmatprep.subr.bf16.mxu0 0
  %309 = vmatpush1.bf16.msra.mxu0 0
  %310 = vmatprep.subr.bf16.mxu0 0
  %311 = vmatpush1.bf16.msra.mxu0 0
  %312 = vmatprep.subr.bf16.mxu0 0
  %313 = vmatpush1.bf16.msra.mxu0 0
  %314 = vmatprep.subr.bf16.mxu0 0
  %315 = vmatpush1.bf16.msra.mxu0 0
  %316 = vmatprep.subr.bf16.mxu0 0
  %317 = vmatpush1.bf16.msra.mxu0 0
  %318 = vmatprep.subr.bf16.mxu0 0
  %319 = vmatpush1.bf16.msra.mxu0 0
  %320 = vmatprep.subr.bf16.mxu0 0
  %321 = vmatpush1.bf16.msra.mxu0 0
  %322 = vmatprep.mubr.bf16.mxu0 0
  %323 = vmatmul.mubr.bf16.gmra.mrb[0].mxu0 %v192
  %v324 = vpop.f32.mrb[0].mxu0
  %v325 = vadd.f32 0.0, %v324
  %v326 = vpop.f32.mrb[0].mxu0
  %v327 = vpop.f32.mrb[0].mxu0
  %v328 = vadd.f32 0.0, %v327
  %v329 = vpop.f32.mrb[0].mxu0
  %330 = vmatprep.mubr.bf16.mxu0 0
  %331 = vmatmul.mubr.bf16.gmra.mrb[0].mxu0 %v193
  %v332 = vpop.f32.mrb[0].mxu0
  %v333 = vadd.f32 0.0, %v332
  %v334 = vpop.f32.mrb[0].mxu0
  %v335 = vpop.f32.mrb[0].mxu0
  %v336 = vadd.f32 0.0, %v335
  %v337 = vpop.f32.mrb[0].mxu0
  %338 = vmatprep.mubr.bf16.mxu0 0
  %339 = vmatmul.mubr.bf16.gmra.mrb[0].mxu0 %v194
  %v340 = vpop.f32.mrb[0].mxu0
  %v341 = vadd.f32 0.0, %v340
  %v342 = vpop.f32.mrb[0].mxu0
  %v343 = vpop.f32.mrb[0].mxu0
  %v344 = vadd.f32 0.0, %v343
  %v345 = vpop.f32.mrb[0].mxu0
  %346 = vmatprep.mubr.bf16.mxu0 0
  %347 = vmatmul.mubr.bf16.gmra.mrb[0].mxu0 %v195
  %v348 = vpop.f32.mrb[0].mxu0
  %v349 = vadd.f32 0.0, %v348
  %v350 = vpop.f32.mrb[0].mxu0
  %v351 = vpop.f32.mrb[0].mxu0
  %v352 = vadd.f32 0.0, %v351
  %v353 = vpop.f32.mrb[0].mxu0
  %354 = vmatprep.mubr.bf16.mxu0 0
  %355 = vmatmul.mubr.bf16.gmra.mrb[0].mxu0 %v196
  %v356 = vpop.f32.mrb[0].mxu0
  %v357 = vadd.f32 0.0, %v356
  %v358 = vpop.f32.mrb[0].mxu0
  %v359 = vpop.f32.mrb[0].mxu0
  %v360 = vadd.f32 0.0, %v359
  %v361 = vpop.f32.mrb[0].mxu0
  %362 = vmatprep.mubr.bf16.mxu0 0
  %363 = vmatmul.mubr.bf16.gmra.mrb[0].mxu0 %v197
  %v364 = vpop.f32.mrb[0].mxu0
  %v365 = vadd.f32 0.0, %v364
  %v366 = vpop.f32.mrb[0].mxu0
  %v367 = vpop.f32.mrb[0].mxu0
  %v368 = vadd.f32 0.0, %v367
  %v369 = vpop.f32.mrb[0].mxu0
  %370 = vmatprep.mubr.bf16.mxu0 0
  %371 = vmatmul.mubr.bf16.gmra.mrb[0].mxu0 %v198
  %v372 = vpop.f32.mrb[0].mxu0
  %v373 = vadd.f32 0.0, %v372
  %v374 = vpop.f32.mrb[0].mxu0
  %v375 = vpop.f32.mrb[0].mxu0
  %v376 = vadd.f32 0.0, %v375
  %v377 = vpop.f32.mrb[0].mxu0
  %378 = vmatprep.mubr.bf16.mxu0 0
  %379 = vmatmul.mubr.bf16.gmra.mrb[0].mxu0 %v199
  %v380 = vpop.f32.mrb[0].mxu0
  %v381 = vadd.f32 0.0, %v380
  %v382 = vpop.f32.mrb[0].mxu0
  %v383 = vpop.f32.mrb[0].mxu0
  %v384 = vadd.f32 0.0, %v383
  %v385 = vpop.f32.mrb[0].mxu0
  %386 = vmatprep.mubr.bf16.mxu0 0
  %387 = vmatmul.mubr.bf16.gmra.mrb[0].mxu0 %v200
  %v388 = vpop.f32.mrb[0].mxu0
  %v389 = vadd.f32 0.0, %v388
  %v390 = vpop.f32.mrb[0].mxu0
  %v391 = vpop.f32.mrb[0].mxu0
  %v392 = vadd.f32 0.0, %v391
  %v393 = vpop.f32.mrb[0].mxu0
  %394 = vmatprep.mubr.bf16.mxu0 0
  %395 = vmatmul.mubr.bf16.gmra.mrb[0].mxu0 %v201
  %v396 = vpop.f32.mrb[0].mxu0
  %v397 = vadd.f32 0.0, %v396
  %v398 = vpop.f32.mrb[0].mxu0
  %v399 = vpop.f32.mrb[0].mxu0
  %v400 = vadd.f32 0.0, %v399
  %v401 = vpop.f32.mrb[0].mxu0
  %402 = vmatprep.mubr.bf16.mxu0 0
  %403 = vmatmul.mubr.bf16.gmra.mrb[0].mxu0 %v202
  %v404 = vpop.f32.mrb[0].mxu0
  %v405 = vadd.f32 0.0, %v404
  %v406 = vpop.f32.mrb[0].mxu0
  %v407 = vpop.f32.mrb[0].mxu0
  %v408 = vadd.f32 0.0, %v407
  %v409 = vpop.f32.mrb[0].mxu0
  %410 = vmatprep.mubr.bf16.mxu0 0
  %411 = vmatmul.mubr.bf16.gmra.mrb[0].mxu0 %v203
  %v412 = vpop.f32.mrb[0].mxu0
  %v413 = vadd.f32 0.0, %v412
  %v414 = vpop.f32.mrb[0].mxu0
  %v415 = vpop.f32.mrb[0].mxu0
  %v416 = vadd.f32 0.0, %v415
  %v417 = vpop.f32.mrb[0].mxu0
  %418 = vmatprep.mubr.bf16.mxu0 0
  %419 = vmatmul.mubr.bf16.gmra.mrb[0].mxu0 %v204
  %v420 = vpop.f32.mrb[0].mxu0
  %v421 = vadd.f32 0.0, %v420
  %v422 = vpop.f32.mrb[0].mxu0
  %v423 = vpop.f32.mrb[0].mxu0
  %v424 = vadd.f32 0.0, %v423
  %v425 = vpop.f32.mrb[0].mxu0
  %426 = vmatprep.mubr.bf16.mxu0 0
  %427 = vmatmul.mubr.bf16.gmra.mrb[0].mxu0 %v205
  %v428 = vpop.f32.mrb[0].mxu0
  %v429 = vadd.f32 0.0, %v428
  %v430 = vpop.f32.mrb[0].mxu0
  %v431 = vpop.f32.mrb[0].mxu0
  %v432 = vadd.f32 0.0, %v431
  %v433 = vpop.f32.mrb[0].mxu0
  %434 = vmatprep.mubr.bf16.mxu0 0
  %435 = vmatmul.mubr.bf16.gmra.mrb[0].mxu0 %v206
  %v436 = vpop.f32.mrb[0].mxu0
  %v437 = vadd.f32 0.0, %v436
  %v438 = vpop.f32.mrb[0].mxu0
  %v439 = vpop.f32.mrb[0].mxu0
  %v440 = vadd.f32 0.0, %v439
  %v441 = vpop.f32.mrb[0].mxu0
  %442 = vmatprep.mubr.bf16.mxu0 0
  %443 = vmatmul.mubr.bf16.gmra.mrb[0].mxu0 %v207
  %v444 = vpop.f32.mrb[0].mxu0
  %v445 = vadd.f32 0.0, %v444
  %v446 = vpop.f32.mrb[0].mxu0
  %v447 = vpop.f32.mrb[0].mxu0
  %v448 = vadd.f32 0.0, %v447
  %v449 = vpop.f32.mrb[0].mxu0
  %450 = vmatprep.mubr.bf16.mxu0 0
  %451 = vmatmul.mubr.bf16.gmra.mrb[0].mxu0 %v208
  %v452 = vpop.f32.mrb[0].mxu0
  %v453 = vadd.f32 0.0, %v452
  %v454 = vpop.f32.mrb[0].mxu0
  %v455 = vpop.f32.mrb[0].mxu0
  %v456 = vadd.f32 0.0, %v455
  %v457 = vpop.f32.mrb[0].mxu0
  %458 = vmatprep.mubr.bf16.mxu0 0
  %459 = vmatmul.mubr.bf16.gmra.mrb[0].mxu0 %v209
  %v460 = vpop.f32.mrb[0].mxu0
  %v461 = vadd.f32 0.0, %v460
  %v462 = vpop.f32.mrb[0].mxu0
  %v463 = vpop.f32.mrb[0].mxu0
  %v464 = vadd.f32 0.0, %v463
  %v465 = vpop.f32.mrb[0].mxu0
  %466 = vmatprep.mubr.bf16.mxu0 0
  %467 = vmatmul.mubr.bf16.gmra.mrb[0].mxu0 %v210
  %v468 = vpop.f32.mrb[0].mxu0
  %v469 = vadd.f32 0.0, %v468
  %v470 = vpop.f32.mrb[0].mxu0
  %v471 = vpop.f32.mrb[0].mxu0
  %v472 = vadd.f32 0.0, %v471
  %v473 = vpop.f32.mrb[0].mxu0
  %474 = vmatprep.mubr.bf16.mxu0 0
  %475 = vmatmul.mubr.bf16.gmra.mrb[0].mxu0 %v211
  %v476 = vpop.f32.mrb[0].mxu0
  %v477 = vadd.f32 0.0, %v476
  %v478 = vpop.f32.mrb[0].mxu0
  %v479 = vpop.f32.mrb[0].mxu0
  %v480 = vadd.f32 0.0, %v479
  %v481 = vpop.f32.mrb[0].mxu0
  %482 = vmatprep.mubr.bf16.mxu0 0
  %483 = vmatmul.mubr.bf16.gmra.mrb[0].mxu0 %v212
  %v484 = vpop.f32.mrb[0].mxu0
  %v485 = vadd.f32 0.0, %v484
  %v486 = vpop.f32.mrb[0].mxu0
  %v487 = vpop.f32.mrb[0].mxu0
  %v488 = vadd.f32 0.0, %v487
  %v489 = vpop.f32.mrb[0].mxu0
  %490 = vmatprep.mubr.bf16.mxu0 0
  %491 = vmatmul.mubr.bf16.gmra.mrb[0].mxu0 %v213
  %v492 = vpop.f32.mrb[0].mxu0
  %v493 = vadd.f32 0.0, %v492
  %v494 = vpop.f32.mrb[0].mxu0
  %v495 = vpop.f32.mrb[0].mxu0
  %v496 = vadd.f32 0.0, %v495
  %v497 = vpop.f32.mrb[0].mxu0
  %498 = vmatprep.mubr.bf16.mxu0 0
  %499 = vmatmul.mubr.bf16.gmra.mrb[0].mxu0 %v214
  %v500 = vpop.f32.mrb[0].mxu0
  %v501 = vadd.f32 0.0, %v500
  %v502 = vpop.f32.mrb[0].mxu0
  %v503 = vpop.f32.mrb[0].mxu0
  %v504 = vadd.f32 0.0, %v503
  %v505 = vpop.f32.mrb[0].mxu0
  %506 = vmatprep.mubr.bf16.mxu0 0
  %507 = vmatmul.mubr.bf16.gmra.mrb[0].mxu0 %v215
  %v508 = vpop.f32.mrb[0].mxu0
  %v509 = vadd.f32 0.0, %v508
  %v510 = vpop.f32.mrb[0].mxu0
  %v511 = vpop.f32.mrb[0].mxu0
  %v512 = vadd.f32 0.0, %v511
  %v513 = vpop.f32.mrb[0].mxu0
  %514 = vmatprep.mubr.bf16.mxu0 0
  %515 = vmatmul.mubr.bf16.gmra.mrb[0].mxu0 %v216
  %v516 = vpop.f32.mrb[0].mxu0
  %v517 = vadd.f32 0.0, %v516
  %v518 = vpop.f32.mrb[0].mxu0
  %v519 = vpop.f32.mrb[0].mxu0
  %v520 = vadd.f32 0.0, %v519
  %v521 = vpop.f32.mrb[0].mxu0
  %522 = vdwg.mxu0
  %v523 = vld [vmem:[%s0 + $0x4] sm:$0xf]
  %v524 = vld [vmem:[%s0 + $0x14] sm:$0xf]
  %v525 = vld [vmem:[%s0 + $0x24] sm:$0xf]
  %v526 = vld [vmem:[%s0 + $0x34] sm:$0xf]
  %v527 = vld [vmem:[%s0 + $0x44] sm:$0xf]
  %v528 = vld [vmem:[%s0 + $0x54] sm:$0xf]
  %v529 = vld [vmem:[%s0 + $0x64] sm:$0xf]
  %v530 = vld [vmem:[%s0 + $0x74] sm:$0xf]
  %v531 = vld [vmem:[%s0 + $0x84] sm:$0xf]
  %v532 = vld [vmem:[%s0 + $0x94] sm:$0xf]
  %v533 = vld [vmem:[%s0 + $0xa4] sm:$0xf]
  %v534 = vld [vmem:[%s0 + $0xb4] sm:$0xf]
  %v535 = vld [vmem:[%s0 + $0xc4] sm:$0xf]
  %v536 = vld [vmem:[%s0 + $0xd4] sm:$0xf]
  %v537 = vld [vmem:[%s0 + $0xe4] sm:$0xf]
  %v538 = vld [vmem:[%s0 + $0xf4] sm:$0xf]
  %v539 = vld [vmem:[%s0 + $0x104] sm:$0xf]
  %v540 = vld [vmem:[%s0 + $0x114] sm:$0xf]
  %v541 = vld [vmem:[%s0 + $0x124] sm:$0xf]
  %v542 = vld [vmem:[%s0 + $0x134] sm:$0xf]
  %v543 = vld [vmem:[%s0 + $0x144] sm:$0xf]
  %v544 = vld [vmem:[%s0 + $0x154] sm:$0xf]
  %v545 = vld [vmem:[%s0 + $0x164] sm:$0xf]
  %v546 = vld [vmem:[%s0 + $0x174] sm:$0xf]
  %v547 = vld [vmem:[%s0 + $0x184] sm:$0xf]
  %v548 = vld [vmem:[%s0 + $0x194] sm:$0xf]
  %v549 = vld [vmem:[%s0 + $0x1a4] sm:$0xf]
  %v550 = vld [vmem:[%s0 + $0x1b4] sm:$0xf]
  %v551 = vld [vmem:[%s0 + $0x1c4] sm:$0xf]
  %v552 = vld [vmem:[%s0 + $0x1d4] sm:$0xf]
  %v553 = vld [vmem:[%s0 + $0x1e4] sm:$0xf]
  %v554 = vld [vmem:[%s0 + $0x1f4] sm:$0xf]
  %v555 = vld [vmem:[%s0 + $0x204] sm:$0xf]
  %v556 = vld [vmem:[%s0 + $0x214] sm:$0xf]
  %v557 = vld [vmem:[%s0 + $0x224] sm:$0xf]
  %v558 = vld [vmem:[%s0 + $0x234] sm:$0xf]
  %v559 = vld [vmem:[%s0 + $0x244] sm:$0xf]
  %v560 = vld [vmem:[%s0 + $0x254] sm:$0xf]
  %v561 = vld [vmem:[%s0 + $0x264] sm:$0xf]
  %v562 = vld [vmem:[%s0 + $0x274] sm:$0xf]
  %v563 = vld [vmem:[%s0 + $0x284] sm:$0xf]
  %v564 = vld [vmem:[%s0 + $0x294] sm:$0xf]
  %v565 = vld [vmem:[%s0 + $0x2a4] sm:$0xf]
  %v566 = vld [vmem:[%s0 + $0x2b4] sm:$0xf]
  %v567 = vld [vmem:[%s0 + $0x2c4] sm:$0xf]
  %v568 = vld [vmem:[%s0 + $0x2d4] sm:$0xf]
  %v569 = vld [vmem:[%s0 + $0x2e4] sm:$0xf]
  %v570 = vld [vmem:[%s0 + $0x2f4] sm:$0xf]
  %v571 = vld [vmem:[%s0 + $0x304] sm:$0xf]
  %v572 = vld [vmem:[%s0 + $0x314] sm:$0xf]
  %v623 = vunpack.c.l.b16 %v523
  %v624 = vunpack.c.l.b16 %v524
  %v625 = vunpack.c.l.b16 %v525
  %v626 = vunpack.c.l.b16 %v526
  %v627 = vunpack.c.l.b16 %v527
  %v628 = vunpack.c.l.b16 %v528
  %v629 = vunpack.c.l.b16 %v529
  %v630 = vunpack.c.l.b16 %v530
  %v631 = vunpack.c.l.b16 %v531
  %v632 = vunpack.c.l.b16 %v532
  %v633 = vunpack.c.l.b16 %v533
  %v634 = vunpack.c.l.b16 %v534
  %v635 = vunpack.c.l.b16 %v535
  %v636 = vunpack.c.l.b16 %v536
  %v637 = vunpack.c.l.b16 %v537
  %v638 = vunpack.c.l.b16 %v538
  %v639 = vunpack.c.l.b16 %v539
  %v640 = vunpack.c.l.b16 %v540
  %v641 = vunpack.c.l.b16 %v541
  %v642 = vunpack.c.l.b16 %v542
  %v643 = vunpack.c.l.b16 %v543
  %v644 = vunpack.c.l.b16 %v544
  %v645 = vunpack.c.l.b16 %v545
  %v646 = vunpack.c.l.b16 %v546
  %v647 = vunpack.c.l.b16 %v547
  %v648 = vunpack.c.l.b16 %v548
  %v649 = vunpack.c.l.b16 %v549
  %v650 = vunpack.c.l.b16 %v550
  %v651 = vunpack.c.l.b16 %v551
  %v652 = vunpack.c.l.b16 %v552
  %v653 = vunpack.c.l.b16 %v553
  %v654 = vunpack.c.l.b16 %v554
  %v655 = vunpack.c.l.b16 %v555
  %v656 = vunpack.c.l.b16 %v556
  %v657 = vunpack.c.l.b16 %v557
  %v658 = vunpack.c.l.b16 %v558
  %v659 = vunpack.c.l.b16 %v559
  %v660 = vunpack.c.l.b16 %v560
  %v661 = vunpack.c.l.b16 %v561
  %v662 = vunpack.c.l.b16 %v562
  %v663 = vunpack.c.l.b16 %v563
  %v664 = vunpack.c.l.b16 %v564
  %v665 = vunpack.c.l.b16 %v565
  %v666 = vunpack.c.l.b16 %v566
  %v667 = vunpack.c.l.b16 %v567
  %v668 = vunpack.c.l.b16 %v568
  %v669 = vunpack.c.l.b16 %v569
  %v670 = vunpack.c.l.b16 %v570
  %v671 = vunpack.c.l.b16 %v571
  %v672 = vunpack.c.l.b16 %v572
  %v673 = vpack.c.b16 %v624, %v623
  %v674 = vpack.c.b16 %v626, %v625
  %v675 = vpack.c.b16 %v628, %v627
  %v676 = vpack.c.b16 %v630, %v629
  %v677 = vpack.c.b16 %v632, %v631
  %v678 = vpack.c.b16 %v634, %v633
  %v679 = vpack.c.b16 %v636, %v635
  %v680 = vpack.c.b16 %v638, %v637
  %v681 = vpack.c.b16 %v640, %v639
  %v682 = vpack.c.b16 %v642, %v641
  %v683 = vpack.c.b16 %v644, %v643
  %v684 = vpack.c.b16 %v646, %v645
  %v685 = vpack.c.b16 %v648, %v647
  %v686 = vpack.c.b16 %v650, %v649
  %v687 = vpack.c.b16 %v652, %v651
  %v688 = vpack.c.b16 %v654, %v653
  %v689 = vpack.c.b16 %v656, %v655
  %v690 = vpack.c.b16 %v658, %v657
  %v691 = vpack.c.b16 %v660, %v659
  %v692 = vpack.c.b16 %v662, %v661
  %v693 = vpack.c.b16 %v664, %v663
  %v694 = vpack.c.b16 %v666, %v665
  %v695 = vpack.c.b16 %v668, %v667
  %v696 = vpack.c.b16 %v670, %v669
  %v697 = vpack.c.b16 %v672, %v671
  %723 = vmatprep.subr.bf16.mxu0 0
  %724 = vmatpush1.bf16.msra.mxu0 %v274
  %725 = vmatprep.subr.bf16.mxu0 0
  %726 = vmatpush1.bf16.msra.mxu0 %v275
  %727 = vmatprep.subr.bf16.mxu0 0
  %728 = vmatpush1.bf16.msra.mxu0 %v276
  %729 = vmatprep.subr.bf16.mxu0 0
  %730 = vmatpush1.bf16.msra.mxu0 %v277
  %731 = vmatprep.subr.bf16.mxu0 0
  %732 = vmatpush1.bf16.msra.mxu0 %v278
  %733 = vmatprep.subr.bf16.mxu0 0
  %734 = vmatpush1.bf16.msra.mxu0 %v279
  %735 = vmatprep.subr.bf16.mxu0 0
  %736 = vmatpush1.bf16.msra.mxu0 %v280
  %737 = vmatprep.subr.bf16.mxu0 0
  %738 = vmatpush1.bf16.msra.mxu0 %v281
  %739 = vmatprep.subr.bf16.mxu0 0
  %740 = vmatpush1.bf16.msra.mxu0 0
  %741 = vmatprep.subr.bf16.mxu0 0
  %742 = vmatpush1.bf16.msra.mxu0 0
  %743 = vmatprep.subr.bf16.mxu0 0
  %744 = vmatpush1.bf16.msra.mxu0 0
  %745 = vmatprep.subr.bf16.mxu0 0
  %746 = vmatpush1.bf16.msra.mxu0 0
  %747 = vmatprep.subr.bf16.mxu0 0
  %748 = vmatpush1.bf16.msra.mxu0 0
  %749 = vmatprep.subr.bf16.mxu0 0
  %750 = vmatpush1.bf16.msra.mxu0 0
  %751 = vmatprep.subr.bf16.mxu0 0
  %752 = vmatpush1.bf16.msra.mxu0 0
  %753 = vmatprep.subr.bf16.mxu0 0
  %754 = vmatpush1.bf16.msra.mxu0 0
  %755 = vmatprep.mubr.bf16.mxu0 0
  %756 = vmatmul.mubr.bf16.gmra.mrb[0].mxu0 %v673
  %v757 = vpop.f32.mrb[0].mxu0
  %v758 = vadd.f32 0.0, %v757
  %v759 = vpop.f32.mrb[0].mxu0
  %v760 = vpop.f32.mrb[0].mxu0
  %v761 = vadd.f32 0.0, %v760
  %v762 = vpop.f32.mrb[0].mxu0
  %763 = vmatprep.mubr.bf16.mxu0 0
  %764 = vmatmul.mubr.bf16.gmra.mrb[0].mxu0 %v674
  %v765 = vpop.f32.mrb[0].mxu0
  %v766 = vadd.f32 0.0, %v765
  %v767 = vpop.f32.mrb[0].mxu0
  %v768 = vpop.f32.mrb[0].mxu0
  %v769 = vadd.f32 0.0, %v768
  %v770 = vpop.f32.mrb[0].mxu0
  %771 = vmatprep.mubr.bf16.mxu0 0
  %772 = vmatmul.mubr.bf16.gmra.mrb[0].mxu0 %v675
  %v773 = vpop.f32.mrb[0].mxu0
  %v774 = vadd.f32 0.0, %v773
  %v775 = vpop.f32.mrb[0].mxu0
  %v776 = vpop.f32.mrb[0].mxu0
  %v777 = vadd.f32 0.0, %v776
  %v778 = vpop.f32.mrb[0].mxu0
  %779 = vmatprep.mubr.bf16.mxu0 0
  %780 = vmatmul.mubr.bf16.gmra.mrb[0].mxu0 %v676
  %v781 = vpop.f32.mrb[0].mxu0
  %v782 = vadd.f32 0.0, %v781
  %v783 = vpop.f32.mrb[0].mxu0
  %v784 = vpop.f32.mrb[0].mxu0
  %v785 = vadd.f32 0.0, %v784
  %v786 = vpop.f32.mrb[0].mxu0
  %787 = vmatprep.mubr.bf16.mxu0 0
  %788 = vmatmul.mubr.bf16.gmra.mrb[0].mxu0 %v677
  %v789 = vpop.f32.mrb[0].mxu0
  %v790 = vadd.f32 0.0, %v789
  %v791 = vpop.f32.mrb[0].mxu0
  %v792 = vpop.f32.mrb[0].mxu0
  %v793 = vadd.f32 0.0, %v792
  %v794 = vpop.f32.mrb[0].mxu0
  %795 = vmatprep.mubr.bf16.mxu0 0
  %796 = vmatmul.mubr.bf16.gmra.mrb[0].mxu0 %v678
  %v797 = vpop.f32.mrb[0].mxu0
  %v798 = vadd.f32 0.0, %v797
  %v799 = vpop.f32.mrb[0].mxu0
  %v800 = vpop.f32.mrb[0].mxu0
  %v801 = vadd.f32 0.0, %v800
  %v802 = vpop.f32.mrb[0].mxu0
  %803 = vmatprep.mubr.bf16.mxu0 0
  %804 = vmatmul.mubr.bf16.gmra.mrb[0].mxu0 %v679
  %v805 = vpop.f32.mrb[0].mxu0
  %v806 = vadd.f32 0.0, %v805
  %v807 = vpop.f32.mrb[0].mxu0
  %v808 = vpop.f32.mrb[0].mxu0
  %v809 = vadd.f32 0.0, %v808
  %v810 = vpop.f32.mrb[0].mxu0
  %811 = vmatprep.mubr.bf16.mxu0 0
  %812 = vmatmul.mubr.bf16.gmra.mrb[0].mxu0 %v680
  %v813 = vpop.f32.mrb[0].mxu0
  %v814 = vadd.f32 0.0, %v813
  %v815 = vpop.f32.mrb[0].mxu0
  %v816 = vpop.f32.mrb[0].mxu0
  %v817 = vadd.f32 0.0, %v816
  %v818 = vpop.f32.mrb[0].mxu0
  %819 = vmatprep.mubr.bf16.mxu0 0
  %820 = vmatmul.mubr.bf16.gmra.mrb[0].mxu0 %v681
  %v821 = vpop.f32.mrb[0].mxu0
  %v822 = vadd.f32 0.0, %v821
  %v823 = vpop.f32.mrb[0].mxu0
  %v824 = vpop.f32.mrb[0].mxu0
  %v825 = vadd.f32 0.0, %v824
  %v826 = vpop.f32.mrb[0].mxu0
  %827 = vmatprep.mubr.bf16.mxu0 0
  %828 = vmatmul.mubr.bf16.gmra.mrb[0].mxu0 %v682
  %v829 = vpop.f32.mrb[0].mxu0
  %v830 = vadd.f32 0.0, %v829
  %v831 = vpop.f32.mrb[0].mxu0
  %v832 = vpop.f32.mrb[0].mxu0
  %v833 = vadd.f32 0.0, %v832
  %v834 = vpop.f32.mrb[0].mxu0
  %835 = vmatprep.mubr.bf16.mxu0 0
  %836 = vmatmul.mubr.bf16.gmra.mrb[0].mxu0 %v683
  %v837 = vpop.f32.mrb[0].mxu0
  %v838 = vadd.f32 0.0, %v837
  %v839 = vpop.f32.mrb[0].mxu0
  %v840 = vpop.f32.mrb[0].mxu0
  %v841 = vadd.f32 0.0, %v840
  %v842 = vpop.f32.mrb[0].mxu0
  %843 = vmatprep.mubr.bf16.mxu0 0
  %844 = vmatmul.mubr.bf16.gmra.mrb[0].mxu0 %v684
  %v845 = vpop.f32.mrb[0].mxu0
  %v846 = vadd.f32 0.0, %v845
  %v847 = vpop.f32.mrb[0].mxu0
  %v848 = vpop.f32.mrb[0].mxu0
  %v849 = vadd.f32 0.0, %v848
  %v850 = vpop.f32.mrb[0].mxu0
  %851 = vmatprep.mubr.bf16.mxu0 0
  %852 = vmatmul.mubr.bf16.gmra.mrb[0].mxu0 %v685
  %v853 = vpop.f32.mrb[0].mxu0
  %v854 = vadd.f32 0.0, %v853
  %v855 = vpop.f32.mrb[0].mxu0
  %v856 = vpop.f32.mrb[0].mxu0
  %v857 = vadd.f32 0.0, %v856
  %v858 = vpop.f32.mrb[0].mxu0
  %859 = vmatprep.mubr.bf16.mxu0 0
  %860 = vmatmul.mubr.bf16.gmra.mrb[0].mxu0 %v686
  %v861 = vpop.f32.mrb[0].mxu0
  %v862 = vadd.f32 0.0, %v861
  %v863 = vpop.f32.mrb[0].mxu0
  %v864 = vpop.f32.mrb[0].mxu0
  %v865 = vadd.f32 0.0, %v864
  %v866 = vpop.f32.mrb[0].mxu0
  %867 = vmatprep.mubr.bf16.mxu0 0
  %868 = vmatmul.mubr.bf16.gmra.mrb[0].mxu0 %v687
  %v869 = vpop.f32.mrb[0].mxu0
  %v870 = vadd.f32 0.0, %v869
  %v871 = vpop.f32.mrb[0].mxu0
  %v872 = vpop.f32.mrb[0].mxu0
  %v873 = vadd.f32 0.0, %v872
  %v874 = vpop.f32.mrb[0].mxu0
  %875 = vmatprep.mubr.bf16.mxu0 0
  %876 = vmatmul.mubr.bf16.gmra.mrb[0].mxu0 %v688
  %v877 = vpop.f32.mrb[0].mxu0
  %v878 = vadd.f32 0.0, %v877
  %v879 = vpop.f32.mrb[0].mxu0
  %v880 = vpop.f32.mrb[0].mxu0
  %v881 = vadd.f32 0.0, %v880
  %v882 = vpop.f32.mrb[0].mxu0
  %883 = vmatprep.mubr.bf16.mxu0 0
  %884 = vmatmul.mubr.bf16.gmra.mrb[0].mxu0 %v689
  %v885 = vpop.f32.mrb[0].mxu0
  %v886 = vadd.f32 0.0, %v885
  %v887 = vpop.f32.mrb[0].mxu0
  %v888 = vpop.f32.mrb[0].mxu0
  %v889 = vadd.f32 0.0, %v888
  %v890 = vpop.f32.mrb[0].mxu0
  %891 = vmatprep.mubr.bf16.mxu0 0
  %892 = vmatmul.mubr.bf16.gmra.mrb[0].mxu0 %v690
  %v893 = vpop.f32.mrb[0].mxu0
  %v894 = vadd.f32 0.0, %v893
  %v895 = vpop.f32.mrb[0].mxu0
  %v896 = vpop.f32.mrb[0].mxu0
  %v897 = vadd.f32 0.0, %v896
  %v898 = vpop.f32.mrb[0].mxu0
  %899 = vmatprep.mubr.bf16.mxu0 0
  %900 = vmatmul.mubr.bf16.gmra.mrb[0].mxu0 %v691
  %v901 = vpop.f32.mrb[0].mxu0
  %v902 = vadd.f32 0.0, %v901
  %v903 = vpop.f32.mrb[0].mxu0
  %v904 = vpop.f32.mrb[0].mxu0
  %v905 = vadd.f32 0.0, %v904
  %v906 = vpop.f32.mrb[0].mxu0
  %907 = vmatprep.mubr.bf16.mxu0 0
  %908 = vmatmul.mubr.bf16.gmra.mrb[0].mxu0 %v692
  %v909 = vpop.f32.mrb[0].mxu0
  %v910 = vadd.f32 0.0, %v909
  %v911 = vpop.f32.mrb[0].mxu0
  %v912 = vpop.f32.mrb[0].mxu0
  %v913 = vadd.f32 0.0, %v912
  %v914 = vpop.f32.mrb[0].mxu0
  %915 = vmatprep.mubr.bf16.mxu0 0
  %916 = vmatmul.mubr.bf16.gmra.mrb[0].mxu0 %v693
  %v917 = vpop.f32.mrb[0].mxu0
  %v918 = vadd.f32 0.0, %v917
  %v919 = vpop.f32.mrb[0].mxu0
  %v920 = vpop.f32.mrb[0].mxu0
  %v921 = vadd.f32 0.0, %v920
  %v922 = vpop.f32.mrb[0].mxu0
  %923 = vmatprep.mubr.bf16.mxu0 0
  %924 = vmatmul.mubr.bf16.gmra.mrb[0].mxu0 %v694
  %v925 = vpop.f32.mrb[0].mxu0
  %v926 = vadd.f32 0.0, %v925
  %v927 = vpop.f32.mrb[0].mxu0
  %v928 = vpop.f32.mrb[0].mxu0
  %v929 = vadd.f32 0.0, %v928
  %v930 = vpop.f32.mrb[0].mxu0
  %931 = vmatprep.mubr.bf16.mxu0 0
  %932 = vmatmul.mubr.bf16.gmra.mrb[0].mxu0 %v695
  %v933 = vpop.f32.mrb[0].mxu0
  %v934 = vadd.f32 0.0, %v933
  %v935 = vpop.f32.mrb[0].mxu0
  %v936 = vpop.f32.mrb[0].mxu0
  %v937 = vadd.f32 0.0, %v936
  %v938 = vpop.f32.mrb[0].mxu0
  %939 = vmatprep.mubr.bf16.mxu0 0
  %940 = vmatmul.mubr.bf16.gmra.mrb[0].mxu0 %v696
  %v941 = vpop.f32.mrb[0].mxu0
  %v942 = vadd.f32 0.0, %v941
  %v943 = vpop.f32.mrb[0].mxu0
  %v944 = vpop.f32.mrb[0].mxu0
  %v945 = vadd.f32 0.0, %v944
  %v946 = vpop.f32.mrb[0].mxu0
  %947 = vmatprep.mubr.bf16.mxu0 0
  %948 = vmatmul.mubr.bf16.gmra.mrb[0].mxu0 %v697
  %v949 = vpop.f32.mrb[0].mxu0
  %v950 = vadd.f32 0.0, %v949
  %v951 = vpop.f32.mrb[0].mxu0
  %v952 = vpop.f32.mrb[0].mxu0
  %v953 = vadd.f32 0.0, %v952
  %v954 = vpop.f32.mrb[0].mxu0
  %955 = vdwg.mxu0
  %v956 = vmax.f32 %v325, %v758
  %v957 = vmax.f32 %v328, %v761
  %v958 = vmax.f32 %v333, %v766
  %v959 = vmax.f32 %v336, %v769
  %v960 = vmax.f32 %v341, %v774
  %v961 = vmax.f32 %v344, %v777
  %v962 = vmax.f32 %v349, %v782
  %v963 = vmax.f32 %v352, %v785
  %v964 = vmax.f32 %v357, %v790
  %v965 = vmax.f32 %v360, %v793
  %v966 = vmax.f32 %v365, %v798
  %v967 = vmax.f32 %v368, %v801
  %v968 = vmax.f32 %v373, %v806
  %v969 = vmax.f32 %v376, %v809
  %v970 = vmax.f32 %v381, %v814
  %v971 = vmax.f32 %v384, %v817
  %v972 = vmax.f32 %v389, %v822
  %v973 = vmax.f32 %v392, %v825
  %v974 = vmax.f32 %v397, %v830
  %v975 = vmax.f32 %v400, %v833
  %v976 = vmax.f32 %v405, %v838
  %v977 = vmax.f32 %v408, %v841
  %v978 = vmax.f32 %v413, %v846
  %v979 = vmax.f32 %v416, %v849
  %v980 = vmax.f32 %v421, %v854
  %v981 = vmax.f32 %v424, %v857
  %v982 = vmax.f32 %v429, %v862
  %v983 = vmax.f32 %v432, %v865
  %v984 = vmax.f32 %v437, %v870
  %v985 = vmax.f32 %v440, %v873
  %v986 = vmax.f32 %v445, %v878
  %v987 = vmax.f32 %v448, %v881
  %v988 = vmax.f32 %v453, %v886
  %v989 = vmax.f32 %v456, %v889
  %v990 = vmax.f32 %v461, %v894
  %v991 = vmax.f32 %v464, %v897
  %v992 = vmax.f32 %v469, %v902
  %v993 = vmax.f32 %v472, %v905
  %v994 = vmax.f32 %v477, %v910
  %v995 = vmax.f32 %v480, %v913
  %v996 = vmax.f32 %v485, %v918
  %v997 = vmax.f32 %v488, %v921
  %v998 = vmax.f32 %v493, %v926
  %v999 = vmax.f32 %v496, %v929
  %v1000 = vmax.f32 %v501, %v934
  %v1001 = vmax.f32 %v504, %v937
  %v1002 = vmax.f32 %v509, %v942
  %v1003 = vmax.f32 %v512, %v945
  %v1004 = vmax.f32 %v517, %v950
  %v1005 = vmax.f32 %v520, %v953
  %v1006 = vld [vmem:[%s0 + $0x8] sm:$0xf]
  %v1007 = vld [vmem:[%s0 + $0x18] sm:$0xf]
  %v1008 = vld [vmem:[%s0 + $0x28] sm:$0xf]
  %v1009 = vld [vmem:[%s0 + $0x38] sm:$0xf]
  %v1010 = vld [vmem:[%s0 + $0x48] sm:$0xf]
  %v1011 = vld [vmem:[%s0 + $0x58] sm:$0xf]
  %v1012 = vld [vmem:[%s0 + $0x68] sm:$0xf]
  %v1013 = vld [vmem:[%s0 + $0x78] sm:$0xf]
  %v1014 = vld [vmem:[%s0 + $0x88] sm:$0xf]
  %v1015 = vld [vmem:[%s0 + $0x98] sm:$0xf]
  %v1016 = vld [vmem:[%s0 + $0xa8] sm:$0xf]
  %v1017 = vld [vmem:[%s0 + $0xb8] sm:$0xf]
  %v1018 = vld [vmem:[%s0 + $0xc8] sm:$0xf]
  %v1019 = vld [vmem:[%s0 + $0xd8] sm:$0xf]
  %v1020 = vld [vmem:[%s0 + $0xe8] sm:$0xf]
  %v1021 = vld [vmem:[%s0 + $0xf8] sm:$0xf]
  %v1022 = vld [vmem:[%s0 + $0x108] sm:$0xf]
  %v1023 = vld [vmem:[%s0 + $0x118] sm:$0xf]
  %v1024 = vld [vmem:[%s0 + $0x128] sm:$0xf]
  %v1025 = vld [vmem:[%s0 + $0x138] sm:$0xf]
  %v1026 = vld [vmem:[%s0 + $0x148] sm:$0xf]
  %v1027 = vld [vmem:[%s0 + $0x158] sm:$0xf]
  %v1028 = vld [vmem:[%s0 + $0x168] sm:$0xf]
  %v1029 = vld [vmem:[%s0 + $0x178] sm:$0xf]
  %v1030 = vld [vmem:[%s0 + $0x188] sm:$0xf]
  %v1031 = vld [vmem:[%s0 + $0x198] sm:$0xf]
  %v1032 = vld [vmem:[%s0 + $0x1a8] sm:$0xf]
  %v1033 = vld [vmem:[%s0 + $0x1b8] sm:$0xf]
  %v1034 = vld [vmem:[%s0 + $0x1c8] sm:$0xf]
  %v1035 = vld [vmem:[%s0 + $0x1d8] sm:$0xf]
  %v1036 = vld [vmem:[%s0 + $0x1e8] sm:$0xf]
  %v1037 = vld [vmem:[%s0 + $0x1f8] sm:$0xf]
  %v1038 = vld [vmem:[%s0 + $0x208] sm:$0xf]
  %v1039 = vld [vmem:[%s0 + $0x218] sm:$0xf]
  %v1040 = vld [vmem:[%s0 + $0x228] sm:$0xf]
  %v1041 = vld [vmem:[%s0 + $0x238] sm:$0xf]
  %v1042 = vld [vmem:[%s0 + $0x248] sm:$0xf]
  %v1043 = vld [vmem:[%s0 + $0x258] sm:$0xf]
  %v1044 = vld [vmem:[%s0 + $0x268] sm:$0xf]
  %v1045 = vld [vmem:[%s0 + $0x278] sm:$0xf]
  %v1046 = vld [vmem:[%s0 + $0x288] sm:$0xf]
  %v1047 = vld [vmem:[%s0 + $0x298] sm:$0xf]
  %v1048 = vld [vmem:[%s0 + $0x2a8] sm:$0xf]
  %v1049 = vld [vmem:[%s0 + $0x2b8] sm:$0xf]
  %v1050 = vld [vmem:[%s0 + $0x2c8] sm:$0xf]
  %v1051 = vld [vmem:[%s0 + $0x2d8] sm:$0xf]
  %v1052 = vld [vmem:[%s0 + $0x2e8] sm:$0xf]
  %v1053 = vld [vmem:[%s0 + $0x2f8] sm:$0xf]
  %v1054 = vld [vmem:[%s0 + $0x308] sm:$0xf]
  %v1055 = vld [vmem:[%s0 + $0x318] sm:$0xf]
  %v1106 = vunpack.c.l.b16 %v1006
  %v1107 = vunpack.c.l.b16 %v1007
  %v1108 = vunpack.c.l.b16 %v1008
  %v1109 = vunpack.c.l.b16 %v1009
  %v1110 = vunpack.c.l.b16 %v1010
  %v1111 = vunpack.c.l.b16 %v1011
  %v1112 = vunpack.c.l.b16 %v1012
  %v1113 = vunpack.c.l.b16 %v1013
  %v1114 = vunpack.c.l.b16 %v1014
  %v1115 = vunpack.c.l.b16 %v1015
  %v1116 = vunpack.c.l.b16 %v1016
  %v1117 = vunpack.c.l.b16 %v1017
  %v1118 = vunpack.c.l.b16 %v1018
  %v1119 = vunpack.c.l.b16 %v1019
  %v1120 = vunpack.c.l.b16 %v1020
  %v1121 = vunpack.c.l.b16 %v1021
  %v1122 = vunpack.c.l.b16 %v1022
  %v1123 = vunpack.c.l.b16 %v1023
  %v1124 = vunpack.c.l.b16 %v1024
  %v1125 = vunpack.c.l.b16 %v1025
  %v1126 = vunpack.c.l.b16 %v1026
  %v1127 = vunpack.c.l.b16 %v1027
  %v1128 = vunpack.c.l.b16 %v1028
  %v1129 = vunpack.c.l.b16 %v1029
  %v1130 = vunpack.c.l.b16 %v1030
  %v1131 = vunpack.c.l.b16 %v1031
  %v1132 = vunpack.c.l.b16 %v1032
  %v1133 = vunpack.c.l.b16 %v1033
  %v1134 = vunpack.c.l.b16 %v1034
  %v1135 = vunpack.c.l.b16 %v1035
  %v1136 = vunpack.c.l.b16 %v1036
  %v1137 = vunpack.c.l.b16 %v1037
  %v1138 = vunpack.c.l.b16 %v1038
  %v1139 = vunpack.c.l.b16 %v1039
  %v1140 = vunpack.c.l.b16 %v1040
  %v1141 = vunpack.c.l.b16 %v1041
  %v1142 = vunpack.c.l.b16 %v1042
  %v1143 = vunpack.c.l.b16 %v1043
  %v1144 = vunpack.c.l.b16 %v1044
  %v1145 = vunpack.c.l.b16 %v1045
  %v1146 = vunpack.c.l.b16 %v1046
  %v1147 = vunpack.c.l.b16 %v1047
  %v1148 = vunpack.c.l.b16 %v1048
  %v1149 = vunpack.c.l.b16 %v1049
  %v1150 = vunpack.c.l.b16 %v1050
  %v1151 = vunpack.c.l.b16 %v1051
  %v1152 = vunpack.c.l.b16 %v1052
  %v1153 = vunpack.c.l.b16 %v1053
  %v1154 = vunpack.c.l.b16 %v1054
  %v1155 = vunpack.c.l.b16 %v1055
  %v1156 = vpack.c.b16 %v1107, %v1106
  %v1157 = vpack.c.b16 %v1109, %v1108
  %v1158 = vpack.c.b16 %v1111, %v1110
  %v1159 = vpack.c.b16 %v1113, %v1112
  %v1160 = vpack.c.b16 %v1115, %v1114
  %v1161 = vpack.c.b16 %v1117, %v1116
  %v1162 = vpack.c.b16 %v1119, %v1118
  %v1163 = vpack.c.b16 %v1121, %v1120
  %v1164 = vpack.c.b16 %v1123, %v1122
  %v1165 = vpack.c.b16 %v1125, %v1124
  %v1166 = vpack.c.b16 %v1127, %v1126
  %v1167 = vpack.c.b16 %v1129, %v1128
  %v1168 = vpack.c.b16 %v1131, %v1130
  %v1169 = vpack.c.b16 %v1133, %v1132
  %v1170 = vpack.c.b16 %v1135, %v1134
  %v1171 = vpack.c.b16 %v1137, %v1136
  %v1172 = vpack.c.b16 %v1139, %v1138
  %v1173 = vpack.c.b16 %v1141, %v1140
  %v1174 = vpack.c.b16 %v1143, %v1142
  %v1175 = vpack.c.b16 %v1145, %v1144
  %v1176 = vpack.c.b16 %v1147, %v1146
  %v1177 = vpack.c.b16 %v1149, %v1148
  %v1178 = vpack.c.b16 %v1151, %v1150
  %v1179 = vpack.c.b16 %v1153, %v1152
  %v1180 = vpack.c.b16 %v1155, %v1154
  %1206 = vmatprep.subr.bf16.mxu0 0
  %1207 = vmatpush1.bf16.msra.mxu0 %v274
  %1208 = vmatprep.subr.bf16.mxu0 0
  %1209 = vmatpush1.bf16.msra.mxu0 %v275
  %1210 = vmatprep.subr.bf16.mxu0 0
  %1211 = vmatpush1.bf16.msra.mxu0 %v276
  %1212 = vmatprep.subr.bf16.mxu0 0
  %1213 = vmatpush1.bf16.msra.mxu0 %v277
  %1214 = vmatprep.subr.bf16.mxu0 0
  %1215 = vmatpush1.bf16.msra.mxu0 %v278
  %1216 = vmatprep.subr.bf16.mxu0 0
  %1217 = vmatpush1.bf16.msra.mxu0 %v279
  %1218 = vmatprep.subr.bf16.mxu0 0
  %1219 = vmatpush1.bf16.msra.mxu0 %v280
  %1220 = vmatprep.subr.bf16.mxu0 0
  %1221 = vmatpush1.bf16.msra.mxu0 %v281
  %1222 = vmatprep.subr.bf16.mxu0 0
  %1223 = vmatpush1.bf16.msra.mxu0 0
  %1224 = vmatprep.subr.bf16.mxu0 0
  %1225 = vmatpush1.bf16.msra.mxu0 0
  %1226 = vmatprep.subr.bf16.mxu0 0
  %1227 = vmatpush1.bf16.msra.mxu0 0
  %1228 = vmatprep.subr.bf16.mxu0 0
  %1229 = vmatpush1.bf16.msra.mxu0 0
  %1230 = vmatprep.subr.bf16.mxu0 0
  %1231 = vmatpush1.bf16.msra.mxu0 0
  %1232 = vmatprep.subr.bf16.mxu0 0
  %1233 = vmatpush1.bf16.msra.mxu0 0
  %1234 = vmatprep.subr.bf16.mxu0 0
  %1235 = vmatpush1.bf16.msra.mxu0 0
  %1236 = vmatprep.subr.bf16.mxu0 0
  %1237 = vmatpush1.bf16.msra.mxu0 0
  %1238 = vmatprep.mubr.bf16.mxu0 0
  %1239 = vmatmul.mubr.bf16.gmra.mrb[0].mxu0 %v1156
  %v1240 = vpop.f32.mrb[0].mxu0
  %v1241 = vadd.f32 0.0, %v1240
  %v1242 = vpop.f32.mrb[0].mxu0
  %v1243 = vpop.f32.mrb[0].mxu0
  %v1244 = vadd.f32 0.0, %v1243
  %v1245 = vpop.f32.mrb[0].mxu0
  %1246 = vmatprep.mubr.bf16.mxu0 0
  %1247 = vmatmul.mubr.bf16.gmra.mrb[0].mxu0 %v1157
  %v1248 = vpop.f32.mrb[0].mxu0
  %v1249 = vadd.f32 0.0, %v1248
  %v1250 = vpop.f32.mrb[0].mxu0
  %v1251 = vpop.f32.mrb[0].mxu0
  %v1252 = vadd.f32 0.0, %v1251
  %v1253 = vpop.f32.mrb[0].mxu0
  %1254 = vmatprep.mubr.bf16.mxu0 0
  %1255 = vmatmul.mubr.bf16.gmra.mrb[0].mxu0 %v1158
  %v1256 = vpop.f32.mrb[0].mxu0
  %v1257 = vadd.f32 0.0, %v1256
  %v1258 = vpop.f32.mrb[0].mxu0
  %v1259 = vpop.f32.mrb[0].mxu0
  %v1260 = vadd.f32 0.0, %v1259
  %v1261 = vpop.f32.mrb[0].mxu0
  %1262 = vmatprep.mubr.bf16.mxu0 0
  %1263 = vmatmul.mubr.bf16.gmra.mrb[0].mxu0 %v1159
  %v1264 = vpop.f32.mrb[0].mxu0
  %v1265 = vadd.f32 0.0, %v1264
  %v1266 = vpop.f32.mrb[0].mxu0
  %v1267 = vpop.f32.mrb[0].mxu0
  %v1268 = vadd.f32 0.0, %v1267
  %v1269 = vpop.f32.mrb[0].mxu0
  %1270 = vmatprep.mubr.bf16.mxu0 0
  %1271 = vmatmul.mubr.bf16.gmra.mrb[0].mxu0 %v1160
  %v1272 = vpop.f32.mrb[0].mxu0
  %v1273 = vadd.f32 0.0, %v1272
  %v1274 = vpop.f32.mrb[0].mxu0
  %v1275 = vpop.f32.mrb[0].mxu0
  %v1276 = vadd.f32 0.0, %v1275
  %v1277 = vpop.f32.mrb[0].mxu0
  %1278 = vmatprep.mubr.bf16.mxu0 0
  %1279 = vmatmul.mubr.bf16.gmra.mrb[0].mxu0 %v1161
  %v1280 = vpop.f32.mrb[0].mxu0
  %v1281 = vadd.f32 0.0, %v1280
  %v1282 = vpop.f32.mrb[0].mxu0
  %v1283 = vpop.f32.mrb[0].mxu0
  %v1284 = vadd.f32 0.0, %v1283
  %v1285 = vpop.f32.mrb[0].mxu0
  %1286 = vmatprep.mubr.bf16.mxu0 0
  %1287 = vmatmul.mubr.bf16.gmra.mrb[0].mxu0 %v1162
  %v1288 = vpop.f32.mrb[0].mxu0
  %v1289 = vadd.f32 0.0, %v1288
  %v1290 = vpop.f32.mrb[0].mxu0
  %v1291 = vpop.f32.mrb[0].mxu0
  %v1292 = vadd.f32 0.0, %v1291
  %v1293 = vpop.f32.mrb[0].mxu0
  %1294 = vmatprep.mubr.bf16.mxu0 0
  %1295 = vmatmul.mubr.bf16.gmra.mrb[0].mxu0 %v1163
  %v1296 = vpop.f32.mrb[0].mxu0
  %v1297 = vadd.f32 0.0, %v1296
  %v1298 = vpop.f32.mrb[0].mxu0
  %v1299 = vpop.f32.mrb[0].mxu0
  %v1300 = vadd.f32 0.0, %v1299
  %v1301 = vpop.f32.mrb[0].mxu0
  %1302 = vmatprep.mubr.bf16.mxu0 0
  %1303 = vmatmul.mubr.bf16.gmra.mrb[0].mxu0 %v1164
  %v1304 = vpop.f32.mrb[0].mxu0
  %v1305 = vadd.f32 0.0, %v1304
  %v1306 = vpop.f32.mrb[0].mxu0
  %v1307 = vpop.f32.mrb[0].mxu0
  %v1308 = vadd.f32 0.0, %v1307
  %v1309 = vpop.f32.mrb[0].mxu0
  %1310 = vmatprep.mubr.bf16.mxu0 0
  %1311 = vmatmul.mubr.bf16.gmra.mrb[0].mxu0 %v1165
  %v1312 = vpop.f32.mrb[0].mxu0
  %v1313 = vadd.f32 0.0, %v1312
  %v1314 = vpop.f32.mrb[0].mxu0
  %v1315 = vpop.f32.mrb[0].mxu0
  %v1316 = vadd.f32 0.0, %v1315
  %v1317 = vpop.f32.mrb[0].mxu0
  %1318 = vmatprep.mubr.bf16.mxu0 0
  %1319 = vmatmul.mubr.bf16.gmra.mrb[0].mxu0 %v1166
  %v1320 = vpop.f32.mrb[0].mxu0
  %v1321 = vadd.f32 0.0, %v1320
  %v1322 = vpop.f32.mrb[0].mxu0
  %v1323 = vpop.f32.mrb[0].mxu0
  %v1324 = vadd.f32 0.0, %v1323
  %v1325 = vpop.f32.mrb[0].mxu0
  %1326 = vmatprep.mubr.bf16.mxu0 0
  %1327 = vmatmul.mubr.bf16.gmra.mrb[0].mxu0 %v1167
  %v1328 = vpop.f32.mrb[0].mxu0
  %v1329 = vadd.f32 0.0, %v1328
  %v1330 = vpop.f32.mrb[0].mxu0
  %v1331 = vpop.f32.mrb[0].mxu0
  %v1332 = vadd.f32 0.0, %v1331
  %v1333 = vpop.f32.mrb[0].mxu0
  %1334 = vmatprep.mubr.bf16.mxu0 0
  %1335 = vmatmul.mubr.bf16.gmra.mrb[0].mxu0 %v1168
  %v1336 = vpop.f32.mrb[0].mxu0
  %v1337 = vadd.f32 0.0, %v1336
  %v1338 = vpop.f32.mrb[0].mxu0
  %v1339 = vpop.f32.mrb[0].mxu0
  %v1340 = vadd.f32 0.0, %v1339
  %v1341 = vpop.f32.mrb[0].mxu0
  %1342 = vmatprep.mubr.bf16.mxu0 0
  %1343 = vmatmul.mubr.bf16.gmra.mrb[0].mxu0 %v1169
  %v1344 = vpop.f32.mrb[0].mxu0
  %v1345 = vadd.f32 0.0, %v1344
  %v1346 = vpop.f32.mrb[0].mxu0
  %v1347 = vpop.f32.mrb[0].mxu0
  %v1348 = vadd.f32 0.0, %v1347
  %v1349 = vpop.f32.mrb[0].mxu0
  %1350 = vmatprep.mubr.bf16.mxu0 0
  %1351 = vmatmul.mubr.bf16.gmra.mrb[0].mxu0 %v1170
  %v1352 = vpop.f32.mrb[0].mxu0
  %v1353 = vadd.f32 0.0, %v1352
  %v1354 = vpop.f32.mrb[0].mxu0
  %v1355 = vpop.f32.mrb[0].mxu0
  %v1356 = vadd.f32 0.0, %v1355
  %v1357 = vpop.f32.mrb[0].mxu0
  %1358 = vmatprep.mubr.bf16.mxu0 0
  %1359 = vmatmul.mubr.bf16.gmra.mrb[0].mxu0 %v1171
  %v1360 = vpop.f32.mrb[0].mxu0
  %v1361 = vadd.f32 0.0, %v1360
  %v1362 = vpop.f32.mrb[0].mxu0
  %v1363 = vpop.f32.mrb[0].mxu0
  %v1364 = vadd.f32 0.0, %v1363
  %v1365 = vpop.f32.mrb[0].mxu0
  %1366 = vmatprep.mubr.bf16.mxu0 0
  %1367 = vmatmul.mubr.bf16.gmra.mrb[0].mxu0 %v1172
  %v1368 = vpop.f32.mrb[0].mxu0
  %v1369 = vadd.f32 0.0, %v1368
  %v1370 = vpop.f32.mrb[0].mxu0
  %v1371 = vpop.f32.mrb[0].mxu0
  %v1372 = vadd.f32 0.0, %v1371
  %v1373 = vpop.f32.mrb[0].mxu0
  %1374 = vmatprep.mubr.bf16.mxu0 0
  %1375 = vmatmul.mubr.bf16.gmra.mrb[0].mxu0 %v1173
  %v1376 = vpop.f32.mrb[0].mxu0
  %v1377 = vadd.f32 0.0, %v1376
  %v1378 = vpop.f32.mrb[0].mxu0
  %v1379 = vpop.f32.mrb[0].mxu0
  %v1380 = vadd.f32 0.0, %v1379
  %v1381 = vpop.f32.mrb[0].mxu0
  %1382 = vmatprep.mubr.bf16.mxu0 0
  %1383 = vmatmul.mubr.bf16.gmra.mrb[0].mxu0 %v1174
  %v1384 = vpop.f32.mrb[0].mxu0
  %v1385 = vadd.f32 0.0, %v1384
  %v1386 = vpop.f32.mrb[0].mxu0
  %v1387 = vpop.f32.mrb[0].mxu0
  %v1388 = vadd.f32 0.0, %v1387
  %v1389 = vpop.f32.mrb[0].mxu0
  %1390 = vmatprep.mubr.bf16.mxu0 0
  %1391 = vmatmul.mubr.bf16.gmra.mrb[0].mxu0 %v1175
  %v1392 = vpop.f32.mrb[0].mxu0
  %v1393 = vadd.f32 0.0, %v1392
  %v1394 = vpop.f32.mrb[0].mxu0
  %v1395 = vpop.f32.mrb[0].mxu0
  %v1396 = vadd.f32 0.0, %v1395
  %v1397 = vpop.f32.mrb[0].mxu0
  %1398 = vmatprep.mubr.bf16.mxu0 0
  %1399 = vmatmul.mubr.bf16.gmra.mrb[0].mxu0 %v1176
  %v1400 = vpop.f32.mrb[0].mxu0
  %v1401 = vadd.f32 0.0, %v1400
  %v1402 = vpop.f32.mrb[0].mxu0
  %v1403 = vpop.f32.mrb[0].mxu0
  %v1404 = vadd.f32 0.0, %v1403
  %v1405 = vpop.f32.mrb[0].mxu0
  %1406 = vmatprep.mubr.bf16.mxu0 0
  %1407 = vmatmul.mubr.bf16.gmra.mrb[0].mxu0 %v1177
  %v1408 = vpop.f32.mrb[0].mxu0
  %v1409 = vadd.f32 0.0, %v1408
  %v1410 = vpop.f32.mrb[0].mxu0
  %v1411 = vpop.f32.mrb[0].mxu0
  %v1412 = vadd.f32 0.0, %v1411
  %v1413 = vpop.f32.mrb[0].mxu0
  %1414 = vmatprep.mubr.bf16.mxu0 0
  %1415 = vmatmul.mubr.bf16.gmra.mrb[0].mxu0 %v1178
  %v1416 = vpop.f32.mrb[0].mxu0
  %v1417 = vadd.f32 0.0, %v1416
  %v1418 = vpop.f32.mrb[0].mxu0
  %v1419 = vpop.f32.mrb[0].mxu0
  %v1420 = vadd.f32 0.0, %v1419
  %v1421 = vpop.f32.mrb[0].mxu0
  %1422 = vmatprep.mubr.bf16.mxu0 0
  %1423 = vmatmul.mubr.bf16.gmra.mrb[0].mxu0 %v1179
  %v1424 = vpop.f32.mrb[0].mxu0
  %v1425 = vadd.f32 0.0, %v1424
  %v1426 = vpop.f32.mrb[0].mxu0
  %v1427 = vpop.f32.mrb[0].mxu0
  %v1428 = vadd.f32 0.0, %v1427
  %v1429 = vpop.f32.mrb[0].mxu0
  %1430 = vmatprep.mubr.bf16.mxu0 0
  %1431 = vmatmul.mubr.bf16.gmra.mrb[0].mxu0 %v1180
  %v1432 = vpop.f32.mrb[0].mxu0
  %v1433 = vadd.f32 0.0, %v1432
  %v1434 = vpop.f32.mrb[0].mxu0
  %v1435 = vpop.f32.mrb[0].mxu0
  %v1436 = vadd.f32 0.0, %v1435
  %v1437 = vpop.f32.mrb[0].mxu0
  %1438 = vdwg.mxu0
  %v1439 = vmax.f32 %v956, %v1241
  %v1440 = vmax.f32 %v957, %v1244
  %v1441 = vmax.f32 %v958, %v1249
  %v1442 = vmax.f32 %v959, %v1252
  %v1443 = vmax.f32 %v960, %v1257
  %v1444 = vmax.f32 %v961, %v1260
  %v1445 = vmax.f32 %v962, %v1265
  %v1446 = vmax.f32 %v963, %v1268
  %v1447 = vmax.f32 %v964, %v1273
  %v1448 = vmax.f32 %v965, %v1276
  %v1449 = vmax.f32 %v966, %v1281
  %v1450 = vmax.f32 %v967, %v1284
  %v1451 = vmax.f32 %v968, %v1289
  %v1452 = vmax.f32 %v969, %v1292
  %v1453 = vmax.f32 %v970, %v1297
  %v1454 = vmax.f32 %v971, %v1300
  %v1455 = vmax.f32 %v972, %v1305
  %v1456 = vmax.f32 %v973, %v1308
  %v1457 = vmax.f32 %v974, %v1313
  %v1458 = vmax.f32 %v975, %v1316
  %v1459 = vmax.f32 %v976, %v1321
  %v1460 = vmax.f32 %v977, %v1324
  %v1461 = vmax.f32 %v978, %v1329
  %v1462 = vmax.f32 %v979, %v1332
  %v1463 = vmax.f32 %v980, %v1337
  %v1464 = vmax.f32 %v981, %v1340
  %v1465 = vmax.f32 %v982, %v1345
  %v1466 = vmax.f32 %v983, %v1348
  %v1467 = vmax.f32 %v984, %v1353
  %v1468 = vmax.f32 %v985, %v1356
  %v1469 = vmax.f32 %v986, %v1361
  %v1470 = vmax.f32 %v987, %v1364
  %v1471 = vmax.f32 %v988, %v1369
  %v1472 = vmax.f32 %v989, %v1372
  %v1473 = vmax.f32 %v990, %v1377
  %v1474 = vmax.f32 %v991, %v1380
  %v1475 = vmax.f32 %v992, %v1385
  %v1476 = vmax.f32 %v993, %v1388
  %v1477 = vmax.f32 %v994, %v1393
  %v1478 = vmax.f32 %v995, %v1396
  %v1479 = vmax.f32 %v996, %v1401
  %v1480 = vmax.f32 %v997, %v1404
  %v1481 = vmax.f32 %v998, %v1409
  %v1482 = vmax.f32 %v999, %v1412
  %v1483 = vmax.f32 %v1000, %v1417
  %v1484 = vmax.f32 %v1001, %v1420
  %v1485 = vmax.f32 %v1002, %v1425
  %v1486 = vmax.f32 %v1003, %v1428
  %v1487 = vmax.f32 %v1004, %v1433
  %v1488 = vmax.f32 %v1005, %v1436
  %v1489 = vld [vmem:[%s0 + $0xc] sm:$0xf]
  %v1490 = vld [vmem:[%s0 + $0x1c] sm:$0xf]
  %v1491 = vld [vmem:[%s0 + $0x2c] sm:$0xf]
  %v1492 = vld [vmem:[%s0 + $0x3c] sm:$0xf]
  %v1493 = vld [vmem:[%s0 + $0x4c] sm:$0xf]
  %v1494 = vld [vmem:[%s0 + $0x5c] sm:$0xf]
  %v1495 = vld [vmem:[%s0 + $0x6c] sm:$0xf]
  %v1496 = vld [vmem:[%s0 + $0x7c] sm:$0xf]
  %v1497 = vld [vmem:[%s0 + $0x8c] sm:$0xf]
  %v1498 = vld [vmem:[%s0 + $0x9c] sm:$0xf]
  %v1499 = vld [vmem:[%s0 + $0xac] sm:$0xf]
  %v1500 = vld [vmem:[%s0 + $0xbc] sm:$0xf]
  %v1501 = vld [vmem:[%s0 + $0xcc] sm:$0xf]
  %v1502 = vld [vmem:[%s0 + $0xdc] sm:$0xf]
  %v1503 = vld [vmem:[%s0 + $0xec] sm:$0xf]
  %v1504 = vld [vmem:[%s0 + $0xfc] sm:$0xf]
  %v1505 = vld [vmem:[%s0 + $0x10c] sm:$0xf]
  %v1506 = vld [vmem:[%s0 + $0x11c] sm:$0xf]
  %v1507 = vld [vmem:[%s0 + $0x12c] sm:$0xf]
  %v1508 = vld [vmem:[%s0 + $0x13c] sm:$0xf]
  %v1509 = vld [vmem:[%s0 + $0x14c] sm:$0xf]
  %v1510 = vld [vmem:[%s0 + $0x15c] sm:$0xf]
  %v1511 = vld [vmem:[%s0 + $0x16c] sm:$0xf]
  %v1512 = vld [vmem:[%s0 + $0x17c] sm:$0xf]
  %v1513 = vld [vmem:[%s0 + $0x18c] sm:$0xf]
  %v1514 = vld [vmem:[%s0 + $0x19c] sm:$0xf]
  %v1515 = vld [vmem:[%s0 + $0x1ac] sm:$0xf]
  %v1516 = vld [vmem:[%s0 + $0x1bc] sm:$0xf]
  %v1517 = vld [vmem:[%s0 + $0x1cc] sm:$0xf]
  %v1518 = vld [vmem:[%s0 + $0x1dc] sm:$0xf]
  %v1519 = vld [vmem:[%s0 + $0x1ec] sm:$0xf]
  %v1520 = vld [vmem:[%s0 + $0x1fc] sm:$0xf]
  %v1521 = vld [vmem:[%s0 + $0x20c] sm:$0xf]
  %v1522 = vld [vmem:[%s0 + $0x21c] sm:$0xf]
  %v1523 = vld [vmem:[%s0 + $0x22c] sm:$0xf]
  %v1524 = vld [vmem:[%s0 + $0x23c] sm:$0xf]
  %v1525 = vld [vmem:[%s0 + $0x24c] sm:$0xf]
  %v1526 = vld [vmem:[%s0 + $0x25c] sm:$0xf]
  %v1527 = vld [vmem:[%s0 + $0x26c] sm:$0xf]
  %v1528 = vld [vmem:[%s0 + $0x27c] sm:$0xf]
  %v1529 = vld [vmem:[%s0 + $0x28c] sm:$0xf]
  %v1530 = vld [vmem:[%s0 + $0x29c] sm:$0xf]
  %v1531 = vld [vmem:[%s0 + $0x2ac] sm:$0xf]
  %v1532 = vld [vmem:[%s0 + $0x2bc] sm:$0xf]
  %v1533 = vld [vmem:[%s0 + $0x2cc] sm:$0xf]
  %v1534 = vld [vmem:[%s0 + $0x2dc] sm:$0xf]
  %v1535 = vld [vmem:[%s0 + $0x2ec] sm:$0xf]
  %v1536 = vld [vmem:[%s0 + $0x2fc] sm:$0xf]
  %v1537 = vld [vmem:[%s0 + $0x30c] sm:$0xf]
  %v1538 = vld [vmem:[%s0 + $0x31c] sm:$0xf]
  %v1589 = vunpack.c.l.b16 %v1489
  %v1590 = vunpack.c.l.b16 %v1490
  %v1591 = vunpack.c.l.b16 %v1491
  %v1592 = vunpack.c.l.b16 %v1492
  %v1593 = vunpack.c.l.b16 %v1493
  %v1594 = vunpack.c.l.b16 %v1494
  %v1595 = vunpack.c.l.b16 %v1495
  %v1596 = vunpack.c.l.b16 %v1496
  %v1597 = vunpack.c.l.b16 %v1497
  %v1598 = vunpack.c.l.b16 %v1498
  %v1599 = vunpack.c.l.b16 %v1499
  %v1600 = vunpack.c.l.b16 %v1500
  %v1601 = vunpack.c.l.b16 %v1501
  %v1602 = vunpack.c.l.b16 %v1502
  %v1603 = vunpack.c.l.b16 %v1503
  %v1604 = vunpack.c.l.b16 %v1504
  %v1605 = vunpack.c.l.b16 %v1505
  %v1606 = vunpack.c.l.b16 %v1506
  %v1607 = vunpack.c.l.b16 %v1507
  %v1608 = vunpack.c.l.b16 %v1508
  %v1609 = vunpack.c.l.b16 %v1509
  %v1610 = vunpack.c.l.b16 %v1510
  %v1611 = vunpack.c.l.b16 %v1511
  %v1612 = vunpack.c.l.b16 %v1512
  %v1613 = vunpack.c.l.b16 %v1513
  %v1614 = vunpack.c.l.b16 %v1514
  %v1615 = vunpack.c.l.b16 %v1515
  %v1616 = vunpack.c.l.b16 %v1516
  %v1617 = vunpack.c.l.b16 %v1517
  %v1618 = vunpack.c.l.b16 %v1518
  %v1619 = vunpack.c.l.b16 %v1519
  %v1620 = vunpack.c.l.b16 %v1520
  %v1621 = vunpack.c.l.b16 %v1521
  %v1622 = vunpack.c.l.b16 %v1522
  %v1623 = vunpack.c.l.b16 %v1523
  %v1624 = vunpack.c.l.b16 %v1524
  %v1625 = vunpack.c.l.b16 %v1525
  %v1626 = vunpack.c.l.b16 %v1526
  %v1627 = vunpack.c.l.b16 %v1527
  %v1628 = vunpack.c.l.b16 %v1528
  %v1629 = vunpack.c.l.b16 %v1529
  %v1630 = vunpack.c.l.b16 %v1530
  %v1631 = vunpack.c.l.b16 %v1531
  %v1632 = vunpack.c.l.b16 %v1532
  %v1633 = vunpack.c.l.b16 %v1533
  %v1634 = vunpack.c.l.b16 %v1534
  %v1635 = vunpack.c.l.b16 %v1535
  %v1636 = vunpack.c.l.b16 %v1536
  %v1637 = vunpack.c.l.b16 %v1537
  %v1638 = vunpack.c.l.b16 %v1538
  %v1639 = vpack.c.b16 %v1590, %v1589
  %v1640 = vpack.c.b16 %v1592, %v1591
  %v1641 = vpack.c.b16 %v1594, %v1593
  %v1642 = vpack.c.b16 %v1596, %v1595
  %v1643 = vpack.c.b16 %v1598, %v1597
  %v1644 = vpack.c.b16 %v1600, %v1599
  %v1645 = vpack.c.b16 %v1602, %v1601
  %v1646 = vpack.c.b16 %v1604, %v1603
  %v1647 = vpack.c.b16 %v1606, %v1605
  %v1648 = vpack.c.b16 %v1608, %v1607
  %v1649 = vpack.c.b16 %v1610, %v1609
  %v1650 = vpack.c.b16 %v1612, %v1611
  %v1651 = vpack.c.b16 %v1614, %v1613
  %v1652 = vpack.c.b16 %v1616, %v1615
  %v1653 = vpack.c.b16 %v1618, %v1617
  %v1654 = vpack.c.b16 %v1620, %v1619
  %v1655 = vpack.c.b16 %v1622, %v1621
  %v1656 = vpack.c.b16 %v1624, %v1623
  %v1657 = vpack.c.b16 %v1626, %v1625
  %v1658 = vpack.c.b16 %v1628, %v1627
  %v1659 = vpack.c.b16 %v1630, %v1629
  %v1660 = vpack.c.b16 %v1632, %v1631
  %v1661 = vpack.c.b16 %v1634, %v1633
  %v1662 = vpack.c.b16 %v1636, %v1635
  %v1663 = vpack.c.b16 %v1638, %v1637
  %1689 = vmatprep.subr.bf16.mxu0 0
  %1690 = vmatpush1.bf16.msra.mxu0 %v274
  %1691 = vmatprep.subr.bf16.mxu0 0
  %1692 = vmatpush1.bf16.msra.mxu0 %v275
  %1693 = vmatprep.subr.bf16.mxu0 0
  %1694 = vmatpush1.bf16.msra.mxu0 %v276
  %1695 = vmatprep.subr.bf16.mxu0 0
  %1696 = vmatpush1.bf16.msra.mxu0 %v277
  %1697 = vmatprep.subr.bf16.mxu0 0
  %1698 = vmatpush1.bf16.msra.mxu0 %v278
  %1699 = vmatprep.subr.bf16.mxu0 0
  %1700 = vmatpush1.bf16.msra.mxu0 %v279
  %1701 = vmatprep.subr.bf16.mxu0 0
  %1702 = vmatpush1.bf16.msra.mxu0 %v280
  %1703 = vmatprep.subr.bf16.mxu0 0
  %1704 = vmatpush1.bf16.msra.mxu0 %v281
  %1705 = vmatprep.subr.bf16.mxu0 0
  %1706 = vmatpush1.bf16.msra.mxu0 0
  %1707 = vmatprep.subr.bf16.mxu0 0
  %1708 = vmatpush1.bf16.msra.mxu0 0
  %1709 = vmatprep.subr.bf16.mxu0 0
  %1710 = vmatpush1.bf16.msra.mxu0 0
  %1711 = vmatprep.subr.bf16.mxu0 0
  %1712 = vmatpush1.bf16.msra.mxu0 0
  %1713 = vmatprep.subr.bf16.mxu0 0
  %1714 = vmatpush1.bf16.msra.mxu0 0
  %1715 = vmatprep.subr.bf16.mxu0 0
  %1716 = vmatpush1.bf16.msra.mxu0 0
  %1717 = vmatprep.subr.bf16.mxu0 0
  %1718 = vmatpush1.bf16.msra.mxu0 0
  %1719 = vmatprep.subr.bf16.mxu0 0
  %1720 = vmatpush1.bf16.msra.mxu0 0
  %1721 = vmatprep.mubr.bf16.mxu0 0
  %1722 = vmatmul.mubr.bf16.gmra.mrb[0].mxu0 %v1639
  %v1723 = vpop.f32.mrb[0].mxu0
  %v1724 = vadd.f32 0.0, %v1723
  %v1725 = vpop.f32.mrb[0].mxu0
  %v1726 = vpop.f32.mrb[0].mxu0
  %v1727 = vadd.f32 0.0, %v1726
  %v1728 = vpop.f32.mrb[0].mxu0
  %1729 = vmatprep.mubr.bf16.mxu0 0
  %1730 = vmatmul.mubr.bf16.gmra.mrb[0].mxu0 %v1640
  %v1731 = vpop.f32.mrb[0].mxu0
  %v1732 = vadd.f32 0.0, %v1731
  %v1733 = vpop.f32.mrb[0].mxu0
  %v1734 = vpop.f32.mrb[0].mxu0
  %v1735 = vadd.f32 0.0, %v1734
  %v1736 = vpop.f32.mrb[0].mxu0
  %1737 = vmatprep.mubr.bf16.mxu0 0
  %1738 = vmatmul.mubr.bf16.gmra.mrb[0].mxu0 %v1641
  %v1739 = vpop.f32.mrb[0].mxu0
  %v1740 = vadd.f32 0.0, %v1739
  %v1741 = vpop.f32.mrb[0].mxu0
  %v1742 = vpop.f32.mrb[0].mxu0
  %v1743 = vadd.f32 0.0, %v1742
  %v1744 = vpop.f32.mrb[0].mxu0
  %1745 = vmatprep.mubr.bf16.mxu0 0
  %1746 = vmatmul.mubr.bf16.gmra.mrb[0].mxu0 %v1642
  %v1747 = vpop.f32.mrb[0].mxu0
  %v1748 = vadd.f32 0.0, %v1747
  %v1749 = vpop.f32.mrb[0].mxu0
  %v1750 = vpop.f32.mrb[0].mxu0
  %v1751 = vadd.f32 0.0, %v1750
  %v1752 = vpop.f32.mrb[0].mxu0
  %1753 = vmatprep.mubr.bf16.mxu0 0
  %1754 = vmatmul.mubr.bf16.gmra.mrb[0].mxu0 %v1643
  %v1755 = vpop.f32.mrb[0].mxu0
  %v1756 = vadd.f32 0.0, %v1755
  %v1757 = vpop.f32.mrb[0].mxu0
  %v1758 = vpop.f32.mrb[0].mxu0
  %v1759 = vadd.f32 0.0, %v1758
  %v1760 = vpop.f32.mrb[0].mxu0
  %1761 = vmatprep.mubr.bf16.mxu0 0
  %1762 = vmatmul.mubr.bf16.gmra.mrb[0].mxu0 %v1644
  %v1763 = vpop.f32.mrb[0].mxu0
  %v1764 = vadd.f32 0.0, %v1763
  %v1765 = vpop.f32.mrb[0].mxu0
  %v1766 = vpop.f32.mrb[0].mxu0
  %v1767 = vadd.f32 0.0, %v1766
  %v1768 = vpop.f32.mrb[0].mxu0
  %1769 = vmatprep.mubr.bf16.mxu0 0
  %1770 = vmatmul.mubr.bf16.gmra.mrb[0].mxu0 %v1645
  %v1771 = vpop.f32.mrb[0].mxu0
  %v1772 = vadd.f32 0.0, %v1771
  %v1773 = vpop.f32.mrb[0].mxu0
  %v1774 = vpop.f32.mrb[0].mxu0
  %v1775 = vadd.f32 0.0, %v1774
  %v1776 = vpop.f32.mrb[0].mxu0
  %1777 = vmatprep.mubr.bf16.mxu0 0
  %1778 = vmatmul.mubr.bf16.gmra.mrb[0].mxu0 %v1646
  %v1779 = vpop.f32.mrb[0].mxu0
  %v1780 = vadd.f32 0.0, %v1779
  %v1781 = vpop.f32.mrb[0].mxu0
  %v1782 = vpop.f32.mrb[0].mxu0
  %v1783 = vadd.f32 0.0, %v1782
  %v1784 = vpop.f32.mrb[0].mxu0
  %1785 = vmatprep.mubr.bf16.mxu0 0
  %1786 = vmatmul.mubr.bf16.gmra.mrb[0].mxu0 %v1647
  %v1787 = vpop.f32.mrb[0].mxu0
  %v1788 = vadd.f32 0.0, %v1787
  %v1789 = vpop.f32.mrb[0].mxu0
  %v1790 = vpop.f32.mrb[0].mxu0
  %v1791 = vadd.f32 0.0, %v1790
  %v1792 = vpop.f32.mrb[0].mxu0
  %1793 = vmatprep.mubr.bf16.mxu0 0
  %1794 = vmatmul.mubr.bf16.gmra.mrb[0].mxu0 %v1648
  %v1795 = vpop.f32.mrb[0].mxu0
  %v1796 = vadd.f32 0.0, %v1795
  %v1797 = vpop.f32.mrb[0].mxu0
  %v1798 = vpop.f32.mrb[0].mxu0
  %v1799 = vadd.f32 0.0, %v1798
  %v1800 = vpop.f32.mrb[0].mxu0
  %1801 = vmatprep.mubr.bf16.mxu0 0
  %1802 = vmatmul.mubr.bf16.gmra.mrb[0].mxu0 %v1649
  %v1803 = vpop.f32.mrb[0].mxu0
  %v1804 = vadd.f32 0.0, %v1803
  %v1805 = vpop.f32.mrb[0].mxu0
  %v1806 = vpop.f32.mrb[0].mxu0
  %v1807 = vadd.f32 0.0, %v1806
  %v1808 = vpop.f32.mrb[0].mxu0
  %1809 = vmatprep.mubr.bf16.mxu0 0
  %1810 = vmatmul.mubr.bf16.gmra.mrb[0].mxu0 %v1650
  %v1811 = vpop.f32.mrb[0].mxu0
  %v1812 = vadd.f32 0.0, %v1811
  %v1813 = vpop.f32.mrb[0].mxu0
  %v1814 = vpop.f32.mrb[0].mxu0
  %v1815 = vadd.f32 0.0, %v1814
  %v1816 = vpop.f32.mrb[0].mxu0
  %1817 = vmatprep.mubr.bf16.mxu0 0
  %1818 = vmatmul.mubr.bf16.gmra.mrb[0].mxu0 %v1651
  %v1819 = vpop.f32.mrb[0].mxu0
  %v1820 = vadd.f32 0.0, %v1819
  %v1821 = vpop.f32.mrb[0].mxu0
  %v1822 = vpop.f32.mrb[0].mxu0
  %v1823 = vadd.f32 0.0, %v1822
  %v1824 = vpop.f32.mrb[0].mxu0
  %1825 = vmatprep.mubr.bf16.mxu0 0
  %1826 = vmatmul.mubr.bf16.gmra.mrb[0].mxu0 %v1652
  %v1827 = vpop.f32.mrb[0].mxu0
  %v1828 = vadd.f32 0.0, %v1827
  %v1829 = vpop.f32.mrb[0].mxu0
  %v1830 = vpop.f32.mrb[0].mxu0
  %v1831 = vadd.f32 0.0, %v1830
  %v1832 = vpop.f32.mrb[0].mxu0
  %1833 = vmatprep.mubr.bf16.mxu0 0
  %1834 = vmatmul.mubr.bf16.gmra.mrb[0].mxu0 %v1653
  %v1835 = vpop.f32.mrb[0].mxu0
  %v1836 = vadd.f32 0.0, %v1835
  %v1837 = vpop.f32.mrb[0].mxu0
  %v1838 = vpop.f32.mrb[0].mxu0
  %v1839 = vadd.f32 0.0, %v1838
  %v1840 = vpop.f32.mrb[0].mxu0
  %1841 = vmatprep.mubr.bf16.mxu0 0
  %1842 = vmatmul.mubr.bf16.gmra.mrb[0].mxu0 %v1654
  %v1843 = vpop.f32.mrb[0].mxu0
  %v1844 = vadd.f32 0.0, %v1843
  %v1845 = vpop.f32.mrb[0].mxu0
  %v1846 = vpop.f32.mrb[0].mxu0
  %v1847 = vadd.f32 0.0, %v1846
  %v1848 = vpop.f32.mrb[0].mxu0
  %1849 = vmatprep.mubr.bf16.mxu0 0
  %1850 = vmatmul.mubr.bf16.gmra.mrb[0].mxu0 %v1655
  %v1851 = vpop.f32.mrb[0].mxu0
  %v1852 = vadd.f32 0.0, %v1851
  %v1853 = vpop.f32.mrb[0].mxu0
  %v1854 = vpop.f32.mrb[0].mxu0
  %v1855 = vadd.f32 0.0, %v1854
  %v1856 = vpop.f32.mrb[0].mxu0
  %1857 = vmatprep.mubr.bf16.mxu0 0
  %1858 = vmatmul.mubr.bf16.gmra.mrb[0].mxu0 %v1656
  %v1859 = vpop.f32.mrb[0].mxu0
  %v1860 = vadd.f32 0.0, %v1859
  %v1861 = vpop.f32.mrb[0].mxu0
  %v1862 = vpop.f32.mrb[0].mxu0
  %v1863 = vadd.f32 0.0, %v1862
  %v1864 = vpop.f32.mrb[0].mxu0
  %1865 = vmatprep.mubr.bf16.mxu0 0
  %1866 = vmatmul.mubr.bf16.gmra.mrb[0].mxu0 %v1657
  %v1867 = vpop.f32.mrb[0].mxu0
  %v1868 = vadd.f32 0.0, %v1867
  %v1869 = vpop.f32.mrb[0].mxu0
  %v1870 = vpop.f32.mrb[0].mxu0
  %v1871 = vadd.f32 0.0, %v1870
  %v1872 = vpop.f32.mrb[0].mxu0
  %1873 = vmatprep.mubr.bf16.mxu0 0
  %1874 = vmatmul.mubr.bf16.gmra.mrb[0].mxu0 %v1658
  %v1875 = vpop.f32.mrb[0].mxu0
  %v1876 = vadd.f32 0.0, %v1875
  %v1877 = vpop.f32.mrb[0].mxu0
  %v1878 = vpop.f32.mrb[0].mxu0
  %v1879 = vadd.f32 0.0, %v1878
  %v1880 = vpop.f32.mrb[0].mxu0
  %1881 = vmatprep.mubr.bf16.mxu0 0
  %1882 = vmatmul.mubr.bf16.gmra.mrb[0].mxu0 %v1659
  %v1883 = vpop.f32.mrb[0].mxu0
  %v1884 = vadd.f32 0.0, %v1883
  %v1885 = vpop.f32.mrb[0].mxu0
  %v1886 = vpop.f32.mrb[0].mxu0
  %v1887 = vadd.f32 0.0, %v1886
  %v1888 = vpop.f32.mrb[0].mxu0
  %1889 = vmatprep.mubr.bf16.mxu0 0
  %1890 = vmatmul.mubr.bf16.gmra.mrb[0].mxu0 %v1660
  %v1891 = vpop.f32.mrb[0].mxu0
  %v1892 = vadd.f32 0.0, %v1891
  %v1893 = vpop.f32.mrb[0].mxu0
  %v1894 = vpop.f32.mrb[0].mxu0
  %v1895 = vadd.f32 0.0, %v1894
  %v1896 = vpop.f32.mrb[0].mxu0
  %1897 = vmatprep.mubr.bf16.mxu0 0
  %1898 = vmatmul.mubr.bf16.gmra.mrb[0].mxu0 %v1661
  %v1899 = vpop.f32.mrb[0].mxu0
  %v1900 = vadd.f32 0.0, %v1899
  %v1901 = vpop.f32.mrb[0].mxu0
  %v1902 = vpop.f32.mrb[0].mxu0
  %v1903 = vadd.f32 0.0, %v1902
  %v1904 = vpop.f32.mrb[0].mxu0
  %1905 = vmatprep.mubr.bf16.mxu0 0
  %1906 = vmatmul.mubr.bf16.gmra.mrb[0].mxu0 %v1662
  %v1907 = vpop.f32.mrb[0].mxu0
  %v1908 = vadd.f32 0.0, %v1907
  %v1909 = vpop.f32.mrb[0].mxu0
  %v1910 = vpop.f32.mrb[0].mxu0
  %v1911 = vadd.f32 0.0, %v1910
  %v1912 = vpop.f32.mrb[0].mxu0
  %1913 = vmatprep.mubr.bf16.mxu0 0
  %1914 = vmatmul.mubr.bf16.gmra.mrb[0].mxu0 %v1663
  %v1915 = vpop.f32.mrb[0].mxu0
  %v1916 = vadd.f32 0.0, %v1915
  %v1917 = vpop.f32.mrb[0].mxu0
  %v1918 = vpop.f32.mrb[0].mxu0
  %v1919 = vadd.f32 0.0, %v1918
  %v1920 = vpop.f32.mrb[0].mxu0
  %1921 = vdwg.mxu0
  %v1922 = vmax.f32 %v1439, %v1724
  %v1923 = vmax.f32 %v1440, %v1727
  %v1924 = vmax.f32 %v1441, %v1732
  %v1925 = vmax.f32 %v1442, %v1735
  %v1926 = vmax.f32 %v1443, %v1740
  %v1927 = vmax.f32 %v1444, %v1743
  %v1928 = vmax.f32 %v1445, %v1748
  %v1929 = vmax.f32 %v1446, %v1751
  %v1930 = vmax.f32 %v1447, %v1756
  %v1931 = vmax.f32 %v1448, %v1759
  %v1932 = vmax.f32 %v1449, %v1764
  %v1933 = vmax.f32 %v1450, %v1767
  %v1934 = vmax.f32 %v1451, %v1772
  %v1935 = vmax.f32 %v1452, %v1775
  %v1936 = vmax.f32 %v1453, %v1780
  %v1937 = vmax.f32 %v1454, %v1783
  %v1938 = vmax.f32 %v1455, %v1788
  %v1939 = vmax.f32 %v1456, %v1791
  %v1940 = vmax.f32 %v1457, %v1796
  %v1941 = vmax.f32 %v1458, %v1799
  %v1942 = vmax.f32 %v1459, %v1804
  %v1943 = vmax.f32 %v1460, %v1807
  %v1944 = vmax.f32 %v1461, %v1812
  %v1945 = vmax.f32 %v1462, %v1815
  %v1946 = vmax.f32 %v1463, %v1820
  %v1947 = vmax.f32 %v1464, %v1823
  %v1948 = vmax.f32 %v1465, %v1828
  %v1949 = vmax.f32 %v1466, %v1831
  %v1950 = vmax.f32 %v1467, %v1836
  %v1951 = vmax.f32 %v1468, %v1839
  %v1952 = vmax.f32 %v1469, %v1844
  %v1953 = vmax.f32 %v1470, %v1847
  %v1954 = vmax.f32 %v1471, %v1852
  %v1955 = vmax.f32 %v1472, %v1855
  %v1956 = vmax.f32 %v1473, %v1860
  %v1957 = vmax.f32 %v1474, %v1863
  %v1958 = vmax.f32 %v1475, %v1868
  %v1959 = vmax.f32 %v1476, %v1871
  %v1960 = vmax.f32 %v1477, %v1876
  %v1961 = vmax.f32 %v1478, %v1879
  %v1962 = vmax.f32 %v1479, %v1884
  %v1963 = vmax.f32 %v1480, %v1887
  %v1964 = vmax.f32 %v1481, %v1892
  %v1965 = vmax.f32 %v1482, %v1895
  %v1966 = vmax.f32 %v1483, %v1900
  %v1967 = vmax.f32 %v1484, %v1903
  %v1968 = vmax.f32 %v1485, %v1908
  %v1969 = vmax.f32 %v1486, %v1911
  %v1970 = vmax.f32 %v1487, %v1916
  %v1971 = vmax.f32 %v1488, %v1919
  %v1972 = vld [vmem:[%s3] sm:$0x1]
  %v1974 = vlaneseq
  %v1975 = vshrl.u32 %v1974, 7
  %v1976 = vsub.s32 0, %v1975
  %v1977 = vrot.slane %v1972, %v1976
  %v1979 = vadd.f32 %v1922, %v1977
  %v1980 = vadd.f32 %v1923, %v1977
  %v1981 = vadd.f32 %v1924, %v1977
  %v1982 = vadd.f32 %v1925, %v1977
  %v1983 = vadd.f32 %v1926, %v1977
  %v1984 = vadd.f32 %v1927, %v1977
  %v1985 = vadd.f32 %v1928, %v1977
  %v1986 = vadd.f32 %v1929, %v1977
  %v1987 = vadd.f32 %v1930, %v1977
  %v1988 = vadd.f32 %v1931, %v1977
  %v1989 = vadd.f32 %v1932, %v1977
  %v1990 = vadd.f32 %v1933, %v1977
  %v1991 = vadd.f32 %v1934, %v1977
  %v1992 = vadd.f32 %v1935, %v1977
  %v1993 = vadd.f32 %v1936, %v1977
  %v1994 = vadd.f32 %v1937, %v1977
  %v1995 = vadd.f32 %v1938, %v1977
  %v1996 = vadd.f32 %v1939, %v1977
  %v1997 = vadd.f32 %v1940, %v1977
  %v1998 = vadd.f32 %v1941, %v1977
  %v1999 = vadd.f32 %v1942, %v1977
  %v2000 = vadd.f32 %v1943, %v1977
  %v2001 = vadd.f32 %v1944, %v1977
  %v2002 = vadd.f32 %v1945, %v1977
  %v2003 = vadd.f32 %v1946, %v1977
  %v2004 = vadd.f32 %v1947, %v1977
  %v2005 = vadd.f32 %v1948, %v1977
  %v2006 = vadd.f32 %v1949, %v1977
  %v2007 = vadd.f32 %v1950, %v1977
  %v2008 = vadd.f32 %v1951, %v1977
  %v2009 = vadd.f32 %v1952, %v1977
  %v2010 = vadd.f32 %v1953, %v1977
  %v2011 = vadd.f32 %v1954, %v1977
  %v2012 = vadd.f32 %v1955, %v1977
  %v2013 = vadd.f32 %v1956, %v1977
  %v2014 = vadd.f32 %v1957, %v1977
  %v2015 = vadd.f32 %v1958, %v1977
  %v2016 = vadd.f32 %v1959, %v1977
  %v2017 = vadd.f32 %v1960, %v1977
  %v2018 = vadd.f32 %v1961, %v1977
  %v2019 = vadd.f32 %v1962, %v1977
  %v2020 = vadd.f32 %v1963, %v1977
  %v2021 = vadd.f32 %v1964, %v1977
  %v2022 = vadd.f32 %v1965, %v1977
  %v2023 = vadd.f32 %v1966, %v1977
  %v2024 = vadd.f32 %v1967, %v1977
  %v2025 = vadd.f32 %v1968, %v1977
  %v2026 = vadd.f32 %v1969, %v1977
  %v2027 = vadd.f32 %v1970, %v1977
  %v2028 = vadd.f32 %v1971, %v1977
  %v2029 = vmax.f32 %v1979, 0.0
  %v2030 = vmax.f32 %v1980, 0.0
  %v2031 = vmax.f32 %v1981, 0.0
  %v2032 = vmax.f32 %v1982, 0.0
  %v2033 = vmax.f32 %v1983, 0.0
  %v2034 = vmax.f32 %v1984, 0.0
  %v2035 = vmax.f32 %v1985, 0.0
  %v2036 = vmax.f32 %v1986, 0.0
  %v2037 = vmax.f32 %v1987, 0.0
  %v2038 = vmax.f32 %v1988, 0.0
  %v2039 = vmax.f32 %v1989, 0.0
  %v2040 = vmax.f32 %v1990, 0.0
  %v2041 = vmax.f32 %v1991, 0.0
  %v2042 = vmax.f32 %v1992, 0.0
  %v2043 = vmax.f32 %v1993, 0.0
  %v2044 = vmax.f32 %v1994, 0.0
  %v2045 = vmax.f32 %v1995, 0.0
  %v2046 = vmax.f32 %v1996, 0.0
  %v2047 = vmax.f32 %v1997, 0.0
  %v2048 = vmax.f32 %v1998, 0.0
  %v2049 = vmax.f32 %v1999, 0.0
  %v2050 = vmax.f32 %v2000, 0.0
  %v2051 = vmax.f32 %v2001, 0.0
  %v2052 = vmax.f32 %v2002, 0.0
  %v2053 = vmax.f32 %v2003, 0.0
  %v2054 = vmax.f32 %v2004, 0.0
  %v2055 = vmax.f32 %v2005, 0.0
  %v2056 = vmax.f32 %v2006, 0.0
  %v2057 = vmax.f32 %v2007, 0.0
  %v2058 = vmax.f32 %v2008, 0.0
  %v2059 = vmax.f32 %v2009, 0.0
  %v2060 = vmax.f32 %v2010, 0.0
  %v2061 = vmax.f32 %v2011, 0.0
  %v2062 = vmax.f32 %v2012, 0.0
  %v2063 = vmax.f32 %v2013, 0.0
  %v2064 = vmax.f32 %v2014, 0.0
  %v2065 = vmax.f32 %v2015, 0.0
  %v2066 = vmax.f32 %v2016, 0.0
  %v2067 = vmax.f32 %v2017, 0.0
  %v2068 = vmax.f32 %v2018, 0.0
  %v2069 = vmax.f32 %v2019, 0.0
  %v2070 = vmax.f32 %v2020, 0.0
  %v2071 = vmax.f32 %v2021, 0.0
  %v2072 = vmax.f32 %v2022, 0.0
  %v2073 = vmax.f32 %v2023, 0.0
  %v2074 = vmax.f32 %v2024, 0.0
  %v2075 = vmax.f32 %v2025, 0.0
  %v2076 = vmax.f32 %v2026, 0.0
  %v2077 = vmax.f32 %v2027, 0.0
  %v2078 = vmax.f32 %v2028, 0.0
  %2079 = vst [vmem:[%s6] sm:$0xff] %v2029
  %2080 = vst [vmem:[%s6 + $0x8] sm:$0xff] %v2030
  %2081 = vst [vmem:[%s6 + $0x10] sm:$0xff] %v2031
  %2082 = vst [vmem:[%s6 + $0x18] sm:$0xff] %v2032
  %2083 = vst [vmem:[%s6 + $0x20] sm:$0xff] %v2033
  %2084 = vst [vmem:[%s6 + $0x28] sm:$0xff] %v2034
  %2085 = vst [vmem:[%s6 + $0x30] sm:$0xff] %v2035
  %2086 = vst [vmem:[%s6 + $0x38] sm:$0xff] %v2036
  %2087 = vst [vmem:[%s6 + $0x40] sm:$0xff] %v2037
  %2088 = vst [vmem:[%s6 + $0x48] sm:$0xff] %v2038
  %2089 = vst [vmem:[%s6 + $0x50] sm:$0xff] %v2039
  %2090 = vst [vmem:[%s6 + $0x58] sm:$0xff] %v2040
  %2091 = vst [vmem:[%s6 + $0x60] sm:$0xff] %v2041
  %2092 = vst [vmem:[%s6 + $0x68] sm:$0xff] %v2042
  %2093 = vst [vmem:[%s6 + $0x70] sm:$0xff] %v2043
  %2094 = vst [vmem:[%s6 + $0x78] sm:$0xff] %v2044
  %2095 = vst [vmem:[%s6 + $0x80] sm:$0xff] %v2045
  %2096 = vst [vmem:[%s6 + $0x88] sm:$0xff] %v2046
  %2097 = vst [vmem:[%s6 + $0x90] sm:$0xff] %v2047
  %2098 = vst [vmem:[%s6 + $0x98] sm:$0xff] %v2048
  %2099 = vst [vmem:[%s6 + $0xa0] sm:$0xff] %v2049
  %2100 = vst [vmem:[%s6 + $0xa8] sm:$0xff] %v2050
  %2101 = vst [vmem:[%s6 + $0xb0] sm:$0xff] %v2051
  %2102 = vst [vmem:[%s6 + $0xb8] sm:$0xff] %v2052
  %2103 = vst [vmem:[%s6 + $0xc0] sm:$0xff] %v2053
  %2104 = vst [vmem:[%s6 + $0xc8] sm:$0xff] %v2054
  %2105 = vst [vmem:[%s6 + $0xd0] sm:$0xff] %v2055
  %2106 = vst [vmem:[%s6 + $0xd8] sm:$0xff] %v2056
  %2107 = vst [vmem:[%s6 + $0xe0] sm:$0xff] %v2057
  %2108 = vst [vmem:[%s6 + $0xe8] sm:$0xff] %v2058
  %2109 = vst [vmem:[%s6 + $0xf0] sm:$0xff] %v2059
  %2110 = vst [vmem:[%s6 + $0xf8] sm:$0xff] %v2060
  %2111 = vst [vmem:[%s6 + $0x100] sm:$0xff] %v2061
  %2112 = vst [vmem:[%s6 + $0x108] sm:$0xff] %v2062
  %2113 = vst [vmem:[%s6 + $0x110] sm:$0xff] %v2063
  %2114 = vst [vmem:[%s6 + $0x118] sm:$0xff] %v2064
  %2115 = vst [vmem:[%s6 + $0x120] sm:$0xff] %v2065
  %2116 = vst [vmem:[%s6 + $0x128] sm:$0xff] %v2066
  %2117 = vst [vmem:[%s6 + $0x130] sm:$0xff] %v2067
  %2118 = vst [vmem:[%s6 + $0x138] sm:$0xff] %v2068
  %2119 = vst [vmem:[%s6 + $0x140] sm:$0xff] %v2069
  %2120 = vst [vmem:[%s6 + $0x148] sm:$0xff] %v2070
  %2121 = vst [vmem:[%s6 + $0x150] sm:$0xff] %v2071
  %2122 = vst [vmem:[%s6 + $0x158] sm:$0xff] %v2072
  %2123 = vst [vmem:[%s6 + $0x160] sm:$0xff] %v2073
  %2124 = vst [vmem:[%s6 + $0x168] sm:$0xff] %v2074
  %2125 = vst [vmem:[%s6 + $0x170] sm:$0xff] %v2075
  %2126 = vst [vmem:[%s6 + $0x178] sm:$0xff] %v2076
  %2127 = vst [vmem:[%s6 + $0x180] sm:$0xff] %v2077
  %2128 = vst [vmem:[%s6 + $0x188] sm:$0xff] %v2078
  %v2129 = vld [vmem:[%s4] sm:$0xf]
  %v2130 = vld [vmem:[%s4 + $0x4] sm:$0xf]
  %v2131 = vld [vmem:[%s4 + $0x8] sm:$0xf]
  %v2132 = vld [vmem:[%s4 + $0xc] sm:$0xf]
  %v2133 = vld [vmem:[%s4 + $0x10] sm:$0xf]
  %v2134 = vld [vmem:[%s4 + $0x14] sm:$0xf]
  %v2135 = vld [vmem:[%s4 + $0x18] sm:$0xf]
  %v2136 = vld [vmem:[%s4 + $0x1c] sm:$0xf]
  %v2137 = vld [vmem:[%s4 + $0x20] sm:$0xf]
  %v2138 = vld [vmem:[%s4 + $0x24] sm:$0xf]
  %v2139 = vld [vmem:[%s4 + $0x28] sm:$0xf]
  %v2140 = vld [vmem:[%s4 + $0x2c] sm:$0xf]
  %v2141 = vld [vmem:[%s4 + $0x30] sm:$0xf]
  %v2142 = vld [vmem:[%s4 + $0x34] sm:$0xf]
  %v2143 = vld [vmem:[%s4 + $0x38] sm:$0xf]
  %v2144 = vld [vmem:[%s4 + $0x3c] sm:$0xf]
  %v2145 = vld [vmem:[%s1] sm:$0xf]
  %v2146 = vld [vmem:[%s1 + $0x10] sm:$0xf]
  %v2147 = vld [vmem:[%s1 + $0x20] sm:$0xf]
  %v2148 = vld [vmem:[%s1 + $0x30] sm:$0xf]
  %v2149 = vld [vmem:[%s1 + $0x40] sm:$0xf]
  %v2150 = vld [vmem:[%s1 + $0x50] sm:$0xf]
  %v2151 = vld [vmem:[%s1 + $0x60] sm:$0xf]
  %v2152 = vld [vmem:[%s1 + $0x70] sm:$0xf]
  %v2153 = vld [vmem:[%s1 + $0x80] sm:$0xf]
  %v2154 = vld [vmem:[%s1 + $0x90] sm:$0xf]
  %v2155 = vld [vmem:[%s1 + $0xa0] sm:$0xf]
  %v2156 = vld [vmem:[%s1 + $0xb0] sm:$0xf]
  %v2157 = vld [vmem:[%s1 + $0xc0] sm:$0xf]
  %v2158 = vld [vmem:[%s1 + $0xd0] sm:$0xf]
  %v2159 = vld [vmem:[%s1 + $0xe0] sm:$0xf]
  %v2160 = vld [vmem:[%s1 + $0xf0] sm:$0xf]
  %v2161 = vld [vmem:[%s1 + $0x100] sm:$0xf]
  %v2162 = vld [vmem:[%s1 + $0x110] sm:$0xf]
  %v2163 = vld [vmem:[%s1 + $0x120] sm:$0xf]
  %v2164 = vld [vmem:[%s1 + $0x130] sm:$0xf]
  %v2165 = vld [vmem:[%s1 + $0x140] sm:$0xf]
  %v2166 = vld [vmem:[%s1 + $0x150] sm:$0xf]
  %v2167 = vld [vmem:[%s1 + $0x160] sm:$0xf]
  %v2168 = vld [vmem:[%s1 + $0x170] sm:$0xf]
  %v2169 = vld [vmem:[%s1 + $0x180] sm:$0xf]
  %v2170 = vld [vmem:[%s1 + $0x190] sm:$0xf]
  %v2171 = vld [vmem:[%s1 + $0x1a0] sm:$0xf]
  %v2172 = vld [vmem:[%s1 + $0x1b0] sm:$0xf]
  %v2173 = vld [vmem:[%s1 + $0x1c0] sm:$0xf]
  %v2174 = vld [vmem:[%s1 + $0x1d0] sm:$0xf]
  %v2175 = vld [vmem:[%s1 + $0x1e0] sm:$0xf]
  %v2176 = vld [vmem:[%s1 + $0x1f0] sm:$0xf]
  %v2177 = vld [vmem:[%s1 + $0x200] sm:$0xf]
  %v2178 = vld [vmem:[%s1 + $0x210] sm:$0xf]
  %v2179 = vld [vmem:[%s1 + $0x220] sm:$0xf]
  %v2180 = vld [vmem:[%s1 + $0x230] sm:$0xf]
  %v2181 = vld [vmem:[%s1 + $0x240] sm:$0xf]
  %v2182 = vld [vmem:[%s1 + $0x250] sm:$0xf]
  %v2221 = vunpack.c.l.b16 %v2145
  %v2222 = vunpack.c.l.b16 %v2146
  %v2223 = vunpack.c.l.b16 %v2147
  %v2224 = vunpack.c.l.b16 %v2148
  %v2225 = vunpack.c.l.b16 %v2149
  %v2226 = vunpack.c.l.b16 %v2150
  %v2227 = vunpack.c.l.b16 %v2151
  %v2228 = vunpack.c.l.b16 %v2152
  %v2229 = vunpack.c.l.b16 %v2153
  %v2230 = vunpack.c.l.b16 %v2154
  %v2231 = vunpack.c.l.b16 %v2155
  %v2232 = vunpack.c.l.b16 %v2156
  %v2233 = vunpack.c.l.b16 %v2157
  %v2234 = vunpack.c.l.b16 %v2158
  %v2235 = vunpack.c.l.b16 %v2159
  %v2236 = vunpack.c.l.b16 %v2160
  %v2237 = vunpack.c.l.b16 %v2161
  %v2238 = vunpack.c.l.b16 %v2162
  %v2239 = vunpack.c.l.b16 %v2163
  %v2240 = vunpack.c.l.b16 %v2164
  %v2241 = vunpack.c.l.b16 %v2165
  %v2242 = vunpack.c.l.b16 %v2166
  %v2243 = vunpack.c.l.b16 %v2167
  %v2244 = vunpack.c.l.b16 %v2168
  %v2245 = vunpack.c.l.b16 %v2169
  %v2246 = vunpack.c.l.b16 %v2170
  %v2247 = vunpack.c.l.b16 %v2171
  %v2248 = vunpack.c.l.b16 %v2172
  %v2249 = vunpack.c.l.b16 %v2173
  %v2250 = vunpack.c.l.b16 %v2174
  %v2251 = vunpack.c.l.b16 %v2175
  %v2252 = vunpack.c.l.b16 %v2176
  %v2253 = vunpack.c.l.b16 %v2177
  %v2254 = vunpack.c.l.b16 %v2178
  %v2255 = vunpack.c.l.b16 %v2179
  %v2256 = vunpack.c.l.b16 %v2180
  %v2257 = vunpack.c.l.b16 %v2181
  %v2258 = vunpack.c.l.b16 %v2182
  %v2259 = vpack.c.b16 %v2222, %v2221
  %v2260 = vpack.c.b16 %v2224, %v2223
  %v2261 = vpack.c.b16 %v2226, %v2225
  %v2262 = vpack.c.b16 %v2228, %v2227
  %v2263 = vpack.c.b16 %v2230, %v2229
  %v2264 = vpack.c.b16 %v2232, %v2231
  %v2265 = vpack.c.b16 %v2234, %v2233
  %v2266 = vpack.c.b16 %v2236, %v2235
  %v2267 = vpack.c.b16 %v2238, %v2237
  %v2268 = vpack.c.b16 %v2240, %v2239
  %v2269 = vpack.c.b16 %v2242, %v2241
  %v2270 = vpack.c.b16 %v2244, %v2243
  %v2271 = vpack.c.b16 %v2246, %v2245
  %v2272 = vpack.c.b16 %v2248, %v2247
  %v2273 = vpack.c.b16 %v2250, %v2249
  %v2274 = vpack.c.b16 %v2252, %v2251
  %v2275 = vpack.c.b16 %v2254, %v2253
  %v2276 = vpack.c.b16 %v2256, %v2255
  %v2277 = vpack.c.b16 %v2258, %v2257
  %v2313 = vunpack.c.l.b16 %v2129
  %v2314 = vunpack.c.l.b16 %v2130
  %v2315 = vunpack.c.l.b16 %v2131
  %v2316 = vunpack.c.l.b16 %v2132
  %v2317 = vunpack.c.l.b16 %v2133
  %v2318 = vunpack.c.l.b16 %v2134
  %v2319 = vunpack.c.l.b16 %v2135
  %v2320 = vunpack.c.l.b16 %v2136
  %v2321 = vunpack.c.l.b16 %v2137
  %v2322 = vunpack.c.l.b16 %v2138
  %v2323 = vunpack.c.l.b16 %v2139
  %v2324 = vunpack.c.l.b16 %v2140
  %v2325 = vunpack.c.l.b16 %v2141
  %v2326 = vunpack.c.l.b16 %v2142
  %v2327 = vunpack.c.l.b16 %v2143
  %v2328 = vunpack.c.l.b16 %v2144
  %v2329 = vpack.c.b16 %v2314, %v2313
  %v2330 = vpack.c.b16 %v2316, %v2315
  %v2331 = vpack.c.b16 %v2318, %v2317
  %v2332 = vpack.c.b16 %v2320, %v2319
  %v2333 = vpack.c.b16 %v2322, %v2321
  %v2334 = vpack.c.b16 %v2324, %v2323
  %v2335 = vpack.c.b16 %v2326, %v2325
  %v2336 = vpack.c.b16 %v2328, %v2327
  %2345 = vmatprep.subr.bf16.mxu0 0
  %2346 = vmatpush1.bf16.msra.mxu0 %v2329
  %2347 = vmatprep.subr.bf16.mxu0 0
  %2348 = vmatpush1.bf16.msra.mxu0 %v2330
  %2349 = vmatprep.subr.bf16.mxu0 0
  %2350 = vmatpush1.bf16.msra.mxu0 %v2331
  %2351 = vmatprep.subr.bf16.mxu0 0
  %2352 = vmatpush1.bf16.msra.mxu0 %v2332
  %2353 = vmatprep.subr.bf16.mxu0 0
  %2354 = vmatpush1.bf16.msra.mxu0 %v2333
  %2355 = vmatprep.subr.bf16.mxu0 0
  %2356 = vmatpush1.bf16.msra.mxu0 %v2334
  %2357 = vmatprep.subr.bf16.mxu0 0
  %2358 = vmatpush1.bf16.msra.mxu0 %v2335
  %2359 = vmatprep.subr.bf16.mxu0 0
  %2360 = vmatpush1.bf16.msra.mxu0 %v2336
  %2361 = vmatprep.subr.bf16.mxu0 0
  %2362 = vmatpush1.bf16.msra.mxu0 0
  %2363 = vmatprep.subr.bf16.mxu0 0
  %2364 = vmatpush1.bf16.msra.mxu0 0
  %2365 = vmatprep.subr.bf16.mxu0 0
  %2366 = vmatpush1.bf16.msra.mxu0 0
  %2367 = vmatprep.subr.bf16.mxu0 0
  %2368 = vmatpush1.bf16.msra.mxu0 0
  %2369 = vmatprep.subr.bf16.mxu0 0
  %2370 = vmatpush1.bf16.msra.mxu0 0
  %2371 = vmatprep.subr.bf16.mxu0 0
  %2372 = vmatpush1.bf16.msra.mxu0 0
  %2373 = vmatprep.subr.bf16.mxu0 0
  %2374 = vmatpush1.bf16.msra.mxu0 0
  %2375 = vmatprep.subr.bf16.mxu0 0
  %2376 = vmatpush1.bf16.msra.mxu0 0
  %2377 = vmatprep.mubr.bf16.mxu0 0
  %2378 = vmatmul.mubr.bf16.gmra.mrb[0].mxu0 %v2259
  %v2379 = vpop.f32.mrb[0].mxu0
  %v2380 = vadd.f32 0.0, %v2379
  %v2381 = vpop.f32.mrb[0].mxu0
  %v2382 = vpop.f32.mrb[0].mxu0
  %v2383 = vadd.f32 0.0, %v2382
  %v2384 = vpop.f32.mrb[0].mxu0
  %2385 = vmatprep.mubr.bf16.mxu0 0
  %2386 = vmatmul.mubr.bf16.gmra.mrb[0].mxu0 %v2260
  %v2387 = vpop.f32.mrb[0].mxu0
  %v2388 = vadd.f32 0.0, %v2387
  %v2389 = vpop.f32.mrb[0].mxu0
  %v2390 = vpop.f32.mrb[0].mxu0
  %v2391 = vadd.f32 0.0, %v2390
  %v2392 = vpop.f32.mrb[0].mxu0
  %2393 = vmatprep.mubr.bf16.mxu0 0
  %2394 = vmatmul.mubr.bf16.gmra.mrb[0].mxu0 %v2261
  %v2395 = vpop.f32.mrb[0].mxu0
  %v2396 = vadd.f32 0.0, %v2395
  %v2397 = vpop.f32.mrb[0].mxu0
  %v2398 = vpop.f32.mrb[0].mxu0
  %v2399 = vadd.f32 0.0, %v2398
  %v2400 = vpop.f32.mrb[0].mxu0
  %2401 = vmatprep.mubr.bf16.mxu0 0
  %2402 = vmatmul.mubr.bf16.gmra.mrb[0].mxu0 %v2262
  %v2403 = vpop.f32.mrb[0].mxu0
  %v2404 = vadd.f32 0.0, %v2403
  %v2405 = vpop.f32.mrb[0].mxu0
  %v2406 = vpop.f32.mrb[0].mxu0
  %v2407 = vadd.f32 0.0, %v2406
  %v2408 = vpop.f32.mrb[0].mxu0
  %2409 = vmatprep.mubr.bf16.mxu0 0
  %2410 = vmatmul.mubr.bf16.gmra.mrb[0].mxu0 %v2263
  %v2411 = vpop.f32.mrb[0].mxu0
  %v2412 = vadd.f32 0.0, %v2411
  %v2413 = vpop.f32.mrb[0].mxu0
  %v2414 = vpop.f32.mrb[0].mxu0
  %v2415 = vadd.f32 0.0, %v2414
  %v2416 = vpop.f32.mrb[0].mxu0
  %2417 = vmatprep.mubr.bf16.mxu0 0
  %2418 = vmatmul.mubr.bf16.gmra.mrb[0].mxu0 %v2264
  %v2419 = vpop.f32.mrb[0].mxu0
  %v2420 = vadd.f32 0.0, %v2419
  %v2421 = vpop.f32.mrb[0].mxu0
  %v2422 = vpop.f32.mrb[0].mxu0
  %v2423 = vadd.f32 0.0, %v2422
  %v2424 = vpop.f32.mrb[0].mxu0
  %2425 = vmatprep.mubr.bf16.mxu0 0
  %2426 = vmatmul.mubr.bf16.gmra.mrb[0].mxu0 %v2265
  %v2427 = vpop.f32.mrb[0].mxu0
  %v2428 = vadd.f32 0.0, %v2427
  %v2429 = vpop.f32.mrb[0].mxu0
  %v2430 = vpop.f32.mrb[0].mxu0
  %v2431 = vadd.f32 0.0, %v2430
  %v2432 = vpop.f32.mrb[0].mxu0
  %2433 = vmatprep.mubr.bf16.mxu0 0
  %2434 = vmatmul.mubr.bf16.gmra.mrb[0].mxu0 %v2266
  %v2435 = vpop.f32.mrb[0].mxu0
  %v2436 = vadd.f32 0.0, %v2435
  %v2437 = vpop.f32.mrb[0].mxu0
  %v2438 = vpop.f32.mrb[0].mxu0
  %v2439 = vadd.f32 0.0, %v2438
  %v2440 = vpop.f32.mrb[0].mxu0
  %2441 = vmatprep.mubr.bf16.mxu0 0
  %2442 = vmatmul.mubr.bf16.gmra.mrb[0].mxu0 %v2267
  %v2443 = vpop.f32.mrb[0].mxu0
  %v2444 = vadd.f32 0.0, %v2443
  %v2445 = vpop.f32.mrb[0].mxu0
  %v2446 = vpop.f32.mrb[0].mxu0
  %v2447 = vadd.f32 0.0, %v2446
  %v2448 = vpop.f32.mrb[0].mxu0
  %2449 = vmatprep.mubr.bf16.mxu0 0
  %2450 = vmatmul.mubr.bf16.gmra.mrb[0].mxu0 %v2268
  %v2451 = vpop.f32.mrb[0].mxu0
  %v2452 = vadd.f32 0.0, %v2451
  %v2453 = vpop.f32.mrb[0].mxu0
  %v2454 = vpop.f32.mrb[0].mxu0
  %v2455 = vadd.f32 0.0, %v2454
  %v2456 = vpop.f32.mrb[0].mxu0
  %2457 = vmatprep.mubr.bf16.mxu0 0
  %2458 = vmatmul.mubr.bf16.gmra.mrb[0].mxu0 %v2269
  %v2459 = vpop.f32.mrb[0].mxu0
  %v2460 = vadd.f32 0.0, %v2459
  %v2461 = vpop.f32.mrb[0].mxu0
  %v2462 = vpop.f32.mrb[0].mxu0
  %v2463 = vadd.f32 0.0, %v2462
  %v2464 = vpop.f32.mrb[0].mxu0
  %2465 = vmatprep.mubr.bf16.mxu0 0
  %2466 = vmatmul.mubr.bf16.gmra.mrb[0].mxu0 %v2270
  %v2467 = vpop.f32.mrb[0].mxu0
  %v2468 = vadd.f32 0.0, %v2467
  %v2469 = vpop.f32.mrb[0].mxu0
  %v2470 = vpop.f32.mrb[0].mxu0
  %v2471 = vadd.f32 0.0, %v2470
  %v2472 = vpop.f32.mrb[0].mxu0
  %2473 = vmatprep.mubr.bf16.mxu0 0
  %2474 = vmatmul.mubr.bf16.gmra.mrb[0].mxu0 %v2271
  %v2475 = vpop.f32.mrb[0].mxu0
  %v2476 = vadd.f32 0.0, %v2475
  %v2477 = vpop.f32.mrb[0].mxu0
  %v2478 = vpop.f32.mrb[0].mxu0
  %v2479 = vadd.f32 0.0, %v2478
  %v2480 = vpop.f32.mrb[0].mxu0
  %2481 = vmatprep.mubr.bf16.mxu0 0
  %2482 = vmatmul.mubr.bf16.gmra.mrb[0].mxu0 %v2272
  %v2483 = vpop.f32.mrb[0].mxu0
  %v2484 = vadd.f32 0.0, %v2483
  %v2485 = vpop.f32.mrb[0].mxu0
  %v2486 = vpop.f32.mrb[0].mxu0
  %v2487 = vadd.f32 0.0, %v2486
  %v2488 = vpop.f32.mrb[0].mxu0
  %2489 = vmatprep.mubr.bf16.mxu0 0
  %2490 = vmatmul.mubr.bf16.gmra.mrb[0].mxu0 %v2273
  %v2491 = vpop.f32.mrb[0].mxu0
  %v2492 = vadd.f32 0.0, %v2491
  %v2493 = vpop.f32.mrb[0].mxu0
  %v2494 = vpop.f32.mrb[0].mxu0
  %v2495 = vadd.f32 0.0, %v2494
  %v2496 = vpop.f32.mrb[0].mxu0
  %2497 = vmatprep.mubr.bf16.mxu0 0
  %2498 = vmatmul.mubr.bf16.gmra.mrb[0].mxu0 %v2274
  %v2499 = vpop.f32.mrb[0].mxu0
  %v2500 = vadd.f32 0.0, %v2499
  %v2501 = vpop.f32.mrb[0].mxu0
  %v2502 = vpop.f32.mrb[0].mxu0
  %v2503 = vadd.f32 0.0, %v2502
  %v2504 = vpop.f32.mrb[0].mxu0
  %2505 = vmatprep.mubr.bf16.mxu0 0
  %2506 = vmatmul.mubr.bf16.gmra.mrb[0].mxu0 %v2275
  %v2507 = vpop.f32.mrb[0].mxu0
  %v2508 = vadd.f32 0.0, %v2507
  %v2509 = vpop.f32.mrb[0].mxu0
  %v2510 = vpop.f32.mrb[0].mxu0
  %v2511 = vadd.f32 0.0, %v2510
  %v2512 = vpop.f32.mrb[0].mxu0
  %2513 = vmatprep.mubr.bf16.mxu0 0
  %2514 = vmatmul.mubr.bf16.gmra.mrb[0].mxu0 %v2276
  %v2515 = vpop.f32.mrb[0].mxu0
  %v2516 = vadd.f32 0.0, %v2515
  %v2517 = vpop.f32.mrb[0].mxu0
  %v2518 = vpop.f32.mrb[0].mxu0
  %v2519 = vadd.f32 0.0, %v2518
  %v2520 = vpop.f32.mrb[0].mxu0
  %2521 = vmatprep.mubr.bf16.mxu0 0
  %2522 = vmatmul.mubr.bf16.gmra.mrb[0].mxu0 %v2277
  %v2523 = vpop.f32.mrb[0].mxu0
  %v2524 = vadd.f32 0.0, %v2523
  %v2525 = vpop.f32.mrb[0].mxu0
  %v2526 = vpop.f32.mrb[0].mxu0
  %v2527 = vadd.f32 0.0, %v2526
  %v2528 = vpop.f32.mrb[0].mxu0
  %2529 = vdwg.mxu0
  %v2530 = vld [vmem:[%s1 + $0x4] sm:$0xf]
  %v2531 = vld [vmem:[%s1 + $0x14] sm:$0xf]
  %v2532 = vld [vmem:[%s1 + $0x24] sm:$0xf]
  %v2533 = vld [vmem:[%s1 + $0x34] sm:$0xf]
  %v2534 = vld [vmem:[%s1 + $0x44] sm:$0xf]
  %v2535 = vld [vmem:[%s1 + $0x54] sm:$0xf]
  %v2536 = vld [vmem:[%s1 + $0x64] sm:$0xf]
  %v2537 = vld [vmem:[%s1 + $0x74] sm:$0xf]
  %v2538 = vld [vmem:[%s1 + $0x84] sm:$0xf]
  %v2539 = vld [vmem:[%s1 + $0x94] sm:$0xf]
  %v2540 = vld [vmem:[%s1 + $0xa4] sm:$0xf]
  %v2541 = vld [vmem:[%s1 + $0xb4] sm:$0xf]
  %v2542 = vld [vmem:[%s1 + $0xc4] sm:$0xf]
  %v2543 = vld [vmem:[%s1 + $0xd4] sm:$0xf]
  %v2544 = vld [vmem:[%s1 + $0xe4] sm:$0xf]
  %v2545 = vld [vmem:[%s1 + $0xf4] sm:$0xf]
  %v2546 = vld [vmem:[%s1 + $0x104] sm:$0xf]
  %v2547 = vld [vmem:[%s1 + $0x114] sm:$0xf]
  %v2548 = vld [vmem:[%s1 + $0x124] sm:$0xf]
  %v2549 = vld [vmem:[%s1 + $0x134] sm:$0xf]
  %v2550 = vld [vmem:[%s1 + $0x144] sm:$0xf]
  %v2551 = vld [vmem:[%s1 + $0x154] sm:$0xf]
  %v2552 = vld [vmem:[%s1 + $0x164] sm:$0xf]
  %v2553 = vld [vmem:[%s1 + $0x174] sm:$0xf]
  %v2554 = vld [vmem:[%s1 + $0x184] sm:$0xf]
  %v2555 = vld [vmem:[%s1 + $0x194] sm:$0xf]
  %v2556 = vld [vmem:[%s1 + $0x1a4] sm:$0xf]
  %v2557 = vld [vmem:[%s1 + $0x1b4] sm:$0xf]
  %v2558 = vld [vmem:[%s1 + $0x1c4] sm:$0xf]
  %v2559 = vld [vmem:[%s1 + $0x1d4] sm:$0xf]
  %v2560 = vld [vmem:[%s1 + $0x1e4] sm:$0xf]
  %v2561 = vld [vmem:[%s1 + $0x1f4] sm:$0xf]
  %v2562 = vld [vmem:[%s1 + $0x204] sm:$0xf]
  %v2563 = vld [vmem:[%s1 + $0x214] sm:$0xf]
  %v2564 = vld [vmem:[%s1 + $0x224] sm:$0xf]
  %v2565 = vld [vmem:[%s1 + $0x234] sm:$0xf]
  %v2566 = vld [vmem:[%s1 + $0x244] sm:$0xf]
  %v2567 = vld [vmem:[%s1 + $0x254] sm:$0xf]
  %v2606 = vunpack.c.l.b16 %v2530
  %v2607 = vunpack.c.l.b16 %v2531
  %v2608 = vunpack.c.l.b16 %v2532
  %v2609 = vunpack.c.l.b16 %v2533
  %v2610 = vunpack.c.l.b16 %v2534
  %v2611 = vunpack.c.l.b16 %v2535
  %v2612 = vunpack.c.l.b16 %v2536
  %v2613 = vunpack.c.l.b16 %v2537
  %v2614 = vunpack.c.l.b16 %v2538
  %v2615 = vunpack.c.l.b16 %v2539
  %v2616 = vunpack.c.l.b16 %v2540
  %v2617 = vunpack.c.l.b16 %v2541
  %v2618 = vunpack.c.l.b16 %v2542
  %v2619 = vunpack.c.l.b16 %v2543
  %v2620 = vunpack.c.l.b16 %v2544
  %v2621 = vunpack.c.l.b16 %v2545
  %v2622 = vunpack.c.l.b16 %v2546
  %v2623 = vunpack.c.l.b16 %v2547
  %v2624 = vunpack.c.l.b16 %v2548
  %v2625 = vunpack.c.l.b16 %v2549
  %v2626 = vunpack.c.l.b16 %v2550
  %v2627 = vunpack.c.l.b16 %v2551
  %v2628 = vunpack.c.l.b16 %v2552
  %v2629 = vunpack.c.l.b16 %v2553
  %v2630 = vunpack.c.l.b16 %v2554
  %v2631 = vunpack.c.l.b16 %v2555
  %v2632 = vunpack.c.l.b16 %v2556
  %v2633 = vunpack.c.l.b16 %v2557
  %v2634 = vunpack.c.l.b16 %v2558
  %v2635 = vunpack.c.l.b16 %v2559
  %v2636 = vunpack.c.l.b16 %v2560
  %v2637 = vunpack.c.l.b16 %v2561
  %v2638 = vunpack.c.l.b16 %v2562
  %v2639 = vunpack.c.l.b16 %v2563
  %v2640 = vunpack.c.l.b16 %v2564
  %v2641 = vunpack.c.l.b16 %v2565
  %v2642 = vunpack.c.l.b16 %v2566
  %v2643 = vunpack.c.l.b16 %v2567
  %v2644 = vpack.c.b16 %v2607, %v2606
  %v2645 = vpack.c.b16 %v2609, %v2608
  %v2646 = vpack.c.b16 %v2611, %v2610
  %v2647 = vpack.c.b16 %v2613, %v2612
  %v2648 = vpack.c.b16 %v2615, %v2614
  %v2649 = vpack.c.b16 %v2617, %v2616
  %v2650 = vpack.c.b16 %v2619, %v2618
  %v2651 = vpack.c.b16 %v2621, %v2620
  %v2652 = vpack.c.b16 %v2623, %v2622
  %v2653 = vpack.c.b16 %v2625, %v2624
  %v2654 = vpack.c.b16 %v2627, %v2626
  %v2655 = vpack.c.b16 %v2629, %v2628
  %v2656 = vpack.c.b16 %v2631, %v2630
  %v2657 = vpack.c.b16 %v2633, %v2632
  %v2658 = vpack.c.b16 %v2635, %v2634
  %v2659 = vpack.c.b16 %v2637, %v2636
  %v2660 = vpack.c.b16 %v2639, %v2638
  %v2661 = vpack.c.b16 %v2641, %v2640
  %v2662 = vpack.c.b16 %v2643, %v2642
  %2682 = vmatprep.subr.bf16.mxu0 0
  %2683 = vmatpush1.bf16.msra.mxu0 %v2329
  %2684 = vmatprep.subr.bf16.mxu0 0
  %2685 = vmatpush1.bf16.msra.mxu0 %v2330
  %2686 = vmatprep.subr.bf16.mxu0 0
  %2687 = vmatpush1.bf16.msra.mxu0 %v2331
  %2688 = vmatprep.subr.bf16.mxu0 0
  %2689 = vmatpush1.bf16.msra.mxu0 %v2332
  %2690 = vmatprep.subr.bf16.mxu0 0
  %2691 = vmatpush1.bf16.msra.mxu0 %v2333
  %2692 = vmatprep.subr.bf16.mxu0 0
  %2693 = vmatpush1.bf16.msra.mxu0 %v2334
  %2694 = vmatprep.subr.bf16.mxu0 0
  %2695 = vmatpush1.bf16.msra.mxu0 %v2335
  %2696 = vmatprep.subr.bf16.mxu0 0
  %2697 = vmatpush1.bf16.msra.mxu0 %v2336
  %2698 = vmatprep.subr.bf16.mxu0 0
  %2699 = vmatpush1.bf16.msra.mxu0 0
  %2700 = vmatprep.subr.bf16.mxu0 0
  %2701 = vmatpush1.bf16.msra.mxu0 0
  %2702 = vmatprep.subr.bf16.mxu0 0
  %2703 = vmatpush1.bf16.msra.mxu0 0
  %2704 = vmatprep.subr.bf16.mxu0 0
  %2705 = vmatpush1.bf16.msra.mxu0 0
  %2706 = vmatprep.subr.bf16.mxu0 0
  %2707 = vmatpush1.bf16.msra.mxu0 0
  %2708 = vmatprep.subr.bf16.mxu0 0
  %2709 = vmatpush1.bf16.msra.mxu0 0
  %2710 = vmatprep.subr.bf16.mxu0 0
  %2711 = vmatpush1.bf16.msra.mxu0 0
  %2712 = vmatprep.subr.bf16.mxu0 0
  %2713 = vmatpush1.bf16.msra.mxu0 0
  %2714 = vmatprep.mubr.bf16.mxu0 0
  %2715 = vmatmul.mubr.bf16.gmra.mrb[0].mxu0 %v2644
  %v2716 = vpop.f32.mrb[0].mxu0
  %v2717 = vadd.f32 0.0, %v2716
  %v2718 = vpop.f32.mrb[0].mxu0
  %v2719 = vpop.f32.mrb[0].mxu0
  %v2720 = vadd.f32 0.0, %v2719
  %v2721 = vpop.f32.mrb[0].mxu0
  %2722 = vmatprep.mubr.bf16.mxu0 0
  %2723 = vmatmul.mubr.bf16.gmra.mrb[0].mxu0 %v2645
  %v2724 = vpop.f32.mrb[0].mxu0
  %v2725 = vadd.f32 0.0, %v2724
  %v2726 = vpop.f32.mrb[0].mxu0
  %v2727 = vpop.f32.mrb[0].mxu0
  %v2728 = vadd.f32 0.0, %v2727
  %v2729 = vpop.f32.mrb[0].mxu0
  %2730 = vmatprep.mubr.bf16.mxu0 0
  %2731 = vmatmul.mubr.bf16.gmra.mrb[0].mxu0 %v2646
  %v2732 = vpop.f32.mrb[0].mxu0
  %v2733 = vadd.f32 0.0, %v2732
  %v2734 = vpop.f32.mrb[0].mxu0
  %v2735 = vpop.f32.mrb[0].mxu0
  %v2736 = vadd.f32 0.0, %v2735
  %v2737 = vpop.f32.mrb[0].mxu0
  %2738 = vmatprep.mubr.bf16.mxu0 0
  %2739 = vmatmul.mubr.bf16.gmra.mrb[0].mxu0 %v2647
  %v2740 = vpop.f32.mrb[0].mxu0
  %v2741 = vadd.f32 0.0, %v2740
  %v2742 = vpop.f32.mrb[0].mxu0
  %v2743 = vpop.f32.mrb[0].mxu0
  %v2744 = vadd.f32 0.0, %v2743
  %v2745 = vpop.f32.mrb[0].mxu0
  %2746 = vmatprep.mubr.bf16.mxu0 0
  %2747 = vmatmul.mubr.bf16.gmra.mrb[0].mxu0 %v2648
  %v2748 = vpop.f32.mrb[0].mxu0
  %v2749 = vadd.f32 0.0, %v2748
  %v2750 = vpop.f32.mrb[0].mxu0
  %v2751 = vpop.f32.mrb[0].mxu0
  %v2752 = vadd.f32 0.0, %v2751
  %v2753 = vpop.f32.mrb[0].mxu0
  %2754 = vmatprep.mubr.bf16.mxu0 0
  %2755 = vmatmul.mubr.bf16.gmra.mrb[0].mxu0 %v2649
  %v2756 = vpop.f32.mrb[0].mxu0
  %v2757 = vadd.f32 0.0, %v2756
  %v2758 = vpop.f32.mrb[0].mxu0
  %v2759 = vpop.f32.mrb[0].mxu0
  %v2760 = vadd.f32 0.0, %v2759
  %v2761 = vpop.f32.mrb[0].mxu0
  %2762 = vmatprep.mubr.bf16.mxu0 0
  %2763 = vmatmul.mubr.bf16.gmra.mrb[0].mxu0 %v2650
  %v2764 = vpop.f32.mrb[0].mxu0
  %v2765 = vadd.f32 0.0, %v2764
  %v2766 = vpop.f32.mrb[0].mxu0
  %v2767 = vpop.f32.mrb[0].mxu0
  %v2768 = vadd.f32 0.0, %v2767
  %v2769 = vpop.f32.mrb[0].mxu0
  %2770 = vmatprep.mubr.bf16.mxu0 0
  %2771 = vmatmul.mubr.bf16.gmra.mrb[0].mxu0 %v2651
  %v2772 = vpop.f32.mrb[0].mxu0
  %v2773 = vadd.f32 0.0, %v2772
  %v2774 = vpop.f32.mrb[0].mxu0
  %v2775 = vpop.f32.mrb[0].mxu0
  %v2776 = vadd.f32 0.0, %v2775
  %v2777 = vpop.f32.mrb[0].mxu0
  %2778 = vmatprep.mubr.bf16.mxu0 0
  %2779 = vmatmul.mubr.bf16.gmra.mrb[0].mxu0 %v2652
  %v2780 = vpop.f32.mrb[0].mxu0
  %v2781 = vadd.f32 0.0, %v2780
  %v2782 = vpop.f32.mrb[0].mxu0
  %v2783 = vpop.f32.mrb[0].mxu0
  %v2784 = vadd.f32 0.0, %v2783
  %v2785 = vpop.f32.mrb[0].mxu0
  %2786 = vmatprep.mubr.bf16.mxu0 0
  %2787 = vmatmul.mubr.bf16.gmra.mrb[0].mxu0 %v2653
  %v2788 = vpop.f32.mrb[0].mxu0
  %v2789 = vadd.f32 0.0, %v2788
  %v2790 = vpop.f32.mrb[0].mxu0
  %v2791 = vpop.f32.mrb[0].mxu0
  %v2792 = vadd.f32 0.0, %v2791
  %v2793 = vpop.f32.mrb[0].mxu0
  %2794 = vmatprep.mubr.bf16.mxu0 0
  %2795 = vmatmul.mubr.bf16.gmra.mrb[0].mxu0 %v2654
  %v2796 = vpop.f32.mrb[0].mxu0
  %v2797 = vadd.f32 0.0, %v2796
  %v2798 = vpop.f32.mrb[0].mxu0
  %v2799 = vpop.f32.mrb[0].mxu0
  %v2800 = vadd.f32 0.0, %v2799
  %v2801 = vpop.f32.mrb[0].mxu0
  %2802 = vmatprep.mubr.bf16.mxu0 0
  %2803 = vmatmul.mubr.bf16.gmra.mrb[0].mxu0 %v2655
  %v2804 = vpop.f32.mrb[0].mxu0
  %v2805 = vadd.f32 0.0, %v2804
  %v2806 = vpop.f32.mrb[0].mxu0
  %v2807 = vpop.f32.mrb[0].mxu0
  %v2808 = vadd.f32 0.0, %v2807
  %v2809 = vpop.f32.mrb[0].mxu0
  %2810 = vmatprep.mubr.bf16.mxu0 0
  %2811 = vmatmul.mubr.bf16.gmra.mrb[0].mxu0 %v2656
  %v2812 = vpop.f32.mrb[0].mxu0
  %v2813 = vadd.f32 0.0, %v2812
  %v2814 = vpop.f32.mrb[0].mxu0
  %v2815 = vpop.f32.mrb[0].mxu0
  %v2816 = vadd.f32 0.0, %v2815
  %v2817 = vpop.f32.mrb[0].mxu0
  %2818 = vmatprep.mubr.bf16.mxu0 0
  %2819 = vmatmul.mubr.bf16.gmra.mrb[0].mxu0 %v2657
  %v2820 = vpop.f32.mrb[0].mxu0
  %v2821 = vadd.f32 0.0, %v2820
  %v2822 = vpop.f32.mrb[0].mxu0
  %v2823 = vpop.f32.mrb[0].mxu0
  %v2824 = vadd.f32 0.0, %v2823
  %v2825 = vpop.f32.mrb[0].mxu0
  %2826 = vmatprep.mubr.bf16.mxu0 0
  %2827 = vmatmul.mubr.bf16.gmra.mrb[0].mxu0 %v2658
  %v2828 = vpop.f32.mrb[0].mxu0
  %v2829 = vadd.f32 0.0, %v2828
  %v2830 = vpop.f32.mrb[0].mxu0
  %v2831 = vpop.f32.mrb[0].mxu0
  %v2832 = vadd.f32 0.0, %v2831
  %v2833 = vpop.f32.mrb[0].mxu0
  %2834 = vmatprep.mubr.bf16.mxu0 0
  %2835 = vmatmul.mubr.bf16.gmra.mrb[0].mxu0 %v2659
  %v2836 = vpop.f32.mrb[0].mxu0
  %v2837 = vadd.f32 0.0, %v2836
  %v2838 = vpop.f32.mrb[0].mxu0
  %v2839 = vpop.f32.mrb[0].mxu0
  %v2840 = vadd.f32 0.0, %v2839
  %v2841 = vpop.f32.mrb[0].mxu0
  %2842 = vmatprep.mubr.bf16.mxu0 0
  %2843 = vmatmul.mubr.bf16.gmra.mrb[0].mxu0 %v2660
  %v2844 = vpop.f32.mrb[0].mxu0
  %v2845 = vadd.f32 0.0, %v2844
  %v2846 = vpop.f32.mrb[0].mxu0
  %v2847 = vpop.f32.mrb[0].mxu0
  %v2848 = vadd.f32 0.0, %v2847
  %v2849 = vpop.f32.mrb[0].mxu0
  %2850 = vmatprep.mubr.bf16.mxu0 0
  %2851 = vmatmul.mubr.bf16.gmra.mrb[0].mxu0 %v2661
  %v2852 = vpop.f32.mrb[0].mxu0
  %v2853 = vadd.f32 0.0, %v2852
  %v2854 = vpop.f32.mrb[0].mxu0
  %v2855 = vpop.f32.mrb[0].mxu0
  %v2856 = vadd.f32 0.0, %v2855
  %v2857 = vpop.f32.mrb[0].mxu0
  %2858 = vmatprep.mubr.bf16.mxu0 0
  %2859 = vmatmul.mubr.bf16.gmra.mrb[0].mxu0 %v2662
  %v2860 = vpop.f32.mrb[0].mxu0
  %v2861 = vadd.f32 0.0, %v2860
  %v2862 = vpop.f32.mrb[0].mxu0
  %v2863 = vpop.f32.mrb[0].mxu0
  %v2864 = vadd.f32 0.0, %v2863
  %v2865 = vpop.f32.mrb[0].mxu0
  %2866 = vdwg.mxu0
  %v2867 = vmax.f32 %v2380, %v2717
  %v2868 = vmax.f32 %v2383, %v2720
  %v2869 = vmax.f32 %v2388, %v2725
  %v2870 = vmax.f32 %v2391, %v2728
  %v2871 = vmax.f32 %v2396, %v2733
  %v2872 = vmax.f32 %v2399, %v2736
  %v2873 = vmax.f32 %v2404, %v2741
  %v2874 = vmax.f32 %v2407, %v2744
  %v2875 = vmax.f32 %v2412, %v2749
  %v2876 = vmax.f32 %v2415, %v2752
  %v2877 = vmax.f32 %v2420, %v2757
  %v2878 = vmax.f32 %v2423, %v2760
  %v2879 = vmax.f32 %v2428, %v2765
  %v2880 = vmax.f32 %v2431, %v2768
  %v2881 = vmax.f32 %v2436, %v2773
  %v2882 = vmax.f32 %v2439, %v2776
  %v2883 = vmax.f32 %v2444, %v2781
  %v2884 = vmax.f32 %v2447, %v2784
  %v2885 = vmax.f32 %v2452, %v2789
  %v2886 = vmax.f32 %v2455, %v2792
  %v2887 = vmax.f32 %v2460, %v2797
  %v2888 = vmax.f32 %v2463, %v2800
  %v2889 = vmax.f32 %v2468, %v2805
  %v2890 = vmax.f32 %v2471, %v2808
  %v2891 = vmax.f32 %v2476, %v2813
  %v2892 = vmax.f32 %v2479, %v2816
  %v2893 = vmax.f32 %v2484, %v2821
  %v2894 = vmax.f32 %v2487, %v2824
  %v2895 = vmax.f32 %v2492, %v2829
  %v2896 = vmax.f32 %v2495, %v2832
  %v2897 = vmax.f32 %v2500, %v2837
  %v2898 = vmax.f32 %v2503, %v2840
  %v2899 = vmax.f32 %v2508, %v2845
  %v2900 = vmax.f32 %v2511, %v2848
  %v2901 = vmax.f32 %v2516, %v2853
  %v2902 = vmax.f32 %v2519, %v2856
  %v2903 = vmax.f32 %v2524, %v2861
  %v2904 = vmax.f32 %v2527, %v2864
  %v2905 = vld [vmem:[%s1 + $0x8] sm:$0xf]
  %v2906 = vld [vmem:[%s1 + $0x18] sm:$0xf]
  %v2907 = vld [vmem:[%s1 + $0x28] sm:$0xf]
  %v2908 = vld [vmem:[%s1 + $0x38] sm:$0xf]
  %v2909 = vld [vmem:[%s1 + $0x48] sm:$0xf]
  %v2910 = vld [vmem:[%s1 + $0x58] sm:$0xf]
  %v2911 = vld [vmem:[%s1 + $0x68] sm:$0xf]
  %v2912 = vld [vmem:[%s1 + $0x78] sm:$0xf]
  %v2913 = vld [vmem:[%s1 + $0x88] sm:$0xf]
  %v2914 = vld [vmem:[%s1 + $0x98] sm:$0xf]
  %v2915 = vld [vmem:[%s1 + $0xa8] sm:$0xf]
  %v2916 = vld [vmem:[%s1 + $0xb8] sm:$0xf]
  %v2917 = vld [vmem:[%s1 + $0xc8] sm:$0xf]
  %v2918 = vld [vmem:[%s1 + $0xd8] sm:$0xf]
  %v2919 = vld [vmem:[%s1 + $0xe8] sm:$0xf]
  %v2920 = vld [vmem:[%s1 + $0xf8] sm:$0xf]
  %v2921 = vld [vmem:[%s1 + $0x108] sm:$0xf]
  %v2922 = vld [vmem:[%s1 + $0x118] sm:$0xf]
  %v2923 = vld [vmem:[%s1 + $0x128] sm:$0xf]
  %v2924 = vld [vmem:[%s1 + $0x138] sm:$0xf]
  %v2925 = vld [vmem:[%s1 + $0x148] sm:$0xf]
  %v2926 = vld [vmem:[%s1 + $0x158] sm:$0xf]
  %v2927 = vld [vmem:[%s1 + $0x168] sm:$0xf]
  %v2928 = vld [vmem:[%s1 + $0x178] sm:$0xf]
  %v2929 = vld [vmem:[%s1 + $0x188] sm:$0xf]
  %v2930 = vld [vmem:[%s1 + $0x198] sm:$0xf]
  %v2931 = vld [vmem:[%s1 + $0x1a8] sm:$0xf]
  %v2932 = vld [vmem:[%s1 + $0x1b8] sm:$0xf]
  %v2933 = vld [vmem:[%s1 + $0x1c8] sm:$0xf]
  %v2934 = vld [vmem:[%s1 + $0x1d8] sm:$0xf]
  %v2935 = vld [vmem:[%s1 + $0x1e8] sm:$0xf]
  %v2936 = vld [vmem:[%s1 + $0x1f8] sm:$0xf]
  %v2937 = vld [vmem:[%s1 + $0x208] sm:$0xf]
  %v2938 = vld [vmem:[%s1 + $0x218] sm:$0xf]
  %v2939 = vld [vmem:[%s1 + $0x228] sm:$0xf]
  %v2940 = vld [vmem:[%s1 + $0x238] sm:$0xf]
  %v2941 = vld [vmem:[%s1 + $0x248] sm:$0xf]
  %v2942 = vld [vmem:[%s1 + $0x258] sm:$0xf]
  %v2981 = vunpack.c.l.b16 %v2905
  %v2982 = vunpack.c.l.b16 %v2906
  %v2983 = vunpack.c.l.b16 %v2907
  %v2984 = vunpack.c.l.b16 %v2908
  %v2985 = vunpack.c.l.b16 %v2909
  %v2986 = vunpack.c.l.b16 %v2910
  %v2987 = vunpack.c.l.b16 %v2911
  %v2988 = vunpack.c.l.b16 %v2912
  %v2989 = vunpack.c.l.b16 %v2913
  %v2990 = vunpack.c.l.b16 %v2914
  %v2991 = vunpack.c.l.b16 %v2915
  %v2992 = vunpack.c.l.b16 %v2916
  %v2993 = vunpack.c.l.b16 %v2917
  %v2994 = vunpack.c.l.b16 %v2918
  %v2995 = vunpack.c.l.b16 %v2919
  %v2996 = vunpack.c.l.b16 %v2920
  %v2997 = vunpack.c.l.b16 %v2921
  %v2998 = vunpack.c.l.b16 %v2922
  %v2999 = vunpack.c.l.b16 %v2923
  %v3000 = vunpack.c.l.b16 %v2924
  %v3001 = vunpack.c.l.b16 %v2925
  %v3002 = vunpack.c.l.b16 %v2926
  %v3003 = vunpack.c.l.b16 %v2927
  %v3004 = vunpack.c.l.b16 %v2928
  %v3005 = vunpack.c.l.b16 %v2929
  %v3006 = vunpack.c.l.b16 %v2930
  %v3007 = vunpack.c.l.b16 %v2931
  %v3008 = vunpack.c.l.b16 %v2932
  %v3009 = vunpack.c.l.b16 %v2933
  %v3010 = vunpack.c.l.b16 %v2934
  %v3011 = vunpack.c.l.b16 %v2935
  %v3012 = vunpack.c.l.b16 %v2936
  %v3013 = vunpack.c.l.b16 %v2937
  %v3014 = vunpack.c.l.b16 %v2938
  %v3015 = vunpack.c.l.b16 %v2939
  %v3016 = vunpack.c.l.b16 %v2940
  %v3017 = vunpack.c.l.b16 %v2941
  %v3018 = vunpack.c.l.b16 %v2942
  %v3019 = vpack.c.b16 %v2982, %v2981
  %v3020 = vpack.c.b16 %v2984, %v2983
  %v3021 = vpack.c.b16 %v2986, %v2985
  %v3022 = vpack.c.b16 %v2988, %v2987
  %v3023 = vpack.c.b16 %v2990, %v2989
  %v3024 = vpack.c.b16 %v2992, %v2991
  %v3025 = vpack.c.b16 %v2994, %v2993
  %v3026 = vpack.c.b16 %v2996, %v2995
  %v3027 = vpack.c.b16 %v2998, %v2997
  %v3028 = vpack.c.b16 %v3000, %v2999
  %v3029 = vpack.c.b16 %v3002, %v3001
  %v3030 = vpack.c.b16 %v3004, %v3003
  %v3031 = vpack.c.b16 %v3006, %v3005
  %v3032 = vpack.c.b16 %v3008, %v3007
  %v3033 = vpack.c.b16 %v3010, %v3009
  %v3034 = vpack.c.b16 %v3012, %v3011
  %v3035 = vpack.c.b16 %v3014, %v3013
  %v3036 = vpack.c.b16 %v3016, %v3015
  %v3037 = vpack.c.b16 %v3018, %v3017
  %3057 = vmatprep.subr.bf16.mxu0 0
  %3058 = vmatpush1.bf16.msra.mxu0 %v2329
  %3059 = vmatprep.subr.bf16.mxu0 0
  %3060 = vmatpush1.bf16.msra.mxu0 %v2330
  %3061 = vmatprep.subr.bf16.mxu0 0
  %3062 = vmatpush1.bf16.msra.mxu0 %v2331
  %3063 = vmatprep.subr.bf16.mxu0 0
  %3064 = vmatpush1.bf16.msra.mxu0 %v2332
  %3065 = vmatprep.subr.bf16.mxu0 0
  %3066 = vmatpush1.bf16.msra.mxu0 %v2333
  %3067 = vmatprep.subr.bf16.mxu0 0
  %3068 = vmatpush1.bf16.msra.mxu0 %v2334
  %3069 = vmatprep.subr.bf16.mxu0 0
  %3070 = vmatpush1.bf16.msra.mxu0 %v2335
  %3071 = vmatprep.subr.bf16.mxu0 0
  %3072 = vmatpush1.bf16.msra.mxu0 %v2336
  %3073 = vmatprep.subr.bf16.mxu0 0
  %3074 = vmatpush1.bf16.msra.mxu0 0
  %3075 = vmatprep.subr.bf16.mxu0 0
  %3076 = vmatpush1.bf16.msra.mxu0 0
  %3077 = vmatprep.subr.bf16.mxu0 0
  %3078 = vmatpush1.bf16.msra.mxu0 0
  %3079 = vmatprep.subr.bf16.mxu0 0
  %3080 = vmatpush1.bf16.msra.mxu0 0
  %3081 = vmatprep.subr.bf16.mxu0 0
  %3082 = vmatpush1.bf16.msra.mxu0 0
  %3083 = vmatprep.subr.bf16.mxu0 0
  %3084 = vmatpush1.bf16.msra.mxu0 0
  %3085 = vmatprep.subr.bf16.mxu0 0
  %3086 = vmatpush1.bf16.msra.mxu0 0
  %3087 = vmatprep.subr.bf16.mxu0 0
  %3088 = vmatpush1.bf16.msra.mxu0 0
  %3089 = vmatprep.mubr.bf16.mxu0 0
  %3090 = vmatmul.mubr.bf16.gmra.mrb[0].mxu0 %v3019
  %v3091 = vpop.f32.mrb[0].mxu0
  %v3092 = vadd.f32 0.0, %v3091
  %v3093 = vpop.f32.mrb[0].mxu0
  %v3094 = vpop.f32.mrb[0].mxu0
  %v3095 = vadd.f32 0.0, %v3094
  %v3096 = vpop.f32.mrb[0].mxu0
  %3097 = vmatprep.mubr.bf16.mxu0 0
  %3098 = vmatmul.mubr.bf16.gmra.mrb[0].mxu0 %v3020
  %v3099 = vpop.f32.mrb[0].mxu0
  %v3100 = vadd.f32 0.0, %v3099
  %v3101 = vpop.f32.mrb[0].mxu0
  %v3102 = vpop.f32.mrb[0].mxu0
  %v3103 = vadd.f32 0.0, %v3102
  %v3104 = vpop.f32.mrb[0].mxu0
  %3105 = vmatprep.mubr.bf16.mxu0 0
  %3106 = vmatmul.mubr.bf16.gmra.mrb[0].mxu0 %v3021
  %v3107 = vpop.f32.mrb[0].mxu0
  %v3108 = vadd.f32 0.0, %v3107
  %v3109 = vpop.f32.mrb[0].mxu0
  %v3110 = vpop.f32.mrb[0].mxu0
  %v3111 = vadd.f32 0.0, %v3110
  %v3112 = vpop.f32.mrb[0].mxu0
  %3113 = vmatprep.mubr.bf16.mxu0 0
  %3114 = vmatmul.mubr.bf16.gmra.mrb[0].mxu0 %v3022
  %v3115 = vpop.f32.mrb[0].mxu0
  %v3116 = vadd.f32 0.0, %v3115
  %v3117 = vpop.f32.mrb[0].mxu0
  %v3118 = vpop.f32.mrb[0].mxu0
  %v3119 = vadd.f32 0.0, %v3118
  %v3120 = vpop.f32.mrb[0].mxu0
  %3121 = vmatprep.mubr.bf16.mxu0 0
  %3122 = vmatmul.mubr.bf16.gmra.mrb[0].mxu0 %v3023
  %v3123 = vpop.f32.mrb[0].mxu0
  %v3124 = vadd.f32 0.0, %v3123
  %v3125 = vpop.f32.mrb[0].mxu0
  %v3126 = vpop.f32.mrb[0].mxu0
  %v3127 = vadd.f32 0.0, %v3126
  %v3128 = vpop.f32.mrb[0].mxu0
  %3129 = vmatprep.mubr.bf16.mxu0 0
  %3130 = vmatmul.mubr.bf16.gmra.mrb[0].mxu0 %v3024
  %v3131 = vpop.f32.mrb[0].mxu0
  %v3132 = vadd.f32 0.0, %v3131
  %v3133 = vpop.f32.mrb[0].mxu0
  %v3134 = vpop.f32.mrb[0].mxu0
  %v3135 = vadd.f32 0.0, %v3134
  %v3136 = vpop.f32.mrb[0].mxu0
  %3137 = vmatprep.mubr.bf16.mxu0 0
  %3138 = vmatmul.mubr.bf16.gmra.mrb[0].mxu0 %v3025
  %v3139 = vpop.f32.mrb[0].mxu0
  %v3140 = vadd.f32 0.0, %v3139
  %v3141 = vpop.f32.mrb[0].mxu0
  %v3142 = vpop.f32.mrb[0].mxu0
  %v3143 = vadd.f32 0.0, %v3142
  %v3144 = vpop.f32.mrb[0].mxu0
  %3145 = vmatprep.mubr.bf16.mxu0 0
  %3146 = vmatmul.mubr.bf16.gmra.mrb[0].mxu0 %v3026
  %v3147 = vpop.f32.mrb[0].mxu0
  %v3148 = vadd.f32 0.0, %v3147
  %v3149 = vpop.f32.mrb[0].mxu0
  %v3150 = vpop.f32.mrb[0].mxu0
  %v3151 = vadd.f32 0.0, %v3150
  %v3152 = vpop.f32.mrb[0].mxu0
  %3153 = vmatprep.mubr.bf16.mxu0 0
  %3154 = vmatmul.mubr.bf16.gmra.mrb[0].mxu0 %v3027
  %v3155 = vpop.f32.mrb[0].mxu0
  %v3156 = vadd.f32 0.0, %v3155
  %v3157 = vpop.f32.mrb[0].mxu0
  %v3158 = vpop.f32.mrb[0].mxu0
  %v3159 = vadd.f32 0.0, %v3158
  %v3160 = vpop.f32.mrb[0].mxu0
  %3161 = vmatprep.mubr.bf16.mxu0 0
  %3162 = vmatmul.mubr.bf16.gmra.mrb[0].mxu0 %v3028
  %v3163 = vpop.f32.mrb[0].mxu0
  %v3164 = vadd.f32 0.0, %v3163
  %v3165 = vpop.f32.mrb[0].mxu0
  %v3166 = vpop.f32.mrb[0].mxu0
  %v3167 = vadd.f32 0.0, %v3166
  %v3168 = vpop.f32.mrb[0].mxu0
  %3169 = vmatprep.mubr.bf16.mxu0 0
  %3170 = vmatmul.mubr.bf16.gmra.mrb[0].mxu0 %v3029
  %v3171 = vpop.f32.mrb[0].mxu0
  %v3172 = vadd.f32 0.0, %v3171
  %v3173 = vpop.f32.mrb[0].mxu0
  %v3174 = vpop.f32.mrb[0].mxu0
  %v3175 = vadd.f32 0.0, %v3174
  %v3176 = vpop.f32.mrb[0].mxu0
  %3177 = vmatprep.mubr.bf16.mxu0 0
  %3178 = vmatmul.mubr.bf16.gmra.mrb[0].mxu0 %v3030
  %v3179 = vpop.f32.mrb[0].mxu0
  %v3180 = vadd.f32 0.0, %v3179
  %v3181 = vpop.f32.mrb[0].mxu0
  %v3182 = vpop.f32.mrb[0].mxu0
  %v3183 = vadd.f32 0.0, %v3182
  %v3184 = vpop.f32.mrb[0].mxu0
  %3185 = vmatprep.mubr.bf16.mxu0 0
  %3186 = vmatmul.mubr.bf16.gmra.mrb[0].mxu0 %v3031
  %v3187 = vpop.f32.mrb[0].mxu0
  %v3188 = vadd.f32 0.0, %v3187
  %v3189 = vpop.f32.mrb[0].mxu0
  %v3190 = vpop.f32.mrb[0].mxu0
  %v3191 = vadd.f32 0.0, %v3190
  %v3192 = vpop.f32.mrb[0].mxu0
  %3193 = vmatprep.mubr.bf16.mxu0 0
  %3194 = vmatmul.mubr.bf16.gmra.mrb[0].mxu0 %v3032
  %v3195 = vpop.f32.mrb[0].mxu0
  %v3196 = vadd.f32 0.0, %v3195
  %v3197 = vpop.f32.mrb[0].mxu0
  %v3198 = vpop.f32.mrb[0].mxu0
  %v3199 = vadd.f32 0.0, %v3198
  %v3200 = vpop.f32.mrb[0].mxu0
  %3201 = vmatprep.mubr.bf16.mxu0 0
  %3202 = vmatmul.mubr.bf16.gmra.mrb[0].mxu0 %v3033
  %v3203 = vpop.f32.mrb[0].mxu0
  %v3204 = vadd.f32 0.0, %v3203
  %v3205 = vpop.f32.mrb[0].mxu0
  %v3206 = vpop.f32.mrb[0].mxu0
  %v3207 = vadd.f32 0.0, %v3206
  %v3208 = vpop.f32.mrb[0].mxu0
  %3209 = vmatprep.mubr.bf16.mxu0 0
  %3210 = vmatmul.mubr.bf16.gmra.mrb[0].mxu0 %v3034
  %v3211 = vpop.f32.mrb[0].mxu0
  %v3212 = vadd.f32 0.0, %v3211
  %v3213 = vpop.f32.mrb[0].mxu0
  %v3214 = vpop.f32.mrb[0].mxu0
  %v3215 = vadd.f32 0.0, %v3214
  %v3216 = vpop.f32.mrb[0].mxu0
  %3217 = vmatprep.mubr.bf16.mxu0 0
  %3218 = vmatmul.mubr.bf16.gmra.mrb[0].mxu0 %v3035
  %v3219 = vpop.f32.mrb[0].mxu0
  %v3220 = vadd.f32 0.0, %v3219
  %v3221 = vpop.f32.mrb[0].mxu0
  %v3222 = vpop.f32.mrb[0].mxu0
  %v3223 = vadd.f32 0.0, %v3222
  %v3224 = vpop.f32.mrb[0].mxu0
  %3225 = vmatprep.mubr.bf16.mxu0 0
  %3226 = vmatmul.mubr.bf16.gmra.mrb[0].mxu0 %v3036
  %v3227 = vpop.f32.mrb[0].mxu0
  %v3228 = vadd.f32 0.0, %v3227
  %v3229 = vpop.f32.mrb[0].mxu0
  %v3230 = vpop.f32.mrb[0].mxu0
  %v3231 = vadd.f32 0.0, %v3230
  %v3232 = vpop.f32.mrb[0].mxu0
  %3233 = vmatprep.mubr.bf16.mxu0 0
  %3234 = vmatmul.mubr.bf16.gmra.mrb[0].mxu0 %v3037
  %v3235 = vpop.f32.mrb[0].mxu0
  %v3236 = vadd.f32 0.0, %v3235
  %v3237 = vpop.f32.mrb[0].mxu0
  %v3238 = vpop.f32.mrb[0].mxu0
  %v3239 = vadd.f32 0.0, %v3238
  %v3240 = vpop.f32.mrb[0].mxu0
  %3241 = vdwg.mxu0
  %v3242 = vmax.f32 %v2867, %v3092
  %v3243 = vmax.f32 %v2868, %v3095
  %v3244 = vmax.f32 %v2869, %v3100
  %v3245 = vmax.f32 %v2870, %v3103
  %v3246 = vmax.f32 %v2871, %v3108
  %v3247 = vmax.f32 %v2872, %v3111
  %v3248 = vmax.f32 %v2873, %v3116
  %v3249 = vmax.f32 %v2874, %v3119
  %v3250 = vmax.f32 %v2875, %v3124
  %v3251 = vmax.f32 %v2876, %v3127
  %v3252 = vmax.f32 %v2877, %v3132
  %v3253 = vmax.f32 %v2878, %v3135
  %v3254 = vmax.f32 %v2879, %v3140
  %v3255 = vmax.f32 %v2880, %v3143
  %v3256 = vmax.f32 %v2881, %v3148
  %v3257 = vmax.f32 %v2882, %v3151
  %v3258 = vmax.f32 %v2883, %v3156
  %v3259 = vmax.f32 %v2884, %v3159
  %v3260 = vmax.f32 %v2885, %v3164
  %v3261 = vmax.f32 %v2886, %v3167
  %v3262 = vmax.f32 %v2887, %v3172
  %v3263 = vmax.f32 %v2888, %v3175
  %v3264 = vmax.f32 %v2889, %v3180
  %v3265 = vmax.f32 %v2890, %v3183
  %v3266 = vmax.f32 %v2891, %v3188
  %v3267 = vmax.f32 %v2892, %v3191
  %v3268 = vmax.f32 %v2893, %v3196
  %v3269 = vmax.f32 %v2894, %v3199
  %v3270 = vmax.f32 %v2895, %v3204
  %v3271 = vmax.f32 %v2896, %v3207
  %v3272 = vmax.f32 %v2897, %v3212
  %v3273 = vmax.f32 %v2898, %v3215
  %v3274 = vmax.f32 %v2899, %v3220
  %v3275 = vmax.f32 %v2900, %v3223
  %v3276 = vmax.f32 %v2901, %v3228
  %v3277 = vmax.f32 %v2902, %v3231
  %v3278 = vmax.f32 %v2903, %v3236
  %v3279 = vmax.f32 %v2904, %v3239
  %v3280 = vld [vmem:[%s1 + $0xc] sm:$0xf]
  %v3281 = vld [vmem:[%s1 + $0x1c] sm:$0xf]
  %v3282 = vld [vmem:[%s1 + $0x2c] sm:$0xf]
  %v3283 = vld [vmem:[%s1 + $0x3c] sm:$0xf]
  %v3284 = vld [vmem:[%s1 + $0x4c] sm:$0xf]
  %v3285 = vld [vmem:[%s1 + $0x5c] sm:$0xf]
  %v3286 = vld [vmem:[%s1 + $0x6c] sm:$0xf]
  %v3287 = vld [vmem:[%s1 + $0x7c] sm:$0xf]
  %v3288 = vld [vmem:[%s1 + $0x8c] sm:$0xf]
  %v3289 = vld [vmem:[%s1 + $0x9c] sm:$0xf]
  %v3290 = vld [vmem:[%s1 + $0xac] sm:$0xf]
  %v3291 = vld [vmem:[%s1 + $0xbc] sm:$0xf]
  %v3292 = vld [vmem:[%s1 + $0xcc] sm:$0xf]
  %v3293 = vld [vmem:[%s1 + $0xdc] sm:$0xf]
  %v3294 = vld [vmem:[%s1 + $0xec] sm:$0xf]
  %v3295 = vld [vmem:[%s1 + $0xfc] sm:$0xf]
  %v3296 = vld [vmem:[%s1 + $0x10c] sm:$0xf]
  %v3297 = vld [vmem:[%s1 + $0x11c] sm:$0xf]
  %v3298 = vld [vmem:[%s1 + $0x12c] sm:$0xf]
  %v3299 = vld [vmem:[%s1 + $0x13c] sm:$0xf]
  %v3300 = vld [vmem:[%s1 + $0x14c] sm:$0xf]
  %v3301 = vld [vmem:[%s1 + $0x15c] sm:$0xf]
  %v3302 = vld [vmem:[%s1 + $0x16c] sm:$0xf]
  %v3303 = vld [vmem:[%s1 + $0x17c] sm:$0xf]
  %v3304 = vld [vmem:[%s1 + $0x18c] sm:$0xf]
  %v3305 = vld [vmem:[%s1 + $0x19c] sm:$0xf]
  %v3306 = vld [vmem:[%s1 + $0x1ac] sm:$0xf]
  %v3307 = vld [vmem:[%s1 + $0x1bc] sm:$0xf]
  %v3308 = vld [vmem:[%s1 + $0x1cc] sm:$0xf]
  %v3309 = vld [vmem:[%s1 + $0x1dc] sm:$0xf]
  %v3310 = vld [vmem:[%s1 + $0x1ec] sm:$0xf]
  %v3311 = vld [vmem:[%s1 + $0x1fc] sm:$0xf]
  %v3312 = vld [vmem:[%s1 + $0x20c] sm:$0xf]
  %v3313 = vld [vmem:[%s1 + $0x21c] sm:$0xf]
  %v3314 = vld [vmem:[%s1 + $0x22c] sm:$0xf]
  %v3315 = vld [vmem:[%s1 + $0x23c] sm:$0xf]
  %v3316 = vld [vmem:[%s1 + $0x24c] sm:$0xf]
  %v3317 = vld [vmem:[%s1 + $0x25c] sm:$0xf]
  %v3356 = vunpack.c.l.b16 %v3280
  %v3357 = vunpack.c.l.b16 %v3281
  %v3358 = vunpack.c.l.b16 %v3282
  %v3359 = vunpack.c.l.b16 %v3283
  %v3360 = vunpack.c.l.b16 %v3284
  %v3361 = vunpack.c.l.b16 %v3285
  %v3362 = vunpack.c.l.b16 %v3286
  %v3363 = vunpack.c.l.b16 %v3287
  %v3364 = vunpack.c.l.b16 %v3288
  %v3365 = vunpack.c.l.b16 %v3289
  %v3366 = vunpack.c.l.b16 %v3290
  %v3367 = vunpack.c.l.b16 %v3291
  %v3368 = vunpack.c.l.b16 %v3292
  %v3369 = vunpack.c.l.b16 %v3293
  %v3370 = vunpack.c.l.b16 %v3294
  %v3371 = vunpack.c.l.b16 %v3295
  %v3372 = vunpack.c.l.b16 %v3296
  %v3373 = vunpack.c.l.b16 %v3297
  %v3374 = vunpack.c.l.b16 %v3298
  %v3375 = vunpack.c.l.b16 %v3299
  %v3376 = vunpack.c.l.b16 %v3300
  %v3377 = vunpack.c.l.b16 %v3301
  %v3378 = vunpack.c.l.b16 %v3302
  %v3379 = vunpack.c.l.b16 %v3303
  %v3380 = vunpack.c.l.b16 %v3304
  %v3381 = vunpack.c.l.b16 %v3305
  %v3382 = vunpack.c.l.b16 %v3306
  %v3383 = vunpack.c.l.b16 %v3307
  %v3384 = vunpack.c.l.b16 %v3308
  %v3385 = vunpack.c.l.b16 %v3309
  %v3386 = vunpack.c.l.b16 %v3310
  %v3387 = vunpack.c.l.b16 %v3311
  %v3388 = vunpack.c.l.b16 %v3312
  %v3389 = vunpack.c.l.b16 %v3313
  %v3390 = vunpack.c.l.b16 %v3314
  %v3391 = vunpack.c.l.b16 %v3315
  %v3392 = vunpack.c.l.b16 %v3316
  %v3393 = vunpack.c.l.b16 %v3317
  %v3394 = vpack.c.b16 %v3357, %v3356
  %v3395 = vpack.c.b16 %v3359, %v3358
  %v3396 = vpack.c.b16 %v3361, %v3360
  %v3397 = vpack.c.b16 %v3363, %v3362
  %v3398 = vpack.c.b16 %v3365, %v3364
  %v3399 = vpack.c.b16 %v3367, %v3366
  %v3400 = vpack.c.b16 %v3369, %v3368
  %v3401 = vpack.c.b16 %v3371, %v3370
  %v3402 = vpack.c.b16 %v3373, %v3372
  %v3403 = vpack.c.b16 %v3375, %v3374
  %v3404 = vpack.c.b16 %v3377, %v3376
  %v3405 = vpack.c.b16 %v3379, %v3378
  %v3406 = vpack.c.b16 %v3381, %v3380
  %v3407 = vpack.c.b16 %v3383, %v3382
  %v3408 = vpack.c.b16 %v3385, %v3384
  %v3409 = vpack.c.b16 %v3387, %v3386
  %v3410 = vpack.c.b16 %v3389, %v3388
  %v3411 = vpack.c.b16 %v3391, %v3390
  %v3412 = vpack.c.b16 %v3393, %v3392
  %3432 = vmatprep.subr.bf16.mxu0 0
  %3433 = vmatpush1.bf16.msra.mxu0 %v2329
  %3434 = vmatprep.subr.bf16.mxu0 0
  %3435 = vmatpush1.bf16.msra.mxu0 %v2330
  %3436 = vmatprep.subr.bf16.mxu0 0
  %3437 = vmatpush1.bf16.msra.mxu0 %v2331
  %3438 = vmatprep.subr.bf16.mxu0 0
  %3439 = vmatpush1.bf16.msra.mxu0 %v2332
  %3440 = vmatprep.subr.bf16.mxu0 0
  %3441 = vmatpush1.bf16.msra.mxu0 %v2333
  %3442 = vmatprep.subr.bf16.mxu0 0
  %3443 = vmatpush1.bf16.msra.mxu0 %v2334
  %3444 = vmatprep.subr.bf16.mxu0 0
  %3445 = vmatpush1.bf16.msra.mxu0 %v2335
  %3446 = vmatprep.subr.bf16.mxu0 0
  %3447 = vmatpush1.bf16.msra.mxu0 %v2336
  %3448 = vmatprep.subr.bf16.mxu0 0
  %3449 = vmatpush1.bf16.msra.mxu0 0
  %3450 = vmatprep.subr.bf16.mxu0 0
  %3451 = vmatpush1.bf16.msra.mxu0 0
  %3452 = vmatprep.subr.bf16.mxu0 0
  %3453 = vmatpush1.bf16.msra.mxu0 0
  %3454 = vmatprep.subr.bf16.mxu0 0
  %3455 = vmatpush1.bf16.msra.mxu0 0
  %3456 = vmatprep.subr.bf16.mxu0 0
  %3457 = vmatpush1.bf16.msra.mxu0 0
  %3458 = vmatprep.subr.bf16.mxu0 0
  %3459 = vmatpush1.bf16.msra.mxu0 0
  %3460 = vmatprep.subr.bf16.mxu0 0
  %3461 = vmatpush1.bf16.msra.mxu0 0
  %3462 = vmatprep.subr.bf16.mxu0 0
  %3463 = vmatpush1.bf16.msra.mxu0 0
  %3464 = vmatprep.mubr.bf16.mxu0 0
  %3465 = vmatmul.mubr.bf16.gmra.mrb[0].mxu0 %v3394
  %v3466 = vpop.f32.mrb[0].mxu0
  %v3467 = vadd.f32 0.0, %v3466
  %v3468 = vpop.f32.mrb[0].mxu0
  %v3469 = vpop.f32.mrb[0].mxu0
  %v3470 = vadd.f32 0.0, %v3469
  %v3471 = vpop.f32.mrb[0].mxu0
  %3472 = vmatprep.mubr.bf16.mxu0 0
  %3473 = vmatmul.mubr.bf16.gmra.mrb[0].mxu0 %v3395
  %v3474 = vpop.f32.mrb[0].mxu0
  %v3475 = vadd.f32 0.0, %v3474
  %v3476 = vpop.f32.mrb[0].mxu0
  %v3477 = vpop.f32.mrb[0].mxu0
  %v3478 = vadd.f32 0.0, %v3477
  %v3479 = vpop.f32.mrb[0].mxu0
  %3480 = vmatprep.mubr.bf16.mxu0 0
  %3481 = vmatmul.mubr.bf16.gmra.mrb[0].mxu0 %v3396
  %v3482 = vpop.f32.mrb[0].mxu0
  %v3483 = vadd.f32 0.0, %v3482
  %v3484 = vpop.f32.mrb[0].mxu0
  %v3485 = vpop.f32.mrb[0].mxu0
  %v3486 = vadd.f32 0.0, %v3485
  %v3487 = vpop.f32.mrb[0].mxu0
  %3488 = vmatprep.mubr.bf16.mxu0 0
  %3489 = vmatmul.mubr.bf16.gmra.mrb[0].mxu0 %v3397
  %v3490 = vpop.f32.mrb[0].mxu0
  %v3491 = vadd.f32 0.0, %v3490
  %v3492 = vpop.f32.mrb[0].mxu0
  %v3493 = vpop.f32.mrb[0].mxu0
  %v3494 = vadd.f32 0.0, %v3493
  %v3495 = vpop.f32.mrb[0].mxu0
  %3496 = vmatprep.mubr.bf16.mxu0 0
  %3497 = vmatmul.mubr.bf16.gmra.mrb[0].mxu0 %v3398
  %v3498 = vpop.f32.mrb[0].mxu0
  %v3499 = vadd.f32 0.0, %v3498
  %v3500 = vpop.f32.mrb[0].mxu0
  %v3501 = vpop.f32.mrb[0].mxu0
  %v3502 = vadd.f32 0.0, %v3501
  %v3503 = vpop.f32.mrb[0].mxu0
  %3504 = vmatprep.mubr.bf16.mxu0 0
  %3505 = vmatmul.mubr.bf16.gmra.mrb[0].mxu0 %v3399
  %v3506 = vpop.f32.mrb[0].mxu0
  %v3507 = vadd.f32 0.0, %v3506
  %v3508 = vpop.f32.mrb[0].mxu0
  %v3509 = vpop.f32.mrb[0].mxu0
  %v3510 = vadd.f32 0.0, %v3509
  %v3511 = vpop.f32.mrb[0].mxu0
  %3512 = vmatprep.mubr.bf16.mxu0 0
  %3513 = vmatmul.mubr.bf16.gmra.mrb[0].mxu0 %v3400
  %v3514 = vpop.f32.mrb[0].mxu0
  %v3515 = vadd.f32 0.0, %v3514
  %v3516 = vpop.f32.mrb[0].mxu0
  %v3517 = vpop.f32.mrb[0].mxu0
  %v3518 = vadd.f32 0.0, %v3517
  %v3519 = vpop.f32.mrb[0].mxu0
  %3520 = vmatprep.mubr.bf16.mxu0 0
  %3521 = vmatmul.mubr.bf16.gmra.mrb[0].mxu0 %v3401
  %v3522 = vpop.f32.mrb[0].mxu0
  %v3523 = vadd.f32 0.0, %v3522
  %v3524 = vpop.f32.mrb[0].mxu0
  %v3525 = vpop.f32.mrb[0].mxu0
  %v3526 = vadd.f32 0.0, %v3525
  %v3527 = vpop.f32.mrb[0].mxu0
  %3528 = vmatprep.mubr.bf16.mxu0 0
  %3529 = vmatmul.mubr.bf16.gmra.mrb[0].mxu0 %v3402
  %v3530 = vpop.f32.mrb[0].mxu0
  %v3531 = vadd.f32 0.0, %v3530
  %v3532 = vpop.f32.mrb[0].mxu0
  %v3533 = vpop.f32.mrb[0].mxu0
  %v3534 = vadd.f32 0.0, %v3533
  %v3535 = vpop.f32.mrb[0].mxu0
  %3536 = vmatprep.mubr.bf16.mxu0 0
  %3537 = vmatmul.mubr.bf16.gmra.mrb[0].mxu0 %v3403
  %v3538 = vpop.f32.mrb[0].mxu0
  %v3539 = vadd.f32 0.0, %v3538
  %v3540 = vpop.f32.mrb[0].mxu0
  %v3541 = vpop.f32.mrb[0].mxu0
  %v3542 = vadd.f32 0.0, %v3541
  %v3543 = vpop.f32.mrb[0].mxu0
  %3544 = vmatprep.mubr.bf16.mxu0 0
  %3545 = vmatmul.mubr.bf16.gmra.mrb[0].mxu0 %v3404
  %v3546 = vpop.f32.mrb[0].mxu0
  %v3547 = vadd.f32 0.0, %v3546
  %v3548 = vpop.f32.mrb[0].mxu0
  %v3549 = vpop.f32.mrb[0].mxu0
  %v3550 = vadd.f32 0.0, %v3549
  %v3551 = vpop.f32.mrb[0].mxu0
  %3552 = vmatprep.mubr.bf16.mxu0 0
  %3553 = vmatmul.mubr.bf16.gmra.mrb[0].mxu0 %v3405
  %v3554 = vpop.f32.mrb[0].mxu0
  %v3555 = vadd.f32 0.0, %v3554
  %v3556 = vpop.f32.mrb[0].mxu0
  %v3557 = vpop.f32.mrb[0].mxu0
  %v3558 = vadd.f32 0.0, %v3557
  %v3559 = vpop.f32.mrb[0].mxu0
  %3560 = vmatprep.mubr.bf16.mxu0 0
  %3561 = vmatmul.mubr.bf16.gmra.mrb[0].mxu0 %v3406
  %v3562 = vpop.f32.mrb[0].mxu0
  %v3563 = vadd.f32 0.0, %v3562
  %v3564 = vpop.f32.mrb[0].mxu0
  %v3565 = vpop.f32.mrb[0].mxu0
  %v3566 = vadd.f32 0.0, %v3565
  %v3567 = vpop.f32.mrb[0].mxu0
  %3568 = vmatprep.mubr.bf16.mxu0 0
  %3569 = vmatmul.mubr.bf16.gmra.mrb[0].mxu0 %v3407
  %v3570 = vpop.f32.mrb[0].mxu0
  %v3571 = vadd.f32 0.0, %v3570
  %v3572 = vpop.f32.mrb[0].mxu0
  %v3573 = vpop.f32.mrb[0].mxu0
  %v3574 = vadd.f32 0.0, %v3573
  %v3575 = vpop.f32.mrb[0].mxu0
  %3576 = vmatprep.mubr.bf16.mxu0 0
  %3577 = vmatmul.mubr.bf16.gmra.mrb[0].mxu0 %v3408
  %v3578 = vpop.f32.mrb[0].mxu0
  %v3579 = vadd.f32 0.0, %v3578
  %v3580 = vpop.f32.mrb[0].mxu0
  %v3581 = vpop.f32.mrb[0].mxu0
  %v3582 = vadd.f32 0.0, %v3581
  %v3583 = vpop.f32.mrb[0].mxu0
  %3584 = vmatprep.mubr.bf16.mxu0 0
  %3585 = vmatmul.mubr.bf16.gmra.mrb[0].mxu0 %v3409
  %v3586 = vpop.f32.mrb[0].mxu0
  %v3587 = vadd.f32 0.0, %v3586
  %v3588 = vpop.f32.mrb[0].mxu0
  %v3589 = vpop.f32.mrb[0].mxu0
  %v3590 = vadd.f32 0.0, %v3589
  %v3591 = vpop.f32.mrb[0].mxu0
  %3592 = vmatprep.mubr.bf16.mxu0 0
  %3593 = vmatmul.mubr.bf16.gmra.mrb[0].mxu0 %v3410
  %v3594 = vpop.f32.mrb[0].mxu0
  %v3595 = vadd.f32 0.0, %v3594
  %v3596 = vpop.f32.mrb[0].mxu0
  %v3597 = vpop.f32.mrb[0].mxu0
  %v3598 = vadd.f32 0.0, %v3597
  %v3599 = vpop.f32.mrb[0].mxu0
  %3600 = vmatprep.mubr.bf16.mxu0 0
  %3601 = vmatmul.mubr.bf16.gmra.mrb[0].mxu0 %v3411
  %v3602 = vpop.f32.mrb[0].mxu0
  %v3603 = vadd.f32 0.0, %v3602
  %v3604 = vpop.f32.mrb[0].mxu0
  %v3605 = vpop.f32.mrb[0].mxu0
  %v3606 = vadd.f32 0.0, %v3605
  %v3607 = vpop.f32.mrb[0].mxu0
  %3608 = vmatprep.mubr.bf16.mxu0 0
  %3609 = vmatmul.mubr.bf16.gmra.mrb[0].mxu0 %v3412
  %v3610 = vpop.f32.mrb[0].mxu0
  %v3611 = vadd.f32 0.0, %v3610
  %v3612 = vpop.f32.mrb[0].mxu0
  %v3613 = vpop.f32.mrb[0].mxu0
  %v3614 = vadd.f32 0.0, %v3613
  %v3615 = vpop.f32.mrb[0].mxu0
  %3616 = vdwg.mxu0
  %v3617 = vmax.f32 %v3242, %v3467
  %v3618 = vmax.f32 %v3243, %v3470
  %v3619 = vmax.f32 %v3244, %v3475
  %v3620 = vmax.f32 %v3245, %v3478
  %v3621 = vmax.f32 %v3246, %v3483
  %v3622 = vmax.f32 %v3247, %v3486
  %v3623 = vmax.f32 %v3248, %v3491
  %v3624 = vmax.f32 %v3249, %v3494
  %v3625 = vmax.f32 %v3250, %v3499
  %v3626 = vmax.f32 %v3251, %v3502
  %v3627 = vmax.f32 %v3252, %v3507
  %v3628 = vmax.f32 %v3253, %v3510
  %v3629 = vmax.f32 %v3254, %v3515
  %v3630 = vmax.f32 %v3255, %v3518
  %v3631 = vmax.f32 %v3256, %v3523
  %v3632 = vmax.f32 %v3257, %v3526
  %v3633 = vmax.f32 %v3258, %v3531
  %v3634 = vmax.f32 %v3259, %v3534
  %v3635 = vmax.f32 %v3260, %v3539
  %v3636 = vmax.f32 %v3261, %v3542
  %v3637 = vmax.f32 %v3262, %v3547
  %v3638 = vmax.f32 %v3263, %v3550
  %v3639 = vmax.f32 %v3264, %v3555
  %v3640 = vmax.f32 %v3265, %v3558
  %v3641 = vmax.f32 %v3266, %v3563
  %v3642 = vmax.f32 %v3267, %v3566
  %v3643 = vmax.f32 %v3268, %v3571
  %v3644 = vmax.f32 %v3269, %v3574
  %v3645 = vmax.f32 %v3270, %v3579
  %v3646 = vmax.f32 %v3271, %v3582
  %v3647 = vmax.f32 %v3272, %v3587
  %v3648 = vmax.f32 %v3273, %v3590
  %v3649 = vmax.f32 %v3274, %v3595
  %v3650 = vmax.f32 %v3275, %v3598
  %v3651 = vmax.f32 %v3276, %v3603
  %v3652 = vmax.f32 %v3277, %v3606
  %v3653 = vmax.f32 %v3278, %v3611
  %v3654 = vmax.f32 %v3279, %v3614
  %v3655 = vld [vmem:[%s5] sm:$0x1]
  %v3657 = vlaneseq
  %v3658 = vshrl.u32 %v3657, 7
  %v3659 = vsub.s32 0, %v3658
  %v3660 = vrot.slane %v3655, %v3659
  %v3662 = vadd.f32 %v3617, %v3660
  %v3663 = vadd.f32 %v3618, %v3660
  %v3664 = vadd.f32 %v3619, %v3660
  %v3665 = vadd.f32 %v3620, %v3660
  %v3666 = vadd.f32 %v3621, %v3660
  %v3667 = vadd.f32 %v3622, %v3660
  %v3668 = vadd.f32 %v3623, %v3660
  %v3669 = vadd.f32 %v3624, %v3660
  %v3670 = vadd.f32 %v3625, %v3660
  %v3671 = vadd.f32 %v3626, %v3660
  %v3672 = vadd.f32 %v3627, %v3660
  %v3673 = vadd.f32 %v3628, %v3660
  %v3674 = vadd.f32 %v3629, %v3660
  %v3675 = vadd.f32 %v3630, %v3660
  %v3676 = vadd.f32 %v3631, %v3660
  %v3677 = vadd.f32 %v3632, %v3660
  %v3678 = vadd.f32 %v3633, %v3660
  %v3679 = vadd.f32 %v3634, %v3660
  %v3680 = vadd.f32 %v3635, %v3660
  %v3681 = vadd.f32 %v3636, %v3660
  %v3682 = vadd.f32 %v3637, %v3660
  %v3683 = vadd.f32 %v3638, %v3660
  %v3684 = vadd.f32 %v3639, %v3660
  %v3685 = vadd.f32 %v3640, %v3660
  %v3686 = vadd.f32 %v3641, %v3660
  %v3687 = vadd.f32 %v3642, %v3660
  %v3688 = vadd.f32 %v3643, %v3660
  %v3689 = vadd.f32 %v3644, %v3660
  %v3690 = vadd.f32 %v3645, %v3660
  %v3691 = vadd.f32 %v3646, %v3660
  %v3692 = vadd.f32 %v3647, %v3660
  %v3693 = vadd.f32 %v3648, %v3660
  %v3694 = vadd.f32 %v3649, %v3660
  %v3695 = vadd.f32 %v3650, %v3660
  %v3696 = vadd.f32 %v3651, %v3660
  %v3697 = vadd.f32 %v3652, %v3660
  %v3698 = vadd.f32 %v3653, %v3660
  %v3699 = vadd.f32 %v3654, %v3660
  %v3700 = vmax.f32 %v3662, 0.0
  %v3701 = vmax.f32 %v3663, 0.0
  %v3702 = vmax.f32 %v3664, 0.0
  %v3703 = vmax.f32 %v3665, 0.0
  %v3704 = vmax.f32 %v3666, 0.0
  %v3705 = vmax.f32 %v3667, 0.0
  %v3706 = vmax.f32 %v3668, 0.0
  %v3707 = vmax.f32 %v3669, 0.0
  %v3708 = vmax.f32 %v3670, 0.0
  %v3709 = vmax.f32 %v3671, 0.0
  %v3710 = vmax.f32 %v3672, 0.0
  %v3711 = vmax.f32 %v3673, 0.0
  %v3712 = vmax.f32 %v3674, 0.0
  %v3713 = vmax.f32 %v3675, 0.0
  %v3714 = vmax.f32 %v3676, 0.0
  %v3715 = vmax.f32 %v3677, 0.0
  %v3716 = vmax.f32 %v3678, 0.0
  %v3717 = vmax.f32 %v3679, 0.0
  %v3718 = vmax.f32 %v3680, 0.0
  %v3719 = vmax.f32 %v3681, 0.0
  %v3720 = vmax.f32 %v3682, 0.0
  %v3721 = vmax.f32 %v3683, 0.0
  %v3722 = vmax.f32 %v3684, 0.0
  %v3723 = vmax.f32 %v3685, 0.0
  %v3724 = vmax.f32 %v3686, 0.0
  %v3725 = vmax.f32 %v3687, 0.0
  %v3726 = vmax.f32 %v3688, 0.0
  %v3727 = vmax.f32 %v3689, 0.0
  %v3728 = vmax.f32 %v3690, 0.0
  %v3729 = vmax.f32 %v3691, 0.0
  %v3730 = vmax.f32 %v3692, 0.0
  %v3731 = vmax.f32 %v3693, 0.0
  %v3732 = vmax.f32 %v3694, 0.0
  %v3733 = vmax.f32 %v3695, 0.0
  %v3734 = vmax.f32 %v3696, 0.0
  %v3735 = vmax.f32 %v3697, 0.0
  %v3736 = vmax.f32 %v3698, 0.0
  %v3737 = vmax.f32 %v3699, 0.0
  %3738 = vst [vmem:[%s7] sm:$0xff] %v3700
  %3739 = vst [vmem:[%s7 + $0x8] sm:$0xff] %v3701
  %3740 = vst [vmem:[%s7 + $0x10] sm:$0xff] %v3702
  %3741 = vst [vmem:[%s7 + $0x18] sm:$0xff] %v3703
  %3742 = vst [vmem:[%s7 + $0x20] sm:$0xff] %v3704
  %3743 = vst [vmem:[%s7 + $0x28] sm:$0xff] %v3705
  %3744 = vst [vmem:[%s7 + $0x30] sm:$0xff] %v3706
  %3745 = vst [vmem:[%s7 + $0x38] sm:$0xff] %v3707
  %3746 = vst [vmem:[%s7 + $0x40] sm:$0xff] %v3708
  %3747 = vst [vmem:[%s7 + $0x48] sm:$0xff] %v3709
  %3748 = vst [vmem:[%s7 + $0x50] sm:$0xff] %v3710
  %3749 = vst [vmem:[%s7 + $0x58] sm:$0xff] %v3711
  %3750 = vst [vmem:[%s7 + $0x60] sm:$0xff] %v3712
  %3751 = vst [vmem:[%s7 + $0x68] sm:$0xff] %v3713
  %3752 = vst [vmem:[%s7 + $0x70] sm:$0xff] %v3714
  %3753 = vst [vmem:[%s7 + $0x78] sm:$0xff] %v3715
  %3754 = vst [vmem:[%s7 + $0x80] sm:$0xff] %v3716
  %3755 = vst [vmem:[%s7 + $0x88] sm:$0xff] %v3717
  %3756 = vst [vmem:[%s7 + $0x90] sm:$0xff] %v3718
  %3757 = vst [vmem:[%s7 + $0x98] sm:$0xff] %v3719
  %3758 = vst [vmem:[%s7 + $0xa0] sm:$0xff] %v3720
  %3759 = vst [vmem:[%s7 + $0xa8] sm:$0xff] %v3721
  %3760 = vst [vmem:[%s7 + $0xb0] sm:$0xff] %v3722
  %3761 = vst [vmem:[%s7 + $0xb8] sm:$0xff] %v3723
  %3762 = vst [vmem:[%s7 + $0xc0] sm:$0xff] %v3724
  %3763 = vst [vmem:[%s7 + $0xc8] sm:$0xff] %v3725
  %3764 = vst [vmem:[%s7 + $0xd0] sm:$0xff] %v3726
  %3765 = vst [vmem:[%s7 + $0xd8] sm:$0xff] %v3727
  %3766 = vst [vmem:[%s7 + $0xe0] sm:$0xff] %v3728
  %3767 = vst [vmem:[%s7 + $0xe8] sm:$0xff] %v3729
  %3768 = vst [vmem:[%s7 + $0xf0] sm:$0xff] %v3730
  %3769 = vst [vmem:[%s7 + $0xf8] sm:$0xff] %v3731
  %3770 = vst [vmem:[%s7 + $0x100] sm:$0xff] %v3732
  %3771 = vst [vmem:[%s7 + $0x108] sm:$0xff] %v3733
  %3772 = vst [vmem:[%s7 + $0x110] sm:$0xff] %v3734
  %3773 = vst [vmem:[%s7 + $0x118] sm:$0xff] %v3735
  %3774 = vst [vmem:[%s7 + $0x120] sm:$0xff] %v3736
  %3775 = vst [vmem:[%s7 + $0x128] sm:$0xff] %v3737
  // Predicated region
  $region26: #{net_forward.3} parent=0 // pred_check
    _
  $region27: #{net_forward.3} parent=0 // pred_check_branch
    %3777 = sbr.rel (0) target = $region29
  $region28: #{net_forward.3} parent=0 // pred_region
    _
  $region29: #{net_forward.3} parent=0 // pred_fallthru
    _
  // Predicated region
  $region30: #{net_forward.3} parent=0 // pred_check
    _
  $region31: #{net_forward.3} parent=0 // pred_check_branch
    %3779 = sbr.rel (0) target = $region33
  $region32: #{net_forward.3} parent=0 // pred_region
    _
  $region33: #{net_forward.3} parent=0 // pred_fallthru
    _
  // Predicated region
  $region34: #{net_forward.3} parent=0 // pred_check
    _
  $region35: #{net_forward.3} parent=0 // pred_check_branch
    %3781 = sbr.rel (0) target = $region37
  $region36: #{net_forward.3} parent=0 // pred_region
    _
  $region37: #{net_forward.3} parent=0 // pred_fallthru
    _
  // Predicated region
  $region38: #{net_forward.3} parent=0 // pred_check
    _
  $region39: #{net_forward.3} parent=0 // pred_check_branch
    %3783 = sbr.rel (0) target = $region41
  $region40: #{net_forward.3} parent=0 // pred_region
    _
  $region41: #{net_forward.3} parent=0 // pred_fallthru
    _

// kernel: net_forward.4
$region0: #{net_forward.4}
  #allocation0 [shape = 'u32[]', space=smem, size = 0x4, offset = 0x4, fixed_abs, tag = 'smem constant byte address 0x4 - core index']
  #allocation1 [shape = 'u32[144,128]{1,0:T(1,128)}', space=vmem, size = 0x12000, scoped, tag = 'internal scratch']
  %s0 = inlined_call_operand.vmem [shape: bf16[64,1024], index: 0, kind: input, shape index: {}]
  %s1 = inlined_call_operand.vmem [shape: bf16[32,512], index: 1, kind: input, shape index: {}]
  %s2 = inlined_call_operand.vmem [shape: bf16[256,128], index: 2, kind: input, shape index: {}]
  %s3 = inlined_call_operand.vmem [shape: f32[1,128], index: 3, kind: input, shape index: {}]
  %s4 = inlined_call_operand.vmem [shape: bf16[128,128], index: 4, kind: input, shape index: {}]
  %s5 = inlined_call_operand.vmem [shape: f32[1,128], index: 5, kind: input, shape index: {}]
  %s6 = inlined_call_operand.vmem [shape: f32[64,128], index: 6, kind: output, shape index: {0}]
  %s7 = inlined_call_operand.vmem [shape: f32[32,128], index: 7, kind: output, shape index: {1}]
  %8 = xla_tuple %s6, %s7
  %s9 = sld [smem:[#allocation0]]
  $region42: #{net_forward.4} parent=0
    _
  %s11 = ssub.s32 1, %s9
  %s12 = scalar_select 0, %s11, %s9
  // Predicated region
  $region2: #{net_forward.4} parent=0 // pred_check
    _
  $region3: #{net_forward.4} parent=0 // pred_check_branch
    %14 = sbr.rel (0) target = $region5
  $region4: #{net_forward.4} parent=0 // pred_region
    _
  $region5: #{net_forward.4} parent=0 // pred_fallthru
    _
  // Predicated region
  $region6: #{net_forward.4} parent=0 // pred_check
    _
  $region7: #{net_forward.4} parent=0 // pred_check_branch
    %16 = sbr.rel (0) target = $region9
  $region8: #{net_forward.4} parent=0 // pred_region
    _
  $region9: #{net_forward.4} parent=0 // pred_fallthru
    _
  // Predicated region
  $region10: #{net_forward.4} parent=0 // pred_check
    _
  $region11: #{net_forward.4} parent=0 // pred_check_branch
    %18 = sbr.rel (0) target = $region13
  $region12: #{net_forward.4} parent=0 // pred_region
    _
  $region13: #{net_forward.4} parent=0 // pred_fallthru
    _
  // Predicated region
  $region14: #{net_forward.4} parent=0 // pred_check
    _
  $region15: #{net_forward.4} parent=0 // pred_check_branch
    %20 = sbr.rel (0) target = $region17
  $region16: #{net_forward.4} parent=0 // pred_region
    _
  $region17: #{net_forward.4} parent=0 // pred_fallthru
    _
  // Predicated region
  $region18: #{net_forward.4} parent=0 // pred_check
    _
  $region19: #{net_forward.4} parent=0 // pred_check_branch
    %22 = sbr.rel (0) target = $region21
  $region20: #{net_forward.4} parent=0 // pred_region
    _
  $region21: #{net_forward.4} parent=0 // pred_fallthru
    _
  // Predicated region
  $region22: #{net_forward.4} parent=0 // pred_check
    _
  $region23: #{net_forward.4} parent=0 // pred_check_branch
    %24 = sbr.rel (0) target = $region25
  $region24: #{net_forward.4} parent=0 // pred_region
    _
  $region25: #{net_forward.4} parent=0 // pred_fallthru
    _
  %v26 = vld [vmem:[%s2] sm:$0xf]
  %v27 = vld [vmem:[%s2 + $0x4] sm:$0xf]
  %v28 = vld [vmem:[%s2 + $0x8] sm:$0xf]
  %v29 = vld [vmem:[%s2 + $0xc] sm:$0xf]
  %v30 = vld [vmem:[%s2 + $0x10] sm:$0xf]
  %v31 = vld [vmem:[%s2 + $0x14] sm:$0xf]
  %v32 = vld [vmem:[%s2 + $0x18] sm:$0xf]
  %v33 = vld [vmem:[%s2 + $0x1c] sm:$0xf]
  %v34 = vld [vmem:[%s2 + $0x20] sm:$0xf]
  %v35 = vld [vmem:[%s2 + $0x24] sm:$0xf]
  %v36 = vld [vmem:[%s2 + $0x28] sm:$0xf]
  %v37 = vld [vmem:[%s2 + $0x2c] sm:$0xf]
  %v38 = vld [vmem:[%s2 + $0x30] sm:$0xf]
  %v39 = vld [vmem:[%s2 + $0x34] sm:$0xf]
  %v40 = vld [vmem:[%s2 + $0x38] sm:$0xf]
  %v41 = vld [vmem:[%s2 + $0x3c] sm:$0xf]
  %v42 = vld [vmem:[%s2 + $0x40] sm:$0xf]
  %v43 = vld [vmem:[%s2 + $0x44] sm:$0xf]
  %v44 = vld [vmem:[%s2 + $0x48] sm:$0xf]
  %v45 = vld [vmem:[%s2 + $0x4c] sm:$0xf]
  %v46 = vld [vmem:[%s2 + $0x50] sm:$0xf]
  %v47 = vld [vmem:[%s2 + $0x54] sm:$0xf]
  %v48 = vld [vmem:[%s2 + $0x58] sm:$0xf]
  %v49 = vld [vmem:[%s2 + $0x5c] sm:$0xf]
  %v50 = vld [vmem:[%s2 + $0x60] sm:$0xf]
  %v51 = vld [vmem:[%s2 + $0x64] sm:$0xf]
  %v52 = vld [vmem:[%s2 + $0x68] sm:$0xf]
  %v53 = vld [vmem:[%s2 + $0x6c] sm:$0xf]
  %v54 = vld [vmem:[%s2 + $0x70] sm:$0xf]
  %v55 = vld [vmem:[%s2 + $0x74] sm:$0xf]
  %v56 = vld [vmem:[%s2 + $0x78] sm:$0xf]
  %v57 = vld [vmem:[%s2 + $0x7c] sm:$0xf]
  %v58 = vld [vmem:[%s0] sm:$0xff]
  %v59 = vld [vmem:[%s0 + $0x20] sm:$0xff]
  %v60 = vld [vmem:[%s0 + $0x40] sm:$0xff]
  %v61 = vld [vmem:[%s0 + $0x60] sm:$0xff]
  %v62 = vld [vmem:[%s0 + $0x80] sm:$0xff]
  %v63 = vld [vmem:[%s0 + $0xa0] sm:$0xff]
  %v64 = vld [vmem:[%s0 + $0xc0] sm:$0xff]
  %v65 = vld [vmem:[%s0 + $0xe0] sm:$0xff]
  %v74 = vunpack.c.l.b16 %v58
  %v75 = vunpack.c.h.b16 %v58
  %v76 = vunpack.c.l.b16 %v59
  %v77 = vunpack.c.h.b16 %v59
  %v78 = vunpack.c.l.b16 %v60
  %v79 = vunpack.c.h.b16 %v60
  %v80 = vunpack.c.l.b16 %v61
  %v81 = vunpack.c.h.b16 %v61
  %v82 = vunpack.c.l.b16 %v62
  %v83 = vunpack.c.h.b16 %v62
  %v84 = vunpack.c.l.b16 %v63
  %v85 = vunpack.c.h.b16 %v63
  %v86 = vunpack.c.l.b16 %v64
  %v87 = vunpack.c.h.b16 %v64
  %v88 = vunpack.c.l.b16 %v65
  %v89 = vunpack.c.h.b16 %v65
  %v90 = vpack.c.b16 %v76, %v74
  %v91 = vpack.c.b16 %v77, %v75
  %v92 = vpack.c.b16 %v80, %v78
  %v93 = vpack.c.b16 %v81, %v79
  %v94 = vpack.c.b16 %v84, %v82
  %v95 = vpack.c.b16 %v85, %v83
  %v96 = vpack.c.b16 %v88, %v86
  %v97 = vpack.c.b16 %v89, %v87
  %v138 = vunpack.c.l.b16 %v26
  %v139 = vunpack.c.l.b16 %v27
  %v140 = vunpack.c.l.b16 %v28
  %v141 = vunpack.c.l.b16 %v29
  %v142 = vunpack.c.l.b16 %v30
  %v143 = vunpack.c.l.b16 %v31
  %v144 = vunpack.c.l.b16 %v32
  %v145 = vunpack.c.l.b16 %v33
  %v146 = vunpack.c.l.b16 %v34
  %v147 = vunpack.c.l.b16 %v35
  %v148 = vunpack.c.l.b16 %v36
  %v149 = vunpack.c.l.b16 %v37
  %v150 = vunpack.c.l.b16 %v38
  %v151 = vunpack.c.l.b16 %v39
  %v152 = vunpack.c.l.b16 %v40
  %v153 = vunpack.c.l.b16 %v41
  %v154 = vunpack.c.l.b16 %v42
  %v155 = vunpack.c.l.b16 %v43
  %v156 = vunpack.c.l.b16 %v44
  %v157 = vunpack.c.l.b16 %v45
  %v158 = vunpack.c.l.b16 %v46
  %v159 = vunpack.c.l.b16 %v47
  %v160 = vunpack.c.l.b16 %v48
  %v161 = vunpack.c.l.b16 %v49
  %v162 = vunpack.c.l.b16 %v50
  %v163 = vunpack.c.l.b16 %v51
  %v164 = vunpack.c.l.b16 %v52
  %v165 = vunpack.c.l.b16 %v53
  %v166 = vunpack.c.l.b16 %v54
  %v167 = vunpack.c.l.b16 %v55
  %v168 = vunpack.c.l.b16 %v56
  %v169 = vunpack.c.l.b16 %v57
  %v170 = vpack.c.b16 %v139, %v138
  %v171 = vpack.c.b16 %v141, %v140
  %v172 = vpack.c.b16 %v143, %v142
  %v173 = vpack.c.b16 %v145, %v144
  %v174 = vpack.c.b16 %v147, %v146
  %v175 = vpack.c.b16 %v149, %v148
  %v176 = vpack.c.b16 %v151, %v150
  %v177 = vpack.c.b16 %v153, %v152
  %v178 = vpack.c.b16 %v155, %v154
  %v179 = vpack.c.b16 %v157, %v156
  %v180 = vpack.c.b16 %v159, %v158
  %v181 = vpack.c.b16 %v161, %v160
  %v182 = vpack.c.b16 %v163, %v162
  %v183 = vpack.c.b16 %v165, %v164
  %v184 = vpack.c.b16 %v167, %v166
  %v185 = vpack.c.b16 %v169, %v168
  %202 = vmatprep.subr.bf16.mxu0 0
  %203 = vmatpush1.bf16.msra.mxu0 %v170
  %204 = vmatprep.subr.bf16.mxu0 0
  %205 = vmatpush1.bf16.msra.mxu0 %v171
  %206 = vmatprep.subr.bf16.mxu0 0
  %207 = vmatpush1.bf16.msra.mxu0 %v172
  %208 = vmatprep.subr.bf16.mxu0 0
  %209 = vmatpush1.bf16.msra.mxu0 %v173
  %210 = vmatprep.subr.bf16.mxu0 0
  %211 = vmatpush1.bf16.msra.mxu0 %v174
  %212 = vmatprep.subr.bf16.mxu0 0
  %213 = vmatpush1.bf16.msra.mxu0 %v175
  %214 = vmatprep.subr.bf16.mxu0 0
  %215 = vmatpush1.bf16.msra.mxu0 %v176
  %216 = vmatprep.subr.bf16.mxu0 0
  %217 = vmatpush1.bf16.msra.mxu0 %v177
  %218 = vmatprep.subr.bf16.mxu0 0
  %219 = vmatpush1.bf16.msra.mxu0 %v178
  %220 = vmatprep.subr.bf16.mxu0 0
  %221 = vmatpush1.bf16.msra.mxu0 %v179
  %222 = vmatprep.subr.bf16.mxu0 0
  %223 = vmatpush1.bf16.msra.mxu0 %v180
  %224 = vmatprep.subr.bf16.mxu0 0
  %225 = vmatpush1.bf16.msra.mxu0 %v181
  %226 = vmatprep.subr.bf16.mxu0 0
  %227 = vmatpush1.bf16.msra.mxu0 %v182
  %228 = vmatprep.subr.bf16.mxu0 0
  %229 = vmatpush1.bf16.msra.mxu0 %v183
  %230 = vmatprep.subr.bf16.mxu0 0
  %231 = vmatpush1.bf16.msra.mxu0 %v184
  %232 = vmatprep.subr.bf16.mxu0 0
  %233 = vmatpush1.bf16.msra.mxu0 %v185
  %234 = vmatprep.mubr.bf16.mxu0 %v91
  %235 = vmatmul.mubr.bf16.gmra.mrb[0].mxu0 %v90
  %v236 = vpop.f32.mrb[0].mxu0
  %v237 = vadd.f32 0.0, %v236
  %v238 = vpop.f32.mrb[0].mxu0
  %v239 = vpop.f32.mrb[0].mxu0
  %v240 = vadd.f32 0.0, %v239
  %v241 = vpop.f32.mrb[0].mxu0
  %242 = vmatprep.mubr.bf16.mxu0 %v93
  %243 = vmatmul.mubr.bf16.gmra.mrb[0].mxu0 %v92
  %v244 = vpop.f32.mrb[0].mxu0
  %v245 = vadd.f32 0.0, %v244
  %v246 = vpop.f32.mrb[0].mxu0
  %v247 = vpop.f32.mrb[0].mxu0
  %v248 = vadd.f32 0.0, %v247
  %v249 = vpop.f32.mrb[0].mxu0
  %250 = vmatprep.mubr.bf16.mxu0 %v95
  %251 = vmatmul.mubr.bf16.gmra.mrb[0].mxu0 %v94
  %v252 = vpop.f32.mrb[0].mxu0
  %v253 = vadd.f32 0.0, %v252
  %v254 = vpop.f32.mrb[0].mxu0
  %v255 = vpop.f32.mrb[0].mxu0
  %v256 = vadd.f32 0.0, %v255
  %v257 = vpop.f32.mrb[0].mxu0
  %258 = vmatprep.mubr.bf16.mxu0 %v97
  %259 = vmatmul.mubr.bf16.gmra.mrb[0].mxu0 %v96
  %v260 = vpop.f32.mrb[0].mxu0
  %v261 = vadd.f32 0.0, %v260
  %v262 = vpop.f32.mrb[0].mxu0
  %v263 = vpop.f32.mrb[0].mxu0
  %v264 = vadd.f32 0.0, %v263
  %v265 = vpop.f32.mrb[0].mxu0
  %266 = vdwg.mxu0
  %v267 = vld [vmem:[%s0 + $0x8] sm:$0xff]
  %v268 = vld [vmem:[%s0 + $0x28] sm:$0xff]
  %v269 = vld [vmem:[%s0 + $0x48] sm:$0xff]
  %v270 = vld [vmem:[%s0 + $0x68] sm:$0xff]
  %v271 = vld [vmem:[%s0 + $0x88] sm:$0xff]
  %v272 = vld [vmem:[%s0 + $0xa8] sm:$0xff]
  %v273 = vld [vmem:[%s0 + $0xc8] sm:$0xff]
  %v274 = vld [vmem:[%s0 + $0xe8] sm:$0xff]
  %v283 = vunpack.c.l.b16 %v267
  %v284 = vunpack.c.h.b16 %v267
  %v285 = vunpack.c.l.b16 %v268
  %v286 = vunpack.c.h.b16 %v268
  %v287 = vunpack.c.l.b16 %v269
  %v288 = vunpack.c.h.b16 %v269
  %v289 = vunpack.c.l.b16 %v270
  %v290 = vunpack.c.h.b16 %v270
  %v291 = vunpack.c.l.b16 %v271
  %v292 = vunpack.c.h.b16 %v271
  %v293 = vunpack.c.l.b16 %v272
  %v294 = vunpack.c.h.b16 %v272
  %v295 = vunpack.c.l.b16 %v273
  %v296 = vunpack.c.h.b16 %v273
  %v297 = vunpack.c.l.b16 %v274
  %v298 = vunpack.c.h.b16 %v274
  %v299 = vpack.c.b16 %v285, %v283
  %v300 = vpack.c.b16 %v286, %v284
  %v301 = vpack.c.b16 %v289, %v287
  %v302 = vpack.c.b16 %v290, %v288
  %v303 = vpack.c.b16 %v293, %v291
  %v304 = vpack.c.b16 %v294, %v292
  %v305 = vpack.c.b16 %v297, %v295
  %v306 = vpack.c.b16 %v298, %v296
  %315 = vmatprep.subr.bf16.mxu0 0
  %316 = vmatpush1.bf16.msra.mxu0 %v170
  %317 = vmatprep.subr.bf16.mxu0 0
  %318 = vmatpush1.bf16.msra.mxu0 %v171
  %319 = vmatprep.subr.bf16.mxu0 0
  %320 = vmatpush1.bf16.msra.mxu0 %v172
  %321 = vmatprep.subr.bf16.mxu0 0
  %322 = vmatpush1.bf16.msra.mxu0 %v173
  %323 = vmatprep.subr.bf16.mxu0 0
  %324 = vmatpush1.bf16.msra.mxu0 %v174
  %325 = vmatprep.subr.bf16.mxu0 0
  %326 = vmatpush1.bf16.msra.mxu0 %v175
  %327 = vmatprep.subr.bf16.mxu0 0
  %328 = vmatpush1.bf16.msra.mxu0 %v176
  %329 = vmatprep.subr.bf16.mxu0 0
  %330 = vmatpush1.bf16.msra.mxu0 %v177
  %331 = vmatprep.subr.bf16.mxu0 0
  %332 = vmatpush1.bf16.msra.mxu0 %v178
  %333 = vmatprep.subr.bf16.mxu0 0
  %334 = vmatpush1.bf16.msra.mxu0 %v179
  %335 = vmatprep.subr.bf16.mxu0 0
  %336 = vmatpush1.bf16.msra.mxu0 %v180
  %337 = vmatprep.subr.bf16.mxu0 0
  %338 = vmatpush1.bf16.msra.mxu0 %v181
  %339 = vmatprep.subr.bf16.mxu0 0
  %340 = vmatpush1.bf16.msra.mxu0 %v182
  %341 = vmatprep.subr.bf16.mxu0 0
  %342 = vmatpush1.bf16.msra.mxu0 %v183
  %343 = vmatprep.subr.bf16.mxu0 0
  %344 = vmatpush1.bf16.msra.mxu0 %v184
  %345 = vmatprep.subr.bf16.mxu0 0
  %346 = vmatpush1.bf16.msra.mxu0 %v185
  %347 = vmatprep.mubr.bf16.mxu0 %v300
  %348 = vmatmul.mubr.bf16.gmra.mrb[0].mxu0 %v299
  %v349 = vpop.f32.mrb[0].mxu0
  %v350 = vadd.f32 0.0, %v349
  %v351 = vpop.f32.mrb[0].mxu0
  %v352 = vpop.f32.mrb[0].mxu0
  %v353 = vadd.f32 0.0, %v352
  %v354 = vpop.f32.mrb[0].mxu0
  %355 = vmatprep.mubr.bf16.mxu0 %v302
  %356 = vmatmul.mubr.bf16.gmra.mrb[0].mxu0 %v301
  %v357 = vpop.f32.mrb[0].mxu0
  %v358 = vadd.f32 0.0, %v357
  %v359 = vpop.f32.mrb[0].mxu0
  %v360 = vpop.f32.mrb[0].mxu0
  %v361 = vadd.f32 0.0, %v360
  %v362 = vpop.f32.mrb[0].mxu0
  %363 = vmatprep.mubr.bf16.mxu0 %v304
  %364 = vmatmul.mubr.bf16.gmra.mrb[0].mxu0 %v303
  %v365 = vpop.f32.mrb[0].mxu0
  %v366 = vadd.f32 0.0, %v365
  %v367 = vpop.f32.mrb[0].mxu0
  %v368 = vpop.f32.mrb[0].mxu0
  %v369 = vadd.f32 0.0, %v368
  %v370 = vpop.f32.mrb[0].mxu0
  %371 = vmatprep.mubr.bf16.mxu0 %v306
  %372 = vmatmul.mubr.bf16.gmra.mrb[0].mxu0 %v305
  %v373 = vpop.f32.mrb[0].mxu0
  %v374 = vadd.f32 0.0, %v373
  %v375 = vpop.f32.mrb[0].mxu0
  %v376 = vpop.f32.mrb[0].mxu0
  %v377 = vadd.f32 0.0, %v376
  %v378 = vpop.f32.mrb[0].mxu0
  %379 = vdwg.mxu0
  %v380 = vmax.f32 %v237, %v350
  %v381 = vmax.f32 %v240, %v353
  %v382 = vmax.f32 %v245, %v358
  %v383 = vmax.f32 %v248, %v361
  %v384 = vmax.f32 %v253, %v366
  %v385 = vmax.f32 %v256, %v369
  %v386 = vmax.f32 %v261, %v374
  %v387 = vmax.f32 %v264, %v377
  %v388 = vld [vmem:[%s0 + $0x10] sm:$0xff]
  %v389 = vld [vmem:[%s0 + $0x30] sm:$0xff]
  %v390 = vld [vmem:[%s0 + $0x50] sm:$0xff]
  %v391 = vld [vmem:[%s0 + $0x70] sm:$0xff]
  %v392 = vld [vmem:[%s0 + $0x90] sm:$0xff]
  %v393 = vld [vmem:[%s0 + $0xb0] sm:$0xff]
  %v394 = vld [vmem:[%s0 + $0xd0] sm:$0xff]
  %v395 = vld [vmem:[%s0 + $0xf0] sm:$0xff]
  %v404 = vunpack.c.l.b16 %v388
  %v405 = vunpack.c.h.b16 %v388
  %v406 = vunpack.c.l.b16 %v389
  %v407 = vunpack.c.h.b16 %v389
  %v408 = vunpack.c.l.b16 %v390
  %v409 = vunpack.c.h.b16 %v390
  %v410 = vunpack.c.l.b16 %v391
  %v411 = vunpack.c.h.b16 %v391
  %v412 = vunpack.c.l.b16 %v392
  %v413 = vunpack.c.h.b16 %v392
  %v414 = vunpack.c.l.b16 %v393
  %v415 = vunpack.c.h.b16 %v393
  %v416 = vunpack.c.l.b16 %v394
  %v417 = vunpack.c.h.b16 %v394
  %v418 = vunpack.c.l.b16 %v395
  %v419 = vunpack.c.h.b16 %v395
  %v420 = vpack.c.b16 %v406, %v404
  %v421 = vpack.c.b16 %v407, %v405
  %v422 = vpack.c.b16 %v410, %v408
  %v423 = vpack.c.b16 %v411, %v409
  %v424 = vpack.c.b16 %v414, %v412
  %v425 = vpack.c.b16 %v415, %v413
  %v426 = vpack.c.b16 %v418, %v416
  %v427 = vpack.c.b16 %v419, %v417
  %436 = vmatprep.subr.bf16.mxu0 0
  %437 = vmatpush1.bf16.msra.mxu0 %v170
  %438 = vmatprep.subr.bf16.mxu0 0
  %439 = vmatpush1.bf16.msra.mxu0 %v171
  %440 = vmatprep.subr.bf16.mxu0 0
  %441 = vmatpush1.bf16.msra.mxu0 %v172
  %442 = vmatprep.subr.bf16.mxu0 0
  %443 = vmatpush1.bf16.msra.mxu0 %v173
  %444 = vmatprep.subr.bf16.mxu0 0
  %445 = vmatpush1.bf16.msra.mxu0 %v174
  %446 = vmatprep.subr.bf16.mxu0 0
  %447 = vmatpush1.bf16.msra.mxu0 %v175
  %448 = vmatprep.subr.bf16.mxu0 0
  %449 = vmatpush1.bf16.msra.mxu0 %v176
  %450 = vmatprep.subr.bf16.mxu0 0
  %451 = vmatpush1.bf16.msra.mxu0 %v177
  %452 = vmatprep.subr.bf16.mxu0 0
  %453 = vmatpush1.bf16.msra.mxu0 %v178
  %454 = vmatprep.subr.bf16.mxu0 0
  %455 = vmatpush1.bf16.msra.mxu0 %v179
  %456 = vmatprep.subr.bf16.mxu0 0
  %457 = vmatpush1.bf16.msra.mxu0 %v180
  %458 = vmatprep.subr.bf16.mxu0 0
  %459 = vmatpush1.bf16.msra.mxu0 %v181
  %460 = vmatprep.subr.bf16.mxu0 0
  %461 = vmatpush1.bf16.msra.mxu0 %v182
  %462 = vmatprep.subr.bf16.mxu0 0
  %463 = vmatpush1.bf16.msra.mxu0 %v183
  %464 = vmatprep.subr.bf16.mxu0 0
  %465 = vmatpush1.bf16.msra.mxu0 %v184
  %466 = vmatprep.subr.bf16.mxu0 0
  %467 = vmatpush1.bf16.msra.mxu0 %v185
  %468 = vmatprep.mubr.bf16.mxu0 %v421
  %469 = vmatmul.mubr.bf16.gmra.mrb[0].mxu0 %v420
  %v470 = vpop.f32.mrb[0].mxu0
  %v471 = vadd.f32 0.0, %v470
  %v472 = vpop.f32.mrb[0].mxu0
  %v473 = vpop.f32.mrb[0].mxu0
  %v474 = vadd.f32 0.0, %v473
  %v475 = vpop.f32.mrb[0].mxu0
  %476 = vmatprep.mubr.bf16.mxu0 %v423
  %477 = vmatmul.mubr.bf16.gmra.mrb[0].mxu0 %v422
  %v478 = vpop.f32.mrb[0].mxu0
  %v479 = vadd.f32 0.0, %v478
  %v480 = vpop.f32.mrb[0].mxu0
  %v481 = vpop.f32.mrb[0].mxu0
  %v482 = vadd.f32 0.0, %v481
  %v483 = vpop.f32.mrb[0].mxu0
  %484 = vmatprep.mubr.bf16.mxu0 %v425
  %485 = vmatmul.mubr.bf16.gmra.mrb[0].mxu0 %v424
  %v486 = vpop.f32.mrb[0].mxu0
  %v487 = vadd.f32 0.0, %v486
  %v488 = vpop.f32.mrb[0].mxu0
  %v489 = vpop.f32.mrb[0].mxu0
  %v490 = vadd.f32 0.0, %v489
  %v491 = vpop.f32.mrb[0].mxu0
  %492 = vmatprep.mubr.bf16.mxu0 %v427
  %493 = vmatmul.mubr.bf16.gmra.mrb[0].mxu0 %v426
  %v494 = vpop.f32.mrb[0].mxu0
  %v495 = vadd.f32 0.0, %v494
  %v496 = vpop.f32.mrb[0].mxu0
  %v497 = vpop.f32.mrb[0].mxu0
  %v498 = vadd.f32 0.0, %v497
  %v499 = vpop.f32.mrb[0].mxu0
  %500 = vdwg.mxu0
  %v501 = vmax.f32 %v380, %v471
  %v502 = vmax.f32 %v381, %v474
  %v503 = vmax.f32 %v382, %v479
  %v504 = vmax.f32 %v383, %v482
  %v505 = vmax.f32 %v384, %v487
  %v506 = vmax.f32 %v385, %v490
  %v507 = vmax.f32 %v386, %v495
  %v508 = vmax.f32 %v387, %v498
  %v509 = vld [vmem:[%s0 + $0x18] sm:$0xff]
  %v510 = vld [vmem:[%s0 + $0x38] sm:$0xff]
  %v511 = vld [vmem:[%s0 + $0x58] sm:$0xff]
  %v512 = vld [vmem:[%s0 + $0x78] sm:$0xff]
  %v513 = vld [vmem:[%s0 + $0x98] sm:$0xff]
  %v514 = vld [vmem:[%s0 + $0xb8] sm:$0xff]
  %v515 = vld [vmem:[%s0 + $0xd8] sm:$0xff]
  %v516 = vld [vmem:[%s0 + $0xf8] sm:$0xff]
  %v525 = vunpack.c.l.b16 %v509
  %v526 = vunpack.c.h.b16 %v509
  %v527 = vunpack.c.l.b16 %v510
  %v528 = vunpack.c.h.b16 %v510
  %v529 = vunpack.c.l.b16 %v511
  %v530 = vunpack.c.h.b16 %v511
  %v531 = vunpack.c.l.b16 %v512
  %v532 = vunpack.c.h.b16 %v512
  %v533 = vunpack.c.l.b16 %v513
  %v534 = vunpack.c.h.b16 %v513
  %v535 = vunpack.c.l.b16 %v514
  %v536 = vunpack.c.h.b16 %v514
  %v537 = vunpack.c.l.b16 %v515
  %v538 = vunpack.c.h.b16 %v515
  %v539 = vunpack.c.l.b16 %v516
  %v540 = vunpack.c.h.b16 %v516
  %v541 = vpack.c.b16 %v527, %v525
  %v542 = vpack.c.b16 %v528, %v526
  %v543 = vpack.c.b16 %v531, %v529
  %v544 = vpack.c.b16 %v532, %v530
  %v545 = vpack.c.b16 %v535, %v533
  %v546 = vpack.c.b16 %v536, %v534
  %v547 = vpack.c.b16 %v539, %v537
  %v548 = vpack.c.b16 %v540, %v538
  %557 = vmatprep.subr.bf16.mxu0 0
  %558 = vmatpush1.bf16.msra.mxu0 %v170
  %559 = vmatprep.subr.bf16.mxu0 0
  %560 = vmatpush1.bf16.msra.mxu0 %v171
  %561 = vmatprep.subr.bf16.mxu0 0
  %562 = vmatpush1.bf16.msra.mxu0 %v172
  %563 = vmatprep.subr.bf16.mxu0 0
  %564 = vmatpush1.bf16.msra.mxu0 %v173
  %565 = vmatprep.subr.bf16.mxu0 0
  %566 = vmatpush1.bf16.msra.mxu0 %v174
  %567 = vmatprep.subr.bf16.mxu0 0
  %568 = vmatpush1.bf16.msra.mxu0 %v175
  %569 = vmatprep.subr.bf16.mxu0 0
  %570 = vmatpush1.bf16.msra.mxu0 %v176
  %571 = vmatprep.subr.bf16.mxu0 0
  %572 = vmatpush1.bf16.msra.mxu0 %v177
  %573 = vmatprep.subr.bf16.mxu0 0
  %574 = vmatpush1.bf16.msra.mxu0 %v178
  %575 = vmatprep.subr.bf16.mxu0 0
  %576 = vmatpush1.bf16.msra.mxu0 %v179
  %577 = vmatprep.subr.bf16.mxu0 0
  %578 = vmatpush1.bf16.msra.mxu0 %v180
  %579 = vmatprep.subr.bf16.mxu0 0
  %580 = vmatpush1.bf16.msra.mxu0 %v181
  %581 = vmatprep.subr.bf16.mxu0 0
  %582 = vmatpush1.bf16.msra.mxu0 %v182
  %583 = vmatprep.subr.bf16.mxu0 0
  %584 = vmatpush1.bf16.msra.mxu0 %v183
  %585 = vmatprep.subr.bf16.mxu0 0
  %586 = vmatpush1.bf16.msra.mxu0 %v184
  %587 = vmatprep.subr.bf16.mxu0 0
  %588 = vmatpush1.bf16.msra.mxu0 %v185
  %589 = vmatprep.mubr.bf16.mxu0 %v542
  %590 = vmatmul.mubr.bf16.gmra.mrb[0].mxu0 %v541
  %v591 = vpop.f32.mrb[0].mxu0
  %v592 = vadd.f32 0.0, %v591
  %v593 = vpop.f32.mrb[0].mxu0
  %v594 = vpop.f32.mrb[0].mxu0
  %v595 = vadd.f32 0.0, %v594
  %v596 = vpop.f32.mrb[0].mxu0
  %597 = vmatprep.mubr.bf16.mxu0 %v544
  %598 = vmatmul.mubr.bf16.gmra.mrb[0].mxu0 %v543
  %v599 = vpop.f32.mrb[0].mxu0
  %v600 = vadd.f32 0.0, %v599
  %v601 = vpop.f32.mrb[0].mxu0
  %v602 = vpop.f32.mrb[0].mxu0
  %v603 = vadd.f32 0.0, %v602
  %v604 = vpop.f32.mrb[0].mxu0
  %605 = vmatprep.mubr.bf16.mxu0 %v546
  %606 = vmatmul.mubr.bf16.gmra.mrb[0].mxu0 %v545
  %v607 = vpop.f32.mrb[0].mxu0
  %v608 = vadd.f32 0.0, %v607
  %v609 = vpop.f32.mrb[0].mxu0
  %v610 = vpop.f32.mrb[0].mxu0
  %v611 = vadd.f32 0.0, %v610
  %v612 = vpop.f32.mrb[0].mxu0
  %613 = vmatprep.mubr.bf16.mxu0 %v548
  %614 = vmatmul.mubr.bf16.gmra.mrb[0].mxu0 %v547
  %v615 = vpop.f32.mrb[0].mxu0
  %v616 = vadd.f32 0.0, %v615
  %v617 = vpop.f32.mrb[0].mxu0
  %v618 = vpop.f32.mrb[0].mxu0
  %v619 = vadd.f32 0.0, %v618
  %v620 = vpop.f32.mrb[0].mxu0
  %621 = vdwg.mxu0
  %v622 = vmax.f32 %v501, %v592
  %v623 = vmax.f32 %v502, %v595
  %v624 = vmax.f32 %v503, %v600
  %v625 = vmax.f32 %v504, %v603
  %v626 = vmax.f32 %v505, %v608
  %v627 = vmax.f32 %v506, %v611
  %v628 = vmax.f32 %v507, %v616
  %v629 = vmax.f32 %v508, %v619
  %v630 = vld [vmem:[%s3] sm:$0x1]
  %v632 = vlaneseq
  %v633 = vshrl.u32 %v632, 7
  %v634 = vsub.s32 0, %v633
  %v635 = vrot.slane %v630, %v634
  %v637 = vadd.f32 %v622, %v635
  %v638 = vadd.f32 %v623, %v635
  %v639 = vadd.f32 %v624, %v635
  %v640 = vadd.f32 %v625, %v635
  %v641 = vadd.f32 %v626, %v635
  %v642 = vadd.f32 %v627, %v635
  %v643 = vadd.f32 %v628, %v635
  %v644 = vadd.f32 %v629, %v635
  %v645 = vmax.f32 %v637, 0.0
  %v646 = vmax.f32 %v638, 0.0
  %v647 = vmax.f32 %v639, 0.0
  %v648 = vmax.f32 %v640, 0.0
  %v649 = vmax.f32 %v641, 0.0
  %v650 = vmax.f32 %v642, 0.0
  %v651 = vmax.f32 %v643, 0.0
  %v652 = vmax.f32 %v644, 0.0
  %653 = vst [vmem:[%s6] sm:$0xff] %v645
  %654 = vst [vmem:[%s6 + $0x8] sm:$0xff] %v646
  %655 = vst [vmem:[%s6 + $0x10] sm:$0xff] %v647
  %656 = vst [vmem:[%s6 + $0x18] sm:$0xff] %v648
  %657 = vst [vmem:[%s6 + $0x20] sm:$0xff] %v649
  %658 = vst [vmem:[%s6 + $0x28] sm:$0xff] %v650
  %659 = vst [vmem:[%s6 + $0x30] sm:$0xff] %v651
  %660 = vst [vmem:[%s6 + $0x38] sm:$0xff] %v652
  %v661 = vld [vmem:[%s4] sm:$0xf]
  %v662 = vld [vmem:[%s4 + $0x4] sm:$0xf]
  %v663 = vld [vmem:[%s4 + $0x8] sm:$0xf]
  %v664 = vld [vmem:[%s4 + $0xc] sm:$0xf]
  %v665 = vld [vmem:[%s4 + $0x10] sm:$0xf]
  %v666 = vld [vmem:[%s4 + $0x14] sm:$0xf]
  %v667 = vld [vmem:[%s4 + $0x18] sm:$0xf]
  %v668 = vld [vmem:[%s4 + $0x1c] sm:$0xf]
  %v669 = vld [vmem:[%s4 + $0x20] sm:$0xf]
  %v670 = vld [vmem:[%s4 + $0x24] sm:$0xf]
  %v671 = vld [vmem:[%s4 + $0x28] sm:$0xf]
  %v672 = vld [vmem:[%s4 + $0x2c] sm:$0xf]
  %v673 = vld [vmem:[%s4 + $0x30] sm:$0xf]
  %v674 = vld [vmem:[%s4 + $0x34] sm:$0xf]
  %v675 = vld [vmem:[%s4 + $0x38] sm:$0xf]
  %v676 = vld [vmem:[%s4 + $0x3c] sm:$0xf]
  %v677 = vld [vmem:[%s1] sm:$0xf]
  %v678 = vld [vmem:[%s1 + $0x10] sm:$0xf]
  %v679 = vld [vmem:[%s1 + $0x20] sm:$0xf]
  %v680 = vld [vmem:[%s1 + $0x30] sm:$0xf]
  %v685 = vunpack.c.l.b16 %v677
  %v686 = vunpack.c.l.b16 %v678
  %v687 = vunpack.c.l.b16 %v679
  %v688 = vunpack.c.l.b16 %v680
  %v689 = vpack.c.b16 %v686, %v685
  %v690 = vpack.c.b16 %v688, %v687
  %v709 = vunpack.c.l.b16 %v661
  %v710 = vunpack.c.l.b16 %v662
  %v711 = vunpack.c.l.b16 %v663
  %v712 = vunpack.c.l.b16 %v664
  %v713 = vunpack.c.l.b16 %v665
  %v714 = vunpack.c.l.b16 %v666
  %v715 = vunpack.c.l.b16 %v667
  %v716 = vunpack.c.l.b16 %v668
  %v717 = vunpack.c.l.b16 %v669
  %v718 = vunpack.c.l.b16 %v670
  %v719 = vunpack.c.l.b16 %v671
  %v720 = vunpack.c.l.b16 %v672
  %v721 = vunpack.c.l.b16 %v673
  %v722 = vunpack.c.l.b16 %v674
  %v723 = vunpack.c.l.b16 %v675
  %v724 = vunpack.c.l.b16 %v676
  %v725 = vpack.c.b16 %v710, %v709
  %v726 = vpack.c.b16 %v712, %v711
  %v727 = vpack.c.b16 %v714, %v713
  %v728 = vpack.c.b16 %v716, %v715
  %v729 = vpack.c.b16 %v718, %v717
  %v730 = vpack.c.b16 %v720, %v719
  %v731 = vpack.c.b16 %v722, %v721
  %v732 = vpack.c.b16 %v724, %v723
  %741 = vmatprep.subr.bf16.mxu0 0
  %742 = vmatpush1.bf16.msra.mxu0 %v725
  %743 = vmatprep.subr.bf16.mxu0 0
  %744 = vmatpush1.bf16.msra.mxu0 %v726
  %745 = vmatprep.subr.bf16.mxu0 0
  %746 = vmatpush1.bf16.msra.mxu0 %v727
  %747 = vmatprep.subr.bf16.mxu0 0
  %748 = vmatpush1.bf16.msra.mxu0 %v728
  %749 = vmatprep.subr.bf16.mxu0 0
  %750 = vmatpush1.bf16.msra.mxu0 %v729
  %751 = vmatprep.subr.bf16.mxu0 0
  %752 = vmatpush1.bf16.msra.mxu0 %v730
  %753 = vmatprep.subr.bf16.mxu0 0
  %754 = vmatpush1.bf16.msra.mxu0 %v731
  %755 = vmatprep.subr.bf16.mxu0 0
  %756 = vmatpush1.bf16.msra.mxu0 %v732
  %757 = vmatprep.subr.bf16.mxu0 0
  %758 = vmatpush1.bf16.msra.mxu0 0
  %759 = vmatprep.subr.bf16.mxu0 0
  %760 = vmatpush1.bf16.msra.mxu0 0
  %761 = vmatprep.subr.bf16.mxu0 0
  %762 = vmatpush1.bf16.msra.mxu0 0
  %763 = vmatprep.subr.bf16.mxu0 0
  %764 = vmatpush1.bf16.msra.mxu0 0
  %765 = vmatprep.subr.bf16.mxu0 0
  %766 = vmatpush1.bf16.msra.mxu0 0
  %767 = vmatprep.subr.bf16.mxu0 0
  %768 = vmatpush1.bf16.msra.mxu0 0
  %769 = vmatprep.subr.bf16.mxu0 0
  %770 = vmatpush1.bf16.msra.mxu0 0
  %771 = vmatprep.subr.bf16.mxu0 0
  %772 = vmatpush1.bf16.msra.mxu0 0
  %773 = vmatprep.mubr.bf16.mxu0 0
  %774 = vmatmul.mubr.bf16.gmra.mrb[0].mxu0 %v689
  %v775 = vpop.f32.mrb[0].mxu0
  %v776 = vadd.f32 0.0, %v775
  %v777 = vpop.f32.mrb[0].mxu0
  %v778 = vpop.f32.mrb[0].mxu0
  %v779 = vadd.f32 0.0, %v778
  %v780 = vpop.f32.mrb[0].mxu0
  %781 = vmatprep.mubr.bf16.mxu0 0
  %782 = vmatmul.mubr.bf16.gmra.mrb[0].mxu0 %v690
  %v783 = vpop.f32.mrb[0].mxu0
  %v784 = vadd.f32 0.0, %v783
  %v785 = vpop.f32.mrb[0].mxu0
  %v786 = vpop.f32.mrb[0].mxu0
  %v787 = vadd.f32 0.0, %v786
  %v788 = vpop.f32.mrb[0].mxu0
  %789 = vdwg.mxu0
  %v790 = vld [vmem:[%s1 + $0x4] sm:$0xf]
  %v791 = vld [vmem:[%s1 + $0x14] sm:$0xf]
  %v792 = vld [vmem:[%s1 + $0x24] sm:$0xf]
  %v793 = vld [vmem:[%s1 + $0x34] sm:$0xf]
  %v798 = vunpack.c.l.b16 %v790
  %v799 = vunpack.c.l.b16 %v791
  %v800 = vunpack.c.l.b16 %v792
  %v801 = vunpack.c.l.b16 %v793
  %v802 = vpack.c.b16 %v799, %v798
  %v803 = vpack.c.b16 %v801, %v800
  %806 = vmatprep.subr.bf16.mxu0 0
  %807 = vmatpush1.bf16.msra.mxu0 %v725
  %808 = vmatprep.subr.bf16.mxu0 0
  %809 = vmatpush1.bf16.msra.mxu0 %v726
  %810 = vmatprep.subr.bf16.mxu0 0
  %811 = vmatpush1.bf16.msra.mxu0 %v727
  %812 = vmatprep.subr.bf16.mxu0 0
  %813 = vmatpush1.bf16.msra.mxu0 %v728
  %814 = vmatprep.subr.bf16.mxu0 0
  %815 = vmatpush1.bf16.msra.mxu0 %v729
  %816 = vmatprep.subr.bf16.mxu0 0
  %817 = vmatpush1.bf16.msra.mxu0 %v730
  %818 = vmatprep.subr.bf16.mxu0 0
  %819 = vmatpush1.bf16.msra.mxu0 %v731
  %820 = vmatprep.subr.bf16.mxu0 0
  %821 = vmatpush1.bf16.msra.mxu0 %v732
  %822 = vmatprep.subr.bf16.mxu0 0
  %823 = vmatpush1.bf16.msra.mxu0 0
  %824 = vmatprep.subr.bf16.mxu0 0
  %825 = vmatpush1.bf16.msra.mxu0 0
  %826 = vmatprep.subr.bf16.mxu0 0
  %827 = vmatpush1.bf16.msra.mxu0 0
  %828 = vmatprep.subr.bf16.mxu0 0
  %829 = vmatpush1.bf16.msra.mxu0 0
  %830 = vmatprep.subr.bf16.mxu0 0
  %831 = vmatpush1.bf16.msra.mxu0 0
  %832 = vmatprep.subr.bf16.mxu0 0
  %833 = vmatpush1.bf16.msra.mxu0 0
  %834 = vmatprep.subr.bf16.mxu0 0
  %835 = vmatpush1.bf16.msra.mxu0 0
  %836 = vmatprep.subr.bf16.mxu0 0
  %837 = vmatpush1.bf16.msra.mxu0 0
  %838 = vmatprep.mubr.bf16.mxu0 0
  %839 = vmatmul.mubr.bf16.gmra.mrb[0].mxu0 %v802
  %v840 = vpop.f32.mrb[0].mxu0
  %v841 = vadd.f32 0.0, %v840
  %v842 = vpop.f32.mrb[0].mxu0
  %v843 = vpop.f32.mrb[0].mxu0
  %v844 = vadd.f32 0.0, %v843
  %v845 = vpop.f32.mrb[0].mxu0
  %846 = vmatprep.mubr.bf16.mxu0 0
  %847 = vmatmul.mubr.bf16.gmra.mrb[0].mxu0 %v803
  %v848 = vpop.f32.mrb[0].mxu0
  %v849 = vadd.f32 0.0, %v848
  %v850 = vpop.f32.mrb[0].mxu0
  %v851 = vpop.f32.mrb[0].mxu0
  %v852 = vadd.f32 0.0, %v851
  %v853 = vpop.f32.mrb[0].mxu0
  %854 = vdwg.mxu0
  %v855 = vmax.f32 %v776, %v841
  %v856 = vmax.f32 %v779, %v844
  %v857 = vmax.f32 %v784, %v849
  %v858 = vmax.f32 %v787, %v852
  %v859 = vld [vmem:[%s1 + $0x8] sm:$0xf]
  %v860 = vld [vmem:[%s1 + $0x18] sm:$0xf]
  %v861 = vld [vmem:[%s1 + $0x28] sm:$0xf]
  %v862 = vld [vmem:[%s1 + $0x38] sm:$0xf]
  %v867 = vunpack.c.l.b16 %v859
  %v868 = vunpack.c.l.b16 %v860
  %v869 = vunpack.c.l.b16 %v861
  %v870 = vunpack.c.l.b16 %v862
  %v871 = vpack.c.b16 %v868, %v867
  %v872 = vpack.c.b16 %v870, %v869
  %875 = vmatprep.subr.bf16.mxu0 0
  %876 = vmatpush1.bf16.msra.mxu0 %v725
  %877 = vmatprep.subr.bf16.mxu0 0
  %878 = vmatpush1.bf16.msra.mxu0 %v726
  %879 = vmatprep.subr.bf16.mxu0 0
  %880 = vmatpush1.bf16.msra.mxu0 %v727
  %881 = vmatprep.subr.bf16.mxu0 0
  %882 = vmatpush1.bf16.msra.mxu0 %v728
  %883 = vmatprep.subr.bf16.mxu0 0
  %884 = vmatpush1.bf16.msra.mxu0 %v729
  %885 = vmatprep.subr.bf16.mxu0 0
  %886 = vmatpush1.bf16.msra.mxu0 %v730
  %887 = vmatprep.subr.bf16.mxu0 0
  %888 = vmatpush1.bf16.msra.mxu0 %v731
  %889 = vmatprep.subr.bf16.mxu0 0
  %890 = vmatpush1.bf16.msra.mxu0 %v732
  %891 = vmatprep.subr.bf16.mxu0 0
  %892 = vmatpush1.bf16.msra.mxu0 0
  %893 = vmatprep.subr.bf16.mxu0 0
  %894 = vmatpush1.bf16.msra.mxu0 0
  %895 = vmatprep.subr.bf16.mxu0 0
  %896 = vmatpush1.bf16.msra.mxu0 0
  %897 = vmatprep.subr.bf16.mxu0 0
  %898 = vmatpush1.bf16.msra.mxu0 0
  %899 = vmatprep.subr.bf16.mxu0 0
  %900 = vmatpush1.bf16.msra.mxu0 0
  %901 = vmatprep.subr.bf16.mxu0 0
  %902 = vmatpush1.bf16.msra.mxu0 0
  %903 = vmatprep.subr.bf16.mxu0 0
  %904 = vmatpush1.bf16.msra.mxu0 0
  %905 = vmatprep.subr.bf16.mxu0 0
  %906 = vmatpush1.bf16.msra.mxu0 0
  %907 = vmatprep.mubr.bf16.mxu0 0
  %908 = vmatmul.mubr.bf16.gmra.mrb[0].mxu0 %v871
  %v909 = vpop.f32.mrb[0].mxu0
  %v910 = vadd.f32 0.0, %v909
  %v911 = vpop.f32.mrb[0].mxu0
  %v912 = vpop.f32.mrb[0].mxu0
  %v913 = vadd.f32 0.0, %v912
  %v914 = vpop.f32.mrb[0].mxu0
  %915 = vmatprep.mubr.bf16.mxu0 0
  %916 = vmatmul.mubr.bf16.gmra.mrb[0].mxu0 %v872
  %v917 = vpop.f32.mrb[0].mxu0
  %v918 = vadd.f32 0.0, %v917
  %v919 = vpop.f32.mrb[0].mxu0
  %v920 = vpop.f32.mrb[0].mxu0
  %v921 = vadd.f32 0.0, %v920
  %v922 = vpop.f32.mrb[0].mxu0
  %923 = vdwg.mxu0
  %v924 = vmax.f32 %v855, %v910
  %v925 = vmax.f32 %v856, %v913
  %v926 = vmax.f32 %v857, %v918
  %v927 = vmax.f32 %v858, %v921
  %v928 = vld [vmem:[%s1 + $0xc] sm:$0xf]
  %v929 = vld [vmem:[%s1 + $0x1c] sm:$0xf]
  %v930 = vld [vmem:[%s1 + $0x2c] sm:$0xf]
  %v931 = vld [vmem:[%s1 + $0x3c] sm:$0xf]
  %v936 = vunpack.c.l.b16 %v928
  %v937 = vunpack.c.l.b16 %v929
  %v938 = vunpack.c.l.b16 %v930
  %v939 = vunpack.c.l.b16 %v931
  %v940 = vpack.c.b16 %v937, %v936
  %v941 = vpack.c.b16 %v939, %v938
  %944 = vmatprep.subr.bf16.mxu0 0
  %945 = vmatpush1.bf16.msra.mxu0 %v725
  %946 = vmatprep.subr.bf16.mxu0 0
  %947 = vmatpush1.bf16.msra.mxu0 %v726
  %948 = vmatprep.subr.bf16.mxu0 0
  %949 = vmatpush1.bf16.msra.mxu0 %v727
  %950 = vmatprep.subr.bf16.mxu0 0
  %951 = vmatpush1.bf16.msra.mxu0 %v728
  %952 = vmatprep.subr.bf16.mxu0 0
  %953 = vmatpush1.bf16.msra.mxu0 %v729
  %954 = vmatprep.subr.bf16.mxu0 0
  %955 = vmatpush1.bf16.msra.mxu0 %v730
  %956 = vmatprep.subr.bf16.mxu0 0
  %957 = vmatpush1.bf16.msra.mxu0 %v731
  %958 = vmatprep.subr.bf16.mxu0 0
  %959 = vmatpush1.bf16.msra.mxu0 %v732
  %960 = vmatprep.subr.bf16.mxu0 0
  %961 = vmatpush1.bf16.msra.mxu0 0
  %962 = vmatprep.subr.bf16.mxu0 0
  %963 = vmatpush1.bf16.msra.mxu0 0
  %964 = vmatprep.subr.bf16.mxu0 0
  %965 = vmatpush1.bf16.msra.mxu0 0
  %966 = vmatprep.subr.bf16.mxu0 0
  %967 = vmatpush1.bf16.msra.mxu0 0
  %968 = vmatprep.subr.bf16.mxu0 0
  %969 = vmatpush1.bf16.msra.mxu0 0
  %970 = vmatprep.subr.bf16.mxu0 0
  %971 = vmatpush1.bf16.msra.mxu0 0
  %972 = vmatprep.subr.bf16.mxu0 0
  %973 = vmatpush1.bf16.msra.mxu0 0
  %974 = vmatprep.subr.bf16.mxu0 0
  %975 = vmatpush1.bf16.msra.mxu0 0
  %976 = vmatprep.mubr.bf16.mxu0 0
  %977 = vmatmul.mubr.bf16.gmra.mrb[0].mxu0 %v940
  %v978 = vpop.f32.mrb[0].mxu0
  %v979 = vadd.f32 0.0, %v978
  %v980 = vpop.f32.mrb[0].mxu0
  %v981 = vpop.f32.mrb[0].mxu0
  %v982 = vadd.f32 0.0, %v981
  %v983 = vpop.f32.mrb[0].mxu0
  %984 = vmatprep.mubr.bf16.mxu0 0
  %985 = vmatmul.mubr.bf16.gmra.mrb[0].mxu0 %v941
  %v986 = vpop.f32.mrb[0].mxu0
  %v987 = vadd.f32 0.0, %v986
  %v988 = vpop.f32.mrb[0].mxu0
  %v989 = vpop.f32.mrb[0].mxu0
  %v990 = vadd.f32 0.0, %v989
  %v991 = vpop.f32.mrb[0].mxu0
  %992 = vdwg.mxu0
  %v993 = vmax.f32 %v924, %v979
  %v994 = vmax.f32 %v925, %v982
  %v995 = vmax.f32 %v926, %v987
  %v996 = vmax.f32 %v927, %v990
  %v997 = vld [vmem:[%s5] sm:$0x1]
  %v999 = vlaneseq
  %v1000 = vshrl.u32 %v999, 7
  %v1001 = vsub.s32 0, %v1000
  %v1002 = vrot.slane %v997, %v1001
  %v1004 = vadd.f32 %v993, %v1002
  %v1005 = vadd.f32 %v994, %v1002
  %v1006 = vadd.f32 %v995, %v1002
  %v1007 = vadd.f32 %v996, %v1002
  %v1008 = vmax.f32 %v1004, 0.0
  %v1009 = vmax.f32 %v1005, 0.0
  %v1010 = vmax.f32 %v1006, 0.0
  %v1011 = vmax.f32 %v1007, 0.0
  %1012 = vst [vmem:[%s7] sm:$0xff] %v1008
  %1013 = vst [vmem:[%s7 + $0x8] sm:$0xff] %v1009
  %1014 = vst [vmem:[%s7 + $0x10] sm:$0xff] %v1010
  %1015 = vst [vmem:[%s7 + $0x18] sm:$0xff] %v1011
  // Predicated region
  $region26: #{net_forward.4} parent=0 // pred_check
    _
  $region27: #{net_forward.4} parent=0 // pred_check_branch
    %1017 = sbr.rel (0) target = $region29
  $region28: #{net_forward.4} parent=0 // pred_region
    _
  $region29: #{net_forward.4} parent=0 // pred_fallthru
    _
  // Predicated region
  $region30: #{net_forward.4} parent=0 // pred_check
    _
  $region31: #{net_forward.4} parent=0 // pred_check_branch
    %1019 = sbr.rel (0) target = $region33
  $region32: #{net_forward.4} parent=0 // pred_region
    _
  $region33: #{net_forward.4} parent=0 // pred_fallthru
    _
  // Predicated region
  $region34: #{net_forward.4} parent=0 // pred_check
    _
  $region35: #{net_forward.4} parent=0 // pred_check_branch
    %1021 = sbr.rel (0) target = $region37
  $region36: #{net_forward.4} parent=0 // pred_region
    _
  $region37: #{net_forward.4} parent=0 // pred_fallthru
    _
  // Predicated region
  $region38: #{net_forward.4} parent=0 // pred_check
    _
  $region39: #{net_forward.4} parent=0 // pred_check_branch
    %1023 = sbr.rel (0) target = $region41
  $region40: #{net_forward.4} parent=0 // pred_region
    _
  $region41: #{net_forward.4} parent=0 // pred_fallthru
    _

// kernel: net_forward.5
$region0: #{net_forward.5}
  #allocation0 [shape = 'u32[]', space=smem, size = 0x4, offset = 0x4, fixed_abs, tag = 'smem constant byte address 0x4 - core index']
  #allocation1 [shape = 'u32[144,128]{1,0:T(1,128)}', space=vmem, size = 0x12000, scoped, tag = 'internal scratch']
  %s0 = inlined_call_operand.vmem [shape: bf16[16,768], index: 0, kind: input, shape index: {}]
  %s1 = inlined_call_operand.vmem [shape: bf16[768,128], index: 1, kind: input, shape index: {}]
  %s2 = inlined_call_operand.vmem [shape: f32[1,128], index: 2, kind: input, shape index: {}]
  %s3 = inlined_call_operand.vmem [shape: f32[1,128], index: 3, kind: input, shape index: {}]
  %s4 = inlined_call_operand.vmem [shape: bf16[128,128], index: 4, kind: input, shape index: {}]
  %s5 = inlined_call_operand.vmem [shape: f32[1,128], index: 5, kind: input, shape index: {}]
  %s6 = inlined_call_operand.vmem [shape: bf16[128,128], index: 6, kind: input, shape index: {}]
  %s7 = inlined_call_operand.vmem [shape: f32[1,128], index: 7, kind: input, shape index: {}]
  %s8 = inlined_call_operand.vmem [shape: f32[8,128], index: 8, kind: output, shape index: {}]
  %s9 = sld [smem:[#allocation0]]
  $region42: #{net_forward.5} parent=0
    _
  %s11 = ssub.s32 1, %s9
  %s12 = scalar_select 0, %s11, %s9
  // Predicated region
  $region2: #{net_forward.5} parent=0 // pred_check
    _
  $region3: #{net_forward.5} parent=0 // pred_check_branch
    %14 = sbr.rel (0) target = $region5
  $region4: #{net_forward.5} parent=0 // pred_region
    _
  $region5: #{net_forward.5} parent=0 // pred_fallthru
    _
  // Predicated region
  $region6: #{net_forward.5} parent=0 // pred_check
    _
  $region7: #{net_forward.5} parent=0 // pred_check_branch
    %16 = sbr.rel (0) target = $region9
  $region8: #{net_forward.5} parent=0 // pred_region
    _
  $region9: #{net_forward.5} parent=0 // pred_fallthru
    _
  // Predicated region
  $region10: #{net_forward.5} parent=0 // pred_check
    _
  $region11: #{net_forward.5} parent=0 // pred_check_branch
    %18 = sbr.rel (0) target = $region13
  $region12: #{net_forward.5} parent=0 // pred_region
    _
  $region13: #{net_forward.5} parent=0 // pred_fallthru
    _
  // Predicated region
  $region14: #{net_forward.5} parent=0 // pred_check
    _
  $region15: #{net_forward.5} parent=0 // pred_check_branch
    %20 = sbr.rel (0) target = $region17
  $region16: #{net_forward.5} parent=0 // pred_region
    _
  $region17: #{net_forward.5} parent=0 // pred_fallthru
    _
  // Predicated region
  $region18: #{net_forward.5} parent=0 // pred_check
    _
  $region19: #{net_forward.5} parent=0 // pred_check_branch
    %22 = sbr.rel (0) target = $region21
  $region20: #{net_forward.5} parent=0 // pred_region
    _
  $region21: #{net_forward.5} parent=0 // pred_fallthru
    _
  // Predicated region
  $region22: #{net_forward.5} parent=0 // pred_check
    _
  $region23: #{net_forward.5} parent=0 // pred_check_branch
    %24 = sbr.rel (0) target = $region25
  $region24: #{net_forward.5} parent=0 // pred_region
    _
  $region25: #{net_forward.5} parent=0 // pred_fallthru
    _
  // Predicated region
  $region26: #{net_forward.5} parent=0 // pred_check
    _
  $region27: #{net_forward.5} parent=0 // pred_check_branch
    %26 = sbr.rel (0) target = $region29
  $region28: #{net_forward.5} parent=0 // pred_region
    _
  $region29: #{net_forward.5} parent=0 // pred_fallthru
    _
  // Predicated region
  $region30: #{net_forward.5} parent=0 // pred_check
    _
  $region31: #{net_forward.5} parent=0 // pred_check_branch
    %28 = sbr.rel (0) target = $region33
  $region32: #{net_forward.5} parent=0 // pred_region
    _
  $region33: #{net_forward.5} parent=0 // pred_fallthru
    _
  %v30 = vld [vmem:[%s0] sm:$0xff]
  %v31 = vld [vmem:[%s0 + $0x8] sm:$0xff]
  %v32 = vld [vmem:[%s0 + $0x10] sm:$0xff]
  %v33 = vld [vmem:[%s0 + $0x18] sm:$0xff]
  %v34 = vld [vmem:[%s0 + $0x20] sm:$0xff]
  %v35 = vld [vmem:[%s0 + $0x28] sm:$0xff]
  %v36 = vld [vmem:[%s1] sm:$0xf]
  %v37 = vld [vmem:[%s1 + $0x4] sm:$0xf]
  %v38 = vld [vmem:[%s1 + $0x8] sm:$0xf]
  %v39 = vld [vmem:[%s1 + $0xc] sm:$0xf]
  %v40 = vld [vmem:[%s1 + $0x10] sm:$0xf]
  %v41 = vld [vmem:[%s1 + $0x14] sm:$0xf]
  %v42 = vld [vmem:[%s1 + $0x18] sm:$0xf]
  %v43 = vld [vmem:[%s1 + $0x1c] sm:$0xf]
  %v44 = vld [vmem:[%s1 + $0x20] sm:$0xf]
  %v45 = vld [vmem:[%s1 + $0x24] sm:$0xf]
  %v46 = vld [vmem:[%s1 + $0x28] sm:$0xf]
  %v47 = vld [vmem:[%s1 + $0x2c] sm:$0xf]
  %v48 = vld [vmem:[%s1 + $0x30] sm:$0xf]
  %v49 = vld [vmem:[%s1 + $0x34] sm:$0xf]
  %v50 = vld [vmem:[%s1 + $0x38] sm:$0xf]
  %v51 = vld [vmem:[%s1 + $0x3c] sm:$0xf]
  %v52 = vld [vmem:[%s1 + $0x40] sm:$0xf]
  %v53 = vld [vmem:[%s1 + $0x44] sm:$0xf]
  %v54 = vld [vmem:[%s1 + $0x48] sm:$0xf]
  %v55 = vld [vmem:[%s1 + $0x4c] sm:$0xf]
  %v56 = vld [vmem:[%s1 + $0x50] sm:$0xf]
  %v57 = vld [vmem:[%s1 + $0x54] sm:$0xf]
  %v58 = vld [vmem:[%s1 + $0x58] sm:$0xf]
  %v59 = vld [vmem:[%s1 + $0x5c] sm:$0xf]
  %v60 = vld [vmem:[%s1 + $0x60] sm:$0xf]
  %v61 = vld [vmem:[%s1 + $0x64] sm:$0xf]
  %v62 = vld [vmem:[%s1 + $0x68] sm:$0xf]
  %v63 = vld [vmem:[%s1 + $0x6c] sm:$0xf]
  %v64 = vld [vmem:[%s1 + $0x70] sm:$0xf]
  %v65 = vld [vmem:[%s1 + $0x74] sm:$0xf]
  %v66 = vld [vmem:[%s1 + $0x78] sm:$0xf]
  %v67 = vld [vmem:[%s1 + $0x7c] sm:$0xf]
  %v68 = vld [vmem:[%s1 + $0x80] sm:$0xf]
  %v69 = vld [vmem:[%s1 + $0x84] sm:$0xf]
  %v70 = vld [vmem:[%s1 + $0x88] sm:$0xf]
  %v71 = vld [vmem:[%s1 + $0x8c] sm:$0xf]
  %v72 = vld [vmem:[%s1 + $0x90] sm:$0xf]
  %v73 = vld [vmem:[%s1 + $0x94] sm:$0xf]
  %v74 = vld [vmem:[%s1 + $0x98] sm:$0xf]
  %v75 = vld [vmem:[%s1 + $0x9c] sm:$0xf]
  %v76 = vld [vmem:[%s1 + $0xa0] sm:$0xf]
  %v77 = vld [vmem:[%s1 + $0xa4] sm:$0xf]
  %v78 = vld [vmem:[%s1 + $0xa8] sm:$0xf]
  %v79 = vld [vmem:[%s1 + $0xac] sm:$0xf]
  %v80 = vld [vmem:[%s1 + $0xb0] sm:$0xf]
  %v81 = vld [vmem:[%s1 + $0xb4] sm:$0xf]
  %v82 = vld [vmem:[%s1 + $0xb8] sm:$0xf]
  %v83 = vld [vmem:[%s1 + $0xbc] sm:$0xf]
  %v84 = vld [vmem:[%s1 + $0xc0] sm:$0xf]
  %v85 = vld [vmem:[%s1 + $0xc4] sm:$0xf]
  %v86 = vld [vmem:[%s1 + $0xc8] sm:$0xf]
  %v87 = vld [vmem:[%s1 + $0xcc] sm:$0xf]
  %v88 = vld [vmem:[%s1 + $0xd0] sm:$0xf]
  %v89 = vld [vmem:[%s1 + $0xd4] sm:$0xf]
  %v90 = vld [vmem:[%s1 + $0xd8] sm:$0xf]
  %v91 = vld [vmem:[%s1 + $0xdc] sm:$0xf]
  %v92 = vld [vmem:[%s1 + $0xe0] sm:$0xf]
  %v93 = vld [vmem:[%s1 + $0xe4] sm:$0xf]
  %v94 = vld [vmem:[%s1 + $0xe8] sm:$0xf]
  %v95 = vld [vmem:[%s1 + $0xec] sm:$0xf]
  %v96 = vld [vmem:[%s1 + $0xf0] sm:$0xf]
  %v97 = vld [vmem:[%s1 + $0xf4] sm:$0xf]
  %v98 = vld [vmem:[%s1 + $0xf8] sm:$0xf]
  %v99 = vld [vmem:[%s1 + $0xfc] sm:$0xf]
  %v100 = vld [vmem:[%s1 + $0x100] sm:$0xf]
  %v101 = vld [vmem:[%s1 + $0x104] sm:$0xf]
  %v102 = vld [vmem:[%s1 + $0x108] sm:$0xf]
  %v103 = vld [vmem:[%s1 + $0x10c] sm:$0xf]
  %v104 = vld [vmem:[%s1 + $0x110] sm:$0xf]
  %v105 = vld [vmem:[%s1 + $0x114] sm:$0xf]
  %v106 = vld [vmem:[%s1 + $0x118] sm:$0xf]
  %v107 = vld [vmem:[%s1 + $0x11c] sm:$0xf]
  %v108 = vld [vmem:[%s1 + $0x120] sm:$0xf]
  %v109 = vld [vmem:[%s1 + $0x124] sm:$0xf]
  %v110 = vld [vmem:[%s1 + $0x128] sm:$0xf]
  %v111 = vld [vmem:[%s1 + $0x12c] sm:$0xf]
  %v112 = vld [vmem:[%s1 + $0x130] sm:$0xf]
  %v113 = vld [vmem:[%s1 + $0x134] sm:$0xf]
  %v114 = vld [vmem:[%s1 + $0x138] sm:$0xf]
  %v115 = vld [vmem:[%s1 + $0x13c] sm:$0xf]
  %v116 = vld [vmem:[%s1 + $0x140] sm:$0xf]
  %v117 = vld [vmem:[%s1 + $0x144] sm:$0xf]
  %v118 = vld [vmem:[%s1 + $0x148] sm:$0xf]
  %v119 = vld [vmem:[%s1 + $0x14c] sm:$0xf]
  %v120 = vld [vmem:[%s1 + $0x150] sm:$0xf]
  %v121 = vld [vmem:[%s1 + $0x154] sm:$0xf]
  %v122 = vld [vmem:[%s1 + $0x158] sm:$0xf]
  %v123 = vld [vmem:[%s1 + $0x15c] sm:$0xf]
  %v124 = vld [vmem:[%s1 + $0x160] sm:$0xf]
  %v125 = vld [vmem:[%s1 + $0x164] sm:$0xf]
  %v126 = vld [vmem:[%s1 + $0x168] sm:$0xf]
  %v127 = vld [vmem:[%s1 + $0x16c] sm:$0xf]
  %v128 = vld [vmem:[%s1 + $0x170] sm:$0xf]
  %v129 = vld [vmem:[%s1 + $0x174] sm:$0xf]
  %v130 = vld [vmem:[%s1 + $0x178] sm:$0xf]
  %v131 = vld [vmem:[%s1 + $0x17c] sm:$0xf]
  %v132 = vlaneseq
  %v133 = vshrl.u32 %v132, 7
  %v134 = vadd.s32 %v133, 8
  %vm135 = vcmp.lt.s32.totalorder %v133, 8
  %vm136 = vcmp.lt.s32.totalorder %v134, 8
  %v137 = vld [vmem:[%s2] sm:$0x1]
  %v139 = vlaneseq
  %v140 = vshrl.u32 %v139, 7
  %v141 = vsub.s32 0, %v140
  %v142 = vrot.slane %v137, %v141
  %v144 = vld [vmem:[%s3] sm:$0x1]
  %v146 = vlaneseq
  %v147 = vshrl.u32 %v146, 7
  %v148 = vsub.s32 0, %v147
  %v149 = vrot.slane %v144, %v148
  %v151 = vsel %vm135, %v142, %v149
  %v152 = vsel %vm136, %v142, %v149
  %v159 = vunpack.c.l.b16 %v30
  %v160 = vunpack.c.h.b16 %v30
  %v161 = vunpack.c.l.b16 %v31
  %v162 = vunpack.c.h.b16 %v31
  %v163 = vunpack.c.l.b16 %v32
  %v164 = vunpack.c.h.b16 %v32
  %v165 = vunpack.c.l.b16 %v33
  %v166 = vunpack.c.h.b16 %v33
  %v167 = vunpack.c.l.b16 %v34
  %v168 = vunpack.c.h.b16 %v34
  %v169 = vunpack.c.l.b16 %v35
  %v170 = vunpack.c.h.b16 %v35
  %v171 = vpack.c.b16 %v165, %v159
  %v172 = vpack.c.b16 %v166, %v160
  %v173 = vpack.c.b16 %v167, %v161
  %v174 = vpack.c.b16 %v168, %v162
  %v175 = vpack.c.b16 %v169, %v163
  %v176 = vpack.c.b16 %v170, %v164
  %v279 = vunpack.c.l.b16 %v36
  %v280 = vunpack.c.l.b16 %v37
  %v281 = vunpack.c.l.b16 %v38
  %v282 = vunpack.c.l.b16 %v39
  %v283 = vunpack.c.l.b16 %v40
  %v284 = vunpack.c.l.b16 %v41
  %v285 = vunpack.c.l.b16 %v42
  %v286 = vunpack.c.l.b16 %v43
  %v287 = vunpack.c.l.b16 %v44
  %v288 = vunpack.c.l.b16 %v45
  %v289 = vunpack.c.l.b16 %v46
  %v290 = vunpack.c.l.b16 %v47
  %v291 = vunpack.c.l.b16 %v48
  %v292 = vunpack.c.l.b16 %v49
  %v293 = vunpack.c.l.b16 %v50
  %v294 = vunpack.c.l.b16 %v51
  %v295 = vunpack.c.l.b16 %v52
  %v296 = vunpack.c.l.b16 %v53
  %v297 = vunpack.c.l.b16 %v54
  %v298 = vunpack.c.l.b16 %v55
  %v299 = vunpack.c.l.b16 %v56
  %v300 = vunpack.c.l.b16 %v57
  %v301 = vunpack.c.l.b16 %v58
  %v302 = vunpack.c.l.b16 %v59
  %v303 = vunpack.c.l.b16 %v60
  %v304 = vunpack.c.l.b16 %v61
  %v305 = vunpack.c.l.b16 %v62
  %v306 = vunpack.c.l.b16 %v63
  %v307 = vunpack.c.l.b16 %v64
  %v308 = vunpack.c.l.b16 %v65
  %v309 = vunpack.c.l.b16 %v66
  %v310 = vunpack.c.l.b16 %v67
  %v311 = vunpack.c.l.b16 %v68
  %v312 = vunpack.c.l.b16 %v69
  %v313 = vunpack.c.l.b16 %v70
  %v314 = vunpack.c.l.b16 %v71
  %v315 = vunpack.c.l.b16 %v72
  %v316 = vunpack.c.l.b16 %v73
  %v317 = vunpack.c.l.b16 %v74
  %v318 = vunpack.c.l.b16 %v75
  %v319 = vunpack.c.l.b16 %v76
  %v320 = vunpack.c.l.b16 %v77
  %v321 = vunpack.c.l.b16 %v78
  %v322 = vunpack.c.l.b16 %v79
  %v323 = vunpack.c.l.b16 %v80
  %v324 = vunpack.c.l.b16 %v81
  %v325 = vunpack.c.l.b16 %v82
  %v326 = vunpack.c.l.b16 %v83
  %v327 = vunpack.c.l.b16 %v84
  %v328 = vunpack.c.l.b16 %v85
  %v329 = vunpack.c.l.b16 %v86
  %v330 = vunpack.c.l.b16 %v87
  %v331 = vunpack.c.l.b16 %v88
  %v332 = vunpack.c.l.b16 %v89
  %v333 = vunpack.c.l.b16 %v90
  %v334 = vunpack.c.l.b16 %v91
  %v335 = vunpack.c.l.b16 %v92
  %v336 = vunpack.c.l.b16 %v93
  %v337 = vunpack.c.l.b16 %v94
  %v338 = vunpack.c.l.b16 %v95
  %v339 = vunpack.c.l.b16 %v96
  %v340 = vunpack.c.l.b16 %v97
  %v341 = vunpack.c.l.b16 %v98
  %v342 = vunpack.c.l.b16 %v99
  %v343 = vunpack.c.l.b16 %v100
  %v344 = vunpack.c.l.b16 %v101
  %v345 = vunpack.c.l.b16 %v102
  %v346 = vunpack.c.l.b16 %v103
  %v347 = vunpack.c.l.b16 %v104
  %v348 = vunpack.c.l.b16 %v105
  %v349 = vunpack.c.l.b16 %v106
  %v350 = vunpack.c.l.b16 %v107
  %v351 = vunpack.c.l.b16 %v108
  %v352 = vunpack.c.l.b16 %v109
  %v353 = vunpack.c.l.b16 %v110
  %v354 = vunpack.c.l.b16 %v111
  %v355 = vunpack.c.l.b16 %v112
  %v356 = vunpack.c.l.b16 %v113
  %v357 = vunpack.c.l.b16 %v114
  %v358 = vunpack.c.l.b16 %v115
  %v359 = vunpack.c.l.b16 %v116
  %v360 = vunpack.c.l.b16 %v117
  %v361 = vunpack.c.l.b16 %v118
  %v362 = vunpack.c.l.b16 %v119
  %v363 = vunpack.c.l.b16 %v120
  %v364 = vunpack.c.l.b16 %v121
  %v365 = vunpack.c.l.b16 %v122
  %v366 = vunpack.c.l.b16 %v123
  %v367 = vunpack.c.l.b16 %v124
  %v368 = vunpack.c.l.b16 %v125
  %v369 = vunpack.c.l.b16 %v126
  %v370 = vunpack.c.l.b16 %v127
  %v371 = vunpack.c.l.b16 %v128
  %v372 = vunpack.c.l.b16 %v129
  %v373 = vunpack.c.l.b16 %v130
  %v374 = vunpack.c.l.b16 %v131
  %v375 = vpack.c.b16 %v280, %v279
  %v376 = vpack.c.b16 %v282, %v281
  %v377 = vpack.c.b16 %v284, %v283
  %v378 = vpack.c.b16 %v286, %v285
  %v379 = vpack.c.b16 %v288, %v287
  %v380 = vpack.c.b16 %v290, %v289
  %v381 = vpack.c.b16 %v292, %v291
  %v382 = vpack.c.b16 %v294, %v293
  %v383 = vpack.c.b16 %v296, %v295
  %v384 = vpack.c.b16 %v298, %v297
  %v385 = vpack.c.b16 %v300, %v299
  %v386 = vpack.c.b16 %v302, %v301
  %v387 = vpack.c.b16 %v304, %v303
  %v388 = vpack.c.b16 %v306, %v305
  %v389 = vpack.c.b16 %v308, %v307
  %v390 = vpack.c.b16 %v310, %v309
  %v391 = vpack.c.b16 %v312, %v311
  %v392 = vpack.c.b16 %v314, %v313
  %v393 = vpack.c.b16 %v316, %v315
  %v394 = vpack.c.b16 %v318, %v317
  %v395 = vpack.c.b16 %v320, %v319
  %v396 = vpack.c.b16 %v322, %v321
  %v397 = vpack.c.b16 %v324, %v323
  %v398 = vpack.c.b16 %v326, %v325
  %v399 = vpack.c.b16 %v328, %v327
  %v400 = vpack.c.b16 %v330, %v329
  %v401 = vpack.c.b16 %v332, %v331
  %v402 = vpack.c.b16 %v334, %v333
  %v403 = vpack.c.b16 %v336, %v335
  %v404 = vpack.c.b16 %v338, %v337
  %v405 = vpack.c.b16 %v340, %v339
  %v406 = vpack.c.b16 %v342, %v341
  %v407 = vpack.c.b16 %v344, %v343
  %v408 = vpack.c.b16 %v346, %v345
  %v409 = vpack.c.b16 %v348, %v347
  %v410 = vpack.c.b16 %v350, %v349
  %v411 = vpack.c.b16 %v352, %v351
  %v412 = vpack.c.b16 %v354, %v353
  %v413 = vpack.c.b16 %v356, %v355
  %v414 = vpack.c.b16 %v358, %v357
  %v415 = vpack.c.b16 %v360, %v359
  %v416 = vpack.c.b16 %v362, %v361
  %v417 = vpack.c.b16 %v364, %v363
  %v418 = vpack.c.b16 %v366, %v365
  %v419 = vpack.c.b16 %v368, %v367
  %v420 = vpack.c.b16 %v370, %v369
  %v421 = vpack.c.b16 %v372, %v371
  %v422 = vpack.c.b16 %v374, %v373
  %471 = vmatprep.subr.bf16.mxu0 0
  %472 = vmatpush1.bf16.msra.mxu0 %v375
  %473 = vmatprep.subr.bf16.mxu0 0
  %474 = vmatpush1.bf16.msra.mxu0 %v376
  %475 = vmatprep.subr.bf16.mxu0 0
  %476 = vmatpush1.bf16.msra.mxu0 %v377
  %477 = vmatprep.subr.bf16.mxu0 0
  %478 = vmatpush1.bf16.msra.mxu0 %v378
  %479 = vmatprep.subr.bf16.mxu0 0
  %480 = vmatpush1.bf16.msra.mxu0 %v379
  %481 = vmatprep.subr.bf16.mxu0 0
  %482 = vmatpush1.bf16.msra.mxu0 %v380
  %483 = vmatprep.subr.bf16.mxu0 0
  %484 = vmatpush1.bf16.msra.mxu0 %v381
  %485 = vmatprep.subr.bf16.mxu0 0
  %486 = vmatpush1.bf16.msra.mxu0 %v382
  %487 = vmatprep.subr.bf16.mxu0 0
  %488 = vmatpush1.bf16.msra.mxu0 %v383
  %489 = vmatprep.subr.bf16.mxu0 0
  %490 = vmatpush1.bf16.msra.mxu0 %v384
  %491 = vmatprep.subr.bf16.mxu0 0
  %492 = vmatpush1.bf16.msra.mxu0 %v385
  %493 = vmatprep.subr.bf16.mxu0 0
  %494 = vmatpush1.bf16.msra.mxu0 %v386
  %495 = vmatprep.subr.bf16.mxu0 0
  %496 = vmatpush1.bf16.msra.mxu0 %v387
  %497 = vmatprep.subr.bf16.mxu0 0
  %498 = vmatpush1.bf16.msra.mxu0 %v388
  %499 = vmatprep.subr.bf16.mxu0 0
  %500 = vmatpush1.bf16.msra.mxu0 %v389
  %501 = vmatprep.subr.bf16.mxu0 0
  %502 = vmatpush1.bf16.msra.mxu0 %v390
  %503 = vmatprep.mubr.bf16.mxu0 %v172
  %504 = vmatmul.mubr.bf16.gmra.mrb[0].mxu0 %v171
  %v505 = vpop.f32.mrb[0].mxu0
  %v506 = vadd.f32 %v151, %v505
  %v507 = vpop.f32.mrb[0].mxu0
  %v508 = vpop.f32.mrb[0].mxu0
  %v509 = vadd.f32 %v152, %v508
  %v510 = vpop.f32.mrb[0].mxu0
  %511 = vdwg.mxu0
  %512 = vmatprep.subr.bf16.mxu0 0
  %513 = vmatpush1.bf16.msra.mxu0 %v391
  %514 = vmatprep.subr.bf16.mxu0 0
  %515 = vmatpush1.bf16.msra.mxu0 %v392
  %516 = vmatprep.subr.bf16.mxu0 0
  %517 = vmatpush1.bf16.msra.mxu0 %v393
  %518 = vmatprep.subr.bf16.mxu0 0
  %519 = vmatpush1.bf16.msra.mxu0 %v394
  %520 = vmatprep.subr.bf16.mxu0 0
  %521 = vmatpush1.bf16.msra.mxu0 %v395
  %522 = vmatprep.subr.bf16.mxu0 0
  %523 = vmatpush1.bf16.msra.mxu0 %v396
  %524 = vmatprep.subr.bf16.mxu0 0
  %525 = vmatpush1.bf16.msra.mxu0 %v397
  %526 = vmatprep.subr.bf16.mxu0 0
  %527 = vmatpush1.bf16.msra.mxu0 %v398
  %528 = vmatprep.subr.bf16.mxu0 0
  %529 = vmatpush1.bf16.msra.mxu0 %v399
  %530 = vmatprep.subr.bf16.mxu0 0
  %531 = vmatpush1.bf16.msra.mxu0 %v400
  %532 = vmatprep.subr.bf16.mxu0 0
  %533 = vmatpush1.bf16.msra.mxu0 %v401
  %534 = vmatprep.subr.bf16.mxu0 0
  %535 = vmatpush1.bf16.msra.mxu0 %v402
  %536 = vmatprep.subr.bf16.mxu0 0
  %537 = vmatpush1.bf16.msra.mxu0 %v403
  %538 = vmatprep.subr.bf16.mxu0 0
  %539 = vmatpush1.bf16.msra.mxu0 %v404
  %540 = vmatprep.subr.bf16.mxu0 0
  %541 = vmatpush1.bf16.msra.mxu0 %v405
  %542 = vmatprep.subr.bf16.mxu0 0
  %543 = vmatpush1.bf16.msra.mxu0 %v406
  %544 = vmatprep.mubr.bf16.mxu0 %v174
  %545 = vmatmul.mubr.bf16.gmra.mrb[0].mxu0 %v173
  %v546 = vpop.f32.mrb[0].mxu0
  %v547 = vadd.f32 %v506, %v546
  %v548 = vpop.f32.mrb[0].mxu0
  %v549 = vpop.f32.mrb[0].mxu0
  %v550 = vadd.f32 %v509, %v549
  %v551 = vpop.f32.mrb[0].mxu0
  %552 = vdwg.mxu0
  %553 = vmatprep.subr.bf16.mxu0 0
  %554 = vmatpush1.bf16.msra.mxu0 %v407
  %555 = vmatprep.subr.bf16.mxu0 0
  %556 = vmatpush1.bf16.msra.mxu0 %v408
  %557 = vmatprep.subr.bf16.mxu0 0
  %558 = vmatpush1.bf16.msra.mxu0 %v409
  %559 = vmatprep.subr.bf16.mxu0 0
  %560 = vmatpush1.bf16.msra.mxu0 %v410
  %561 = vmatprep.subr.bf16.mxu0 0
  %562 = vmatpush1.bf16.msra.mxu0 %v411
  %563 = vmatprep.subr.bf16.mxu0 0
  %564 = vmatpush1.bf16.msra.mxu0 %v412
  %565 = vmatprep.subr.bf16.mxu0 0
  %566 = vmatpush1.bf16.msra.mxu0 %v413
  %567 = vmatprep.subr.bf16.mxu0 0
  %568 = vmatpush1.bf16.msra.mxu0 %v414
  %569 = vmatprep.subr.bf16.mxu0 0
  %570 = vmatpush1.bf16.msra.mxu0 %v415
  %571 = vmatprep.subr.bf16.mxu0 0
  %572 = vmatpush1.bf16.msra.mxu0 %v416
  %573 = vmatprep.subr.bf16.mxu0 0
  %574 = vmatpush1.bf16.msra.mxu0 %v417
  %575 = vmatprep.subr.bf16.mxu0 0
  %576 = vmatpush1.bf16.msra.mxu0 %v418
  %577 = vmatprep.subr.bf16.mxu0 0
  %578 = vmatpush1.bf16.msra.mxu0 %v419
  %579 = vmatprep.subr.bf16.mxu0 0
  %580 = vmatpush1.bf16.msra.mxu0 %v420
  %581 = vmatprep.subr.bf16.mxu0 0
  %582 = vmatpush1.bf16.msra.mxu0 %v421
  %583 = vmatprep.subr.bf16.mxu0 0
  %584 = vmatpush1.bf16.msra.mxu0 %v422
  %585 = vmatprep.mubr.bf16.mxu0 %v176
  %586 = vmatmul.mubr.bf16.gmra.mrb[0].mxu0 %v175
  %v587 = vpop.f32.mrb[0].mxu0
  %v588 = vadd.f32 %v547, %v587
  %v589 = vpop.f32.mrb[0].mxu0
  %v590 = vpop.f32.mrb[0].mxu0
  %v591 = vadd.f32 %v550, %v590
  %v592 = vpop.f32.mrb[0].mxu0
  %593 = vdwg.mxu0
  %v594 = vmax.f32 %v588, 0.0
  %v595 = vmax.f32 %v591, 0.0
  %v596 = vpack.c.bf16 %v595, %v594
  %v597 = vld [vmem:[%s4] sm:$0xf]
  %v598 = vld [vmem:[%s4 + $0x4] sm:$0xf]
  %v599 = vld [vmem:[%s4 + $0x8] sm:$0xf]
  %v600 = vld [vmem:[%s4 + $0xc] sm:$0xf]
  %v601 = vld [vmem:[%s4 + $0x10] sm:$0xf]
  %v602 = vld [vmem:[%s4 + $0x14] sm:$0xf]
  %v603 = vld [vmem:[%s4 + $0x18] sm:$0xf]
  %v604 = vld [vmem:[%s4 + $0x1c] sm:$0xf]
  %v605 = vld [vmem:[%s4 + $0x20] sm:$0xf]
  %v606 = vld [vmem:[%s4 + $0x24] sm:$0xf]
  %v607 = vld [vmem:[%s4 + $0x28] sm:$0xf]
  %v608 = vld [vmem:[%s4 + $0x2c] sm:$0xf]
  %v609 = vld [vmem:[%s4 + $0x30] sm:$0xf]
  %v610 = vld [vmem:[%s4 + $0x34] sm:$0xf]
  %v611 = vld [vmem:[%s4 + $0x38] sm:$0xf]
  %v612 = vld [vmem:[%s4 + $0x3c] sm:$0xf]
  %v613 = vld [vmem:[%s5] sm:$0x1]
  %v615 = vlaneseq
  %v616 = vshrl.u32 %v615, 7
  %v617 = vsub.s32 0, %v616
  %v618 = vrot.slane %v613, %v617
  %v636 = vunpack.c.l.b16 %v597
  %v637 = vunpack.c.l.b16 %v598
  %v638 = vunpack.c.l.b16 %v599
  %v639 = vunpack.c.l.b16 %v600
  %v640 = vunpack.c.l.b16 %v601
  %v641 = vunpack.c.l.b16 %v602
  %v642 = vunpack.c.l.b16 %v603
  %v643 = vunpack.c.l.b16 %v604
  %v644 = vunpack.c.l.b16 %v605
  %v645 = vunpack.c.l.b16 %v606
  %v646 = vunpack.c.l.b16 %v607
  %v647 = vunpack.c.l.b16 %v608
  %v648 = vunpack.c.l.b16 %v609
  %v649 = vunpack.c.l.b16 %v610
  %v650 = vunpack.c.l.b16 %v611
  %v651 = vunpack.c.l.b16 %v612
  %v652 = vpack.c.b16 %v637, %v636
  %v653 = vpack.c.b16 %v639, %v638
  %v654 = vpack.c.b16 %v641, %v640
  %v655 = vpack.c.b16 %v643, %v642
  %v656 = vpack.c.b16 %v645, %v644
  %v657 = vpack.c.b16 %v647, %v646
  %v658 = vpack.c.b16 %v649, %v648
  %v659 = vpack.c.b16 %v651, %v650
  %668 = vmatprep.subr.bf16.mxu0 0
  %669 = vmatpush1.bf16.msra.mxu0 %v652
  %670 = vmatprep.subr.bf16.mxu0 0
  %671 = vmatpush1.bf16.msra.mxu0 %v653
  %672 = vmatprep.subr.bf16.mxu0 0
  %673 = vmatpush1.bf16.msra.mxu0 %v654
  %674 = vmatprep.subr.bf16.mxu0 0
  %675 = vmatpush1.bf16.msra.mxu0 %v655
  %676 = vmatprep.subr.bf16.mxu0 0
  %677 = vmatpush1.bf16.msra.mxu0 %v656
  %678 = vmatprep.subr.bf16.mxu0 0
  %679 = vmatpush1.bf16.msra.mxu0 %v657
  %680 = vmatprep.subr.bf16.mxu0 0
  %681 = vmatpush1.bf16.msra.mxu0 %v658
  %682 = vmatprep.subr.bf16.mxu0 0
  %683 = vmatpush1.bf16.msra.mxu0 %v659
  %684 = vmatprep.subr.bf16.mxu0 0
  %685 = vmatpush1.bf16.msra.mxu0 0
  %686 = vmatprep.subr.bf16.mxu0 0
  %687 = vmatpush1.bf16.msra.mxu0 0
  %688 = vmatprep.subr.bf16.mxu0 0
  %689 = vmatpush1.bf16.msra.mxu0 0
  %690 = vmatprep.subr.bf16.mxu0 0
  %691 = vmatpush1.bf16.msra.mxu0 0
  %692 = vmatprep.subr.bf16.mxu0 0
  %693 = vmatpush1.bf16.msra.mxu0 0
  %694 = vmatprep.subr.bf16.mxu0 0
  %695 = vmatpush1.bf16.msra.mxu0 0
  %696 = vmatprep.subr.bf16.mxu0 0
  %697 = vmatpush1.bf16.msra.mxu0 0
  %698 = vmatprep.subr.bf16.mxu0 0
  %699 = vmatpush1.bf16.msra.mxu0 0
  %700 = vmatprep.mubr.bf16.mxu0 0
  %701 = vmatmul.mubr.bf16.gmra.mrb[0].mxu0 %v596
  %v702 = vpop.f32.mrb[0].mxu0
  %v703 = vadd.f32 %v618, %v702
  %v704 = vpop.f32.mrb[0].mxu0
  %v705 = vpop.f32.mrb[0].mxu0
  %v706 = vadd.f32 %v618, %v705
  %v707 = vpop.f32.mrb[0].mxu0
  %708 = vdwg.mxu0
  %v709 = vmax.f32 %v703, 0.0
  %v710 = vmax.f32 %v706, 0.0
  %v711 = vpack.c.bf16 %v710, %v709
  %v712 = vld [vmem:[%s6] sm:$0xf]
  %v713 = vld [vmem:[%s6 + $0x4] sm:$0xf]
  %v714 = vld [vmem:[%s6 + $0x8] sm:$0xf]
  %v715 = vld [vmem:[%s6 + $0xc] sm:$0xf]
  %v716 = vld [vmem:[%s6 + $0x10] sm:$0xf]
  %v717 = vld [vmem:[%s6 + $0x14] sm:$0xf]
  %v718 = vld [vmem:[%s6 + $0x18] sm:$0xf]
  %v719 = vld [vmem:[%s6 + $0x1c] sm:$0xf]
  %v720 = vld [vmem:[%s6 + $0x20] sm:$0xf]
  %v721 = vld [vmem:[%s6 + $0x24] sm:$0xf]
  %v722 = vld [vmem:[%s6 + $0x28] sm:$0xf]
  %v723 = vld [vmem:[%s6 + $0x2c] sm:$0xf]
  %v724 = vld [vmem:[%s6 + $0x30] sm:$0xf]
  %v725 = vld [vmem:[%s6 + $0x34] sm:$0xf]
  %v726 = vld [vmem:[%s6 + $0x38] sm:$0xf]
  %v727 = vld [vmem:[%s6 + $0x3c] sm:$0xf]
  %v728 = vld [vmem:[%s7] sm:$0x1]
  %v730 = vlaneseq
  %v731 = vshrl.u32 %v730, 7
  %v732 = vsub.s32 0, %v731
  %v733 = vrot.slane %v728, %v732
  %v751 = vunpack.c.l.b16 %v712
  %v752 = vunpack.c.l.b16 %v713
  %v753 = vunpack.c.l.b16 %v714
  %v754 = vunpack.c.l.b16 %v715
  %v755 = vunpack.c.l.b16 %v716
  %v756 = vunpack.c.l.b16 %v717
  %v757 = vunpack.c.l.b16 %v718
  %v758 = vunpack.c.l.b16 %v719
  %v759 = vunpack.c.l.b16 %v720
  %v760 = vunpack.c.l.b16 %v721
  %v761 = vunpack.c.l.b16 %v722
  %v762 = vunpack.c.l.b16 %v723
  %v763 = vunpack.c.l.b16 %v724
  %v764 = vunpack.c.l.b16 %v725
  %v765 = vunpack.c.l.b16 %v726
  %v766 = vunpack.c.l.b16 %v727
  %v767 = vpack.c.b16 %v752, %v751
  %v768 = vpack.c.b16 %v754, %v753
  %v769 = vpack.c.b16 %v756, %v755
  %v770 = vpack.c.b16 %v758, %v757
  %v771 = vpack.c.b16 %v760, %v759
  %v772 = vpack.c.b16 %v762, %v761
  %v773 = vpack.c.b16 %v764, %v763
  %v774 = vpack.c.b16 %v766, %v765
  %783 = vmatprep.subr.bf16.mxu0 0
  %784 = vmatpush1.bf16.msra.mxu0 %v767
  %785 = vmatprep.subr.bf16.mxu0 0
  %786 = vmatpush1.bf16.msra.mxu0 %v768
  %787 = vmatprep.subr.bf16.mxu0 0
  %788 = vmatpush1.bf16.msra.mxu0 %v769
  %789 = vmatprep.subr.bf16.mxu0 0
  %790 = vmatpush1.bf16.msra.mxu0 %v770
  %791 = vmatprep.subr.bf16.mxu0 0
  %792 = vmatpush1.bf16.msra.mxu0 %v771
  %793 = vmatprep.subr.bf16.mxu0 0
  %794 = vmatpush1.bf16.msra.mxu0 %v772
  %795 = vmatprep.subr.bf16.mxu0 0
  %796 = vmatpush1.bf16.msra.mxu0 %v773
  %797 = vmatprep.subr.bf16.mxu0 0
  %798 = vmatpush1.bf16.msra.mxu0 %v774
  %799 = vmatprep.subr.bf16.mxu0 0
  %800 = vmatpush1.bf16.msra.mxu0 0
  %801 = vmatprep.subr.bf16.mxu0 0
  %802 = vmatpush1.bf16.msra.mxu0 0
  %803 = vmatprep.subr.bf16.mxu0 0
  %804 = vmatpush1.bf16.msra.mxu0 0
  %805 = vmatprep.subr.bf16.mxu0 0
  %806 = vmatpush1.bf16.msra.mxu0 0
  %807 = vmatprep.subr.bf16.mxu0 0
  %808 = vmatpush1.bf16.msra.mxu0 0
  %809 = vmatprep.subr.bf16.mxu0 0
  %810 = vmatpush1.bf16.msra.mxu0 0
  %811 = vmatprep.subr.bf16.mxu0 0
  %812 = vmatpush1.bf16.msra.mxu0 0
  %813 = vmatprep.subr.bf16.mxu0 0
  %814 = vmatpush1.bf16.msra.mxu0 0
  %815 = vmatprep.mubr.bf16.mxu0 0
  %816 = vmatmul.mubr.bf16.gmra.mrb[0].mxu0 %v711
  %v817 = vpop.f32.mrb[0].mxu0
  %v818 = vadd.f32 %v733, %v817
  %v819 = vpop.f32.mrb[0].mxu0
  %v820 = vpop.f32.mrb[0].mxu0
  %v821 = vadd.f32 %v733, %v820
  %v822 = vpop.f32.mrb[0].mxu0
  %823 = vdwg.mxu0
  %v824 = vadd.f32 %v818, %v821
  %v825 = vmul.f32 %v824, 0.5
  %826 = vst [vmem:[%s8] sm:$0xff] %v825
  // Predicated region
  $region34: #{net_forward.5} parent=0 // pred_check
    _
  $region35: #{net_forward.5} parent=0 // pred_check_branch
    %828 = sbr.rel (0) target = $region37
  $region36: #{net_forward.5} parent=0 // pred_region
    _
  $region37: #{net_forward.5} parent=0 // pred_fallthru
    _
  // Predicated region
  $region38: #{net_forward.5} parent=0 // pred_check
    _
  $region39: #{net_forward.5} parent=0 // pred_check_branch
    %830 = sbr.rel (0) target = $region41
  $region40: #{net_forward.5} parent=0 // pred_region
    _
  $region41: #{net_forward.5} parent=0 // pred_fallthru
    _

</llo_original>
